<compile_context>
chip_gen: v6e
topology: v6e:2x2x1
jax: 0.10.0
libtpu: 0.0.40
codegen_flags: <defaults>
</compile_context>

<pallas_src>
import functools

import jax
import jax.numpy as jnp
from jax.experimental import pallas as pl
from jax.experimental.pallas import tpu as pltpu


# ---------------------------------------------------------------------------
# Fused kernel: conv1+bn1+relu -> conv2+bn2 -> +residual -> relu  (one strip)
# ---------------------------------------------------------------------------
def _basic_block_kernel(xp_ref, w1_ref, b1_ref, w2_ref, b2_ref, out_ref,
                        ypad_ref, *, H, W, Cpad, TH, nstrips):
    """One (batch, row-strip) pair per grid step.

    xp_ref  : (1, H+4, W+2, Cpad) f32  pre-padded input (2-row/1-col zero halo,
                                       channels zero-padded to Cpad); whole
                                       image, resident across the strip axis.
    w1_ref  : (9*Cpad, Cpad) bf16      conv1 weights, BN1 scale folded in.
    b1_ref  : (1, Cpad)      f32       folded BN1 bias.
    w2_ref  : (9*Cpad, Cpad) bf16      conv2 weights, BN2 scale folded in.
    b2_ref  : (1, Cpad)      f32       folded BN2 bias.
    out_ref : (1, TH*W, Cpad) f32      lane-dense output strip.
    ypad_ref: (TH+2, W+2, Cpad) bf16   intermediate strip + 1-row/1-col halo.
    """
    s = pl.program_id(1)
    r0 = pl.multiple_of(s * TH, TH)        # strip start (padded-row coords)
    M1 = (TH + 2) * W                      # conv1 rows (incl. recomputed halo)
    M2 = TH * W                            # conv2 / output rows

    b1 = b1_ref[...]
    b2 = b2_ref[...]

    # Only the 1-col halo of the intermediate needs explicit zeros (conv2
    # "same" padding); the interior is fully overwritten below.  Zeroed every
    # step (not on program_id==0) so it is safe under megacore sharding.
    zcol = jnp.zeros((TH + 2, 1, Cpad), jnp.bfloat16)
    ypad_ref[:, 0:1, :] = zcol
    ypad_ref[:, W + 1:W + 2, :] = zcol

    # ---------------- conv1 + bn1(+folded scale) + relu ---------------------
    # Tap-accumulation: 9 MXU matmuls reading taps straight from the padded
    # input block (no im2col buffer, no staging stores).
    acc1 = None
    for dy in range(3):
        for dx in range(3):
            k = dy * 3 + dx
            patch = xp_ref[0, pl.ds(r0 + dy, TH + 2), dx:dx + W, :]
            lhs = patch.reshape(M1, Cpad).astype(jnp.bfloat16)
            t = jnp.dot(lhs, w1_ref[k * Cpad:(k + 1) * Cpad, :],
                        preferred_element_type=jnp.float32)
            acc1 = t if acc1 is None else acc1 + t
    y1 = jnp.maximum(acc1 + b1, 0.0)
    ypad_ref[:, 1:W + 1, :] = y1.reshape(TH + 2, W, Cpad).astype(jnp.bfloat16)

    # Where the strip's halo rows fall outside the image, conv2's padding is
    # zero -- overwrite the recomputed values at the boundary strips only.
    zrow = jnp.zeros((1, W, Cpad), jnp.bfloat16)

    @pl.when(s == 0)
    def _():
        ypad_ref[0:1, 1:W + 1, :] = zrow

    @pl.when(s == nstrips - 1)
    def _():
        ypad_ref[TH + 1:TH + 2, 1:W + 1, :] = zrow

    # -------- conv2 + bn2(+folded scale) + residual + relu ------------------
    acc2 = None
    for dy in range(3):
        for dx in range(3):
            k = dy * 3 + dx
            patch = ypad_ref[dy:dy + TH, dx:dx + W, :]
            t = jnp.dot(patch.reshape(M2, Cpad),
                        w2_ref[k * Cpad:(k + 1) * Cpad, :],
                        preferred_element_type=jnp.float32)
            acc2 = t if acc2 is None else acc2 + t
    # Residual: exact f32 rows of the already-resident padded input block.
    res = xp_ref[0, pl.ds(r0 + 2, TH), 1:W + 1, :].reshape(M2, Cpad)
    y2 = jnp.maximum(acc2 + b2 + res, 0.0)
    out_ref[0, :, :] = y2.astype(out_ref.dtype)


# ---------------------------------------------------------------------------
# Wrapper
# ---------------------------------------------------------------------------
def _pick_strip_rows(H, W, Cpad):
    """Largest strip TH (divisor of H) whose conv1 accumulator (TH+2)*W*Cpad*4B
    stays within ~32 f32 vregs; also keeps TH*W sublane-aligned (or TH==H)."""
    cap = min(256, max(8, 32768 // Cpad))
    legal = [th for th in range(1, H + 1)
             if H % th == 0 and ((th * W) % 8 == 0 or th == H)]
    fitting = [th for th in legal if (th + 2) * W <= cap]
    # TODO(synk): for wide rows where only tiny TH fits (e.g. 56x56 at Cpad=128),
    # sub-chunk the conv1 matmul inside the strip (or use a software-skewed
    # strip pipeline) to cut the 2-row halo-recompute overhead.
    return max(fitting) if fitting else min(legal)


def basic_block_forward(x_nchw, params):
    """BasicBlock forward (stride=1, downsample=None). Input/output NCHW."""
    N, C, H, W = x_nchw.shape
    Cpad = ((C + 127) // 128) * 128          # lane-dense channel width
    TH = _pick_strip_rows(H, W, Cpad)
    nstrips = H // TH

    # Pre-pad once in XLA (fuses with the NCHW->NHWC transpose): 2-row / 1-col
    # spatial halo + channel pad to the 128-lane width.  The kernel then never
    # zero-fills / restages the input and every in-kernel store is lane-dense.
    x_nhwc = jnp.transpose(x_nchw, (0, 2, 3, 1)).astype(jnp.float32)
    xp = jnp.pad(x_nhwc, ((0, 0), (2, 2), (1, 1), (0, Cpad - C)))

    # Fold BN scale into conv weights (conv(x,w)*s + b == conv(x, w*s) + b),
    # pad channels to Cpad, flatten to the (9*Cpad, Cpad) tap-matmul operand.
    # In a real model this prep happens once at weight-load time.
    def prep_w(w_hwio, scale):
        w = (w_hwio * scale[None, None, None, :]).astype(jnp.float32)
        wp = jnp.zeros((3, 3, Cpad, Cpad), jnp.float32)
        wp = wp.at[:, :, :C, :C].set(w)
        return wp.reshape(9 * Cpad, Cpad).astype(jnp.bfloat16)

    def prep_b(bias):
        return jnp.zeros((1, Cpad), jnp.float32).at[0, :C].set(bias)

    w1 = prep_w(params["w1_hwio"], params["bn1_scale"])
    w2 = prep_w(params["w2_hwio"], params["bn2_scale"])
    b1 = prep_b(params["bn1_bias"])
    b2 = prep_b(params["bn2_bias"])

    kernel = functools.partial(_basic_block_kernel, H=H, W=W, Cpad=Cpad,
                               TH=TH, nstrips=nstrips)

    flops = (2 * N * nstrips * (TH + 2) * W * 9 * Cpad * Cpad   # conv1 + halo
             + 2 * N * H * W * 9 * Cpad * Cpad)                 # conv2
    bytes_accessed = (xp.size * 4 + (w1.size + w2.size) * 2
                      + (b1.size + b2.size) * 4 + N * H * W * Cpad * 4)

    out = pl.pallas_call(
        kernel,
        out_shape=jax.ShapeDtypeStruct((N, H * W, Cpad), x_nchw.dtype),
        grid_spec=pltpu.PrefetchScalarGridSpec(
            num_scalar_prefetch=0,
            grid=(N, nstrips),
            in_specs=[
                # Whole padded image per batch element; block index constant
                # along the strip axis so it stays resident (no re-DMA).
                pl.BlockSpec((1, H + 4, W + 2, Cpad), lambda n, s: (n, 0, 0, 0)),
                pl.BlockSpec((9 * Cpad, Cpad), lambda n, s: (0, 0)),
                pl.BlockSpec((1, Cpad), lambda n, s: (0, 0)),
                pl.BlockSpec((9 * Cpad, Cpad), lambda n, s: (0, 0)),
                pl.BlockSpec((1, Cpad), lambda n, s: (0, 0)),
            ],
            out_specs=pl.BlockSpec((1, TH * W, Cpad), lambda n, s: (n, s, 0)),
            scratch_shapes=[
                pltpu.VMEM((TH + 2, W + 2, Cpad), jnp.bfloat16),  # intermediate strip
            ],
        ),
        compiler_params=pltpu.CompilerParams(
            # Strips recompute their 1-row conv1 halo, so both axes are
            # independent -> batch AND strips can shard across both TensorCores.
            dimension_semantics=("parallel", "parallel"),
            # Per-step footprint is a few MiB even at 112x112xCpad=128, so the
            # v7x-safe 32 MiB scoped limit is plenty.
            vmem_limit_bytes=32 * 1024 * 1024,
        ),
        cost_estimate=pl.CostEstimate(
            flops=flops, transcendentals=0, bytes_accessed=bytes_accessed),
    )(xp, w1, b1, w2, b2)

    # NCHW re-packing for the PyTorch-shaped API (one fused slice+transpose in
    # XLA).  TODO(synk): NHWC consumers should take the (N, H*W, Cpad) slab
    # directly (optionally bf16) and skip this extra HBM round trip.
    out = out.reshape(N, H, W, Cpad)[:, :, :, :C]
    return jnp.transpose(out, (0, 3, 1, 2))


# ---------------------------------------------------------------------------
# Deterministic parameter construction (shapes follow nn.Conv2d / BatchNorm2d)
# ---------------------------------------------------------------------------
def init_params(key, inplanes, planes):
    k1, k2 = jax.random.split(key)
    # torch conv weight layout: (out, in, 3, 3) -> HWIO
    w1_oihw = jax.random.normal(k1, (planes, inplanes, 3, 3), jnp.float32) * 0.1
    w2_oihw = jax.random.normal(k2, (planes, planes, 3, 3), jnp.float32) * 0.1
    eps = 1e-5
    gamma = jnp.ones((planes,), jnp.float32)
    beta = jnp.zeros((planes,), jnp.float32)
    running_mean = jnp.zeros((planes,), jnp.float32)
    running_var = jnp.ones((planes,), jnp.float32)
    scale = gamma / jnp.sqrt(running_var + eps)
    bias = beta - running_mean * scale
    return {
        "w1_hwio": jnp.transpose(w1_oihw, (2, 3, 1, 0)),
        "w2_hwio": jnp.transpose(w2_oihw, (2, 3, 1, 0)),
        "bn1_scale": scale, "bn1_bias": bias,
        "bn2_scale": scale, "bn2_bias": bias,
    }


# ---------------------------------------------------------------------------
# Pure-JAX reference with matched numerics (bf16 matmul inputs, f32 accum,
# f32 bias/residual) for a tight correctness check.
# ---------------------------------------------------------------------------
def _ref_forward(x_nchw, params):
    x = jnp.transpose(x_nchw, (0, 2, 3, 1)).astype(jnp.float32)
    dn = ("NHWC", "HWIO", "NHWC")

    def conv_bf16(v, w):
        return jax.lax.conv_general_dilated(
            v.astype(jnp.bfloat16), w.astype(jnp.bfloat16), (1, 1), "SAME",
            dimension_numbers=dn, preferred_element_type=jnp.float32)

    w1 = params["w1_hwio"] * params["bn1_scale"][None, None, None, :]
    w2 = params["w2_hwio"] * params["bn2_scale"][None, None, None, :]
    out = jnp.maximum(conv_bf16(x, w1) + params["bn1_bias"], 0.0)
    out = conv_bf16(out, w2) + params["bn2_bias"]
    out = jnp.maximum(out + x, 0.0)
    return jnp.transpose(out, (0, 3, 1, 2))


if __name__ == "__main__":
    key = jax.random.PRNGKey(0)
    kx, kp = jax.random.split(key)

    # NOTE: C=4 (Cpad=128) is a correctness-only shape -- >96% of the matmul is
    # zero padding.  Performance-relevant shapes are C=64..512 (ResNet stages).
    N, C, H, W = 2, 4, 16, 16          # inplanes = planes = 4
    x = jax.random.normal(kx, (N, C, H, W), jnp.float32)
    params = init_params(kp, inplanes=C, planes=C)

    out = jax.block_until_ready(basic_block_forward(x, params))
    ref = jax.block_until_ready(_ref_forward(x, params))

    assert out.shape == (N, C, H, W)
    max_err = float(jnp.max(jnp.abs(out - ref)))
    assert jnp.allclose(out, ref, atol=1e-3, rtol=1e-3), \
        f"max abs err {max_err}"
    print("KERNEL_OK")
</pallas_src>

<mosaic_0001>
module attributes {stable_mosaic.version = 11 : i64} {
  func.func @_basic_block_kernel(%arg0: i32, %arg1: i32, %arg2: memref<1x20x18x128xf32, #tpu.memory_space<vmem>>, %arg3: memref<1152x128xbf16, #tpu.memory_space<vmem>>, %arg4: memref<1x128xf32, #tpu.memory_space<vmem>>, %arg5: memref<1152x128xbf16, #tpu.memory_space<vmem>>, %arg6: memref<1x128xf32, #tpu.memory_space<vmem>>, %arg7: memref<1x128x128xf32, #tpu.memory_space<vmem>>, %arg8: memref<10x18x128xbf16, #tpu.memory_space<vmem>>) attributes {dimension_semantics = [#tpu.dimension_semantics<parallel>, #tpu.dimension_semantics<parallel>], iteration_bounds = array<i64: 2, 2>, scalar_prefetch = 0 : i64, scratch_operands = 1 : i64, tpu.core_type = #tpu.core_type<tc>, window_params = [{transform_indices = @transform_0, window_bounds = array<i64: 1, 20, 18, 128>}, {pipeline_mode = #tpu.pipeline_mode<synchronous>, transform_indices = @transform_1, window_bounds = array<i64: 1152, 128>}, {pipeline_mode = #tpu.pipeline_mode<synchronous>, transform_indices = @transform_2, window_bounds = array<i64: 1, 128>}, {pipeline_mode = #tpu.pipeline_mode<synchronous>, transform_indices = @transform_3, window_bounds = array<i64: 1152, 128>}, {pipeline_mode = #tpu.pipeline_mode<synchronous>, transform_indices = @transform_4, window_bounds = array<i64: 1, 128>}, {transform_indices = @transform_5, window_bounds = array<i64: 1, 128, 128>}]} {
    %c8_i32 = arith.constant 8 : i32
    %0 = arith.muli %arg1, %c8_i32 : i32
    %1 = tpu.assume_multiple %0, 8 : i32
    %c0 = arith.constant 0 : index
    %c0_0 = arith.constant 0 : index
    %2 = vector.load %arg4[%c0, %c0_0] : memref<1x128xf32, #tpu.memory_space<vmem>>, vector<1x128xf32>
    %c0_1 = arith.constant 0 : index
    %c0_2 = arith.constant 0 : index
    %3 = vector.load %arg6[%c0_1, %c0_2] : memref<1x128xf32, #tpu.memory_space<vmem>>, vector<1x128xf32>
    %cst = arith.constant 0.000000e+00 : bf16
    %4 = vector.broadcast %cst : bf16 to vector<10x1x128xbf16>
    %c0_3 = arith.constant 0 : index
    %c0_4 = arith.constant 0 : index
    %c0_5 = arith.constant 0 : index
    %5 = vector.load %arg8[%c0_3, %c0_4, %c0_5] : memref<10x18x128xbf16, #tpu.memory_space<vmem>>, vector<10x1x128xbf16>
    tpu.vector_store %arg8[%c0_3, %c0_4, %c0_5], %4 {strides = array<i32>} : memref<10x18x128xbf16, #tpu.memory_space<vmem>>, vector<10x1x128xbf16>,
    %c0_6 = arith.constant 0 : index
    %c17 = arith.constant 17 : index
    %c0_7 = arith.constant 0 : index
    %6 = vector.load %arg8[%c0_6, %c17, %c0_7] : memref<10x18x128xbf16, #tpu.memory_space<vmem>>, vector<10x1x128xbf16>
    tpu.vector_store %arg8[%c0_6, %c17, %c0_7], %4 {strides = array<i32>} : memref<10x18x128xbf16, #tpu.memory_space<vmem>>, vector<10x1x128xbf16>,
    %c0_i32 = arith.constant 0 : i32
    %7 = arith.addi %1, %c0_i32 : i32
    %c0_8 = arith.constant 0 : index
    %8 = arith.index_cast %7 : i32 to index
    %c0_9 = arith.constant 0 : index
    %c0_10 = arith.constant 0 : index
    %9 = vector.load %arg2[%c0_8, %8, %c0_9, %c0_10] : memref<1x20x18x128xf32, #tpu.memory_space<vmem>>, vector<1x10x16x128xf32>
    %10 = vector.shape_cast %9 : vector<1x10x16x128xf32> to vector<10x16x128xf32>
    %11 = vector.shape_cast %10 : vector<10x16x128xf32> to vector<160x128xf32>
    %12 = arith.truncf %11 : vector<160x128xf32> to vector<160x128xbf16>
    %c0_11 = arith.constant 0 : index
    %c0_12 = arith.constant 0 : index
    %13 = vector.load %arg3[%c0_11, %c0_12] : memref<1152x128xbf16, #tpu.memory_space<vmem>>, vector<128x128xbf16>
    %cst_13 = arith.constant dense<0.000000e+00> : vector<160x128xf32>
    %14 = tpu.matmul %12, %13, %cst_13 {dimension_numbers = #tpu.dot_dimension_numbers<[1], [0], [0], [1], [0, 0, 1, 1], [], []>} : vector<160x128xbf16>, vector<128x128xbf16>, vector<160x128xf32> -> vector<160x128xf32>
    %c0_i32_14 = arith.constant 0 : i32
    %15 = arith.addi %1, %c0_i32_14 : i32
    %c0_15 = arith.constant 0 : index
    %16 = arith.index_cast %15 : i32 to index
    %c1 = arith.constant 1 : index
    %c0_16 = arith.constant 0 : index
    %17 = vector.load %arg2[%c0_15, %16, %c1, %c0_16] : memref<1x20x18x128xf32, #tpu.memory_space<vmem>>, vector<1x10x16x128xf32>
    %18 = vector.shape_cast %17 : vector<1x10x16x128xf32> to vector<10x16x128xf32>
    %19 = vector.shape_cast %18 : vector<10x16x128xf32> to vector<160x128xf32>
    %20 = arith.truncf %19 : vector<160x128xf32> to vector<160x128xbf16>
    %c128 = arith.constant 128 : index
    %c0_17 = arith.constant 0 : index
    %21 = vector.load %arg3[%c128, %c0_17] : memref<1152x128xbf16, #tpu.memory_space<vmem>>, vector<128x128xbf16>
    %cst_18 = arith.constant dense<0.000000e+00> : vector<160x128xf32>
    %22 = tpu.matmul %20, %21, %cst_18 {dimension_numbers = #tpu.dot_dimension_numbers<[1], [0], [0], [1], [0, 0, 1, 1], [], []>} : vector<160x128xbf16>, vector<128x128xbf16>, vector<160x128xf32> -> vector<160x128xf32>
    %23 = arith.addf %14, %22 : vector<160x128xf32>
    %c0_i32_19 = arith.constant 0 : i32
    %24 = arith.addi %1, %c0_i32_19 : i32
    %c0_20 = arith.constant 0 : index
    %25 = arith.index_cast %24 : i32 to index
    %c2 = arith.constant 2 : index
    %c0_21 = arith.constant 0 : index
    %26 = vector.load %arg2[%c0_20, %25, %c2, %c0_21] : memref<1x20x18x128xf32, #tpu.memory_space<vmem>>, vector<1x10x16x128xf32>
    %27 = vector.shape_cast %26 : vector<1x10x16x128xf32> to vector<10x16x128xf32>
    %28 = vector.shape_cast %27 : vector<10x16x128xf32> to vector<160x128xf32>
    %29 = arith.truncf %28 : vector<160x128xf32> to vector<160x128xbf16>
    %c256 = arith.constant 256 : index
    %c0_22 = arith.constant 0 : index
    %30 = vector.load %arg3[%c256, %c0_22] : memref<1152x128xbf16, #tpu.memory_space<vmem>>, vector<128x128xbf16>
    %cst_23 = arith.constant dense<0.000000e+00> : vector<160x128xf32>
    %31 = tpu.matmul %29, %30, %cst_23 {dimension_numbers = #tpu.dot_dimension_numbers<[1], [0], [0], [1], [0, 0, 1, 1], [], []>} : vector<160x128xbf16>, vector<128x128xbf16>, vector<160x128xf32> -> vector<160x128xf32>
    %32 = arith.addf %23, %31 : vector<160x128xf32>
    %c1_i32 = arith.constant 1 : i32
    %33 = arith.addi %1, %c1_i32 : i32
    %c0_24 = arith.constant 0 : index
    %34 = arith.index_cast %33 : i32 to index
    %c0_25 = arith.constant 0 : index
    %c0_26 = arith.constant 0 : index
    %35 = vector.load %arg2[%c0_24, %34, %c0_25, %c0_26] : memref<1x20x18x128xf32, #tpu.memory_space<vmem>>, vector<1x10x16x128xf32>
    %36 = vector.shape_cast %35 : vector<1x10x16x128xf32> to vector<10x16x128xf32>
    %37 = vector.shape_cast %36 : vector<10x16x128xf32> to vector<160x128xf32>
    %38 = arith.truncf %37 : vector<160x128xf32> to vector<160x128xbf16>
    %c384 = arith.constant 384 : index
    %c0_27 = arith.constant 0 : index
    %39 = vector.load %arg3[%c384, %c0_27] : memref<1152x128xbf16, #tpu.memory_space<vmem>>, vector<128x128xbf16>
    %cst_28 = arith.constant dense<0.000000e+00> : vector<160x128xf32>
    %40 = tpu.matmul %38, %39, %cst_28 {dimension_numbers = #tpu.dot_dimension_numbers<[1], [0], [0], [1], [0, 0, 1, 1], [], []>} : vector<160x128xbf16>, vector<128x128xbf16>, vector<160x128xf32> -> vector<160x128xf32>
    %41 = arith.addf %32, %40 : vector<160x128xf32>
    %c1_i32_29 = arith.constant 1 : i32
    %42 = arith.addi %1, %c1_i32_29 : i32
    %c0_30 = arith.constant 0 : index
    %43 = arith.index_cast %42 : i32 to index
    %c1_31 = arith.constant 1 : index
    %c0_32 = arith.constant 0 : index
    %44 = vector.load %arg2[%c0_30, %43, %c1_31, %c0_32] : memref<1x20x18x128xf32, #tpu.memory_space<vmem>>, vector<1x10x16x128xf32>
    %45 = vector.shape_cast %44 : vector<1x10x16x128xf32> to vector<10x16x128xf32>
    %46 = vector.shape_cast %45 : vector<10x16x128xf32> to vector<160x128xf32>
    %47 = arith.truncf %46 : vector<160x128xf32> to vector<160x128xbf16>
    %c512 = arith.constant 512 : index
    %c0_33 = arith.constant 0 : index
    %48 = vector.load %arg3[%c512, %c0_33] : memref<1152x128xbf16, #tpu.memory_space<vmem>>, vector<128x128xbf16>
    %cst_34 = arith.constant dense<0.000000e+00> : vector<160x128xf32>
    %49 = tpu.matmul %47, %48, %cst_34 {dimension_numbers = #tpu.dot_dimension_numbers<[1], [0], [0], [1], [0, 0, 1, 1], [], []>} : vector<160x128xbf16>, vector<128x128xbf16>, vector<160x128xf32> -> vector<160x128xf32>
    %50 = arith.addf %41, %49 : vector<160x128xf32>
    %c1_i32_35 = arith.constant 1 : i32
    %51 = arith.addi %1, %c1_i32_35 : i32
    %c0_36 = arith.constant 0 : index
    %52 = arith.index_cast %51 : i32 to index
    %c2_37 = arith.constant 2 : index
    %c0_38 = arith.constant 0 : index
    %53 = vector.load %arg2[%c0_36, %52, %c2_37, %c0_38] : memref<1x20x18x128xf32, #tpu.memory_space<vmem>>, vector<1x10x16x128xf32>
    %54 = vector.shape_cast %53 : vector<1x10x16x128xf32> to vector<10x16x128xf32>
    %55 = vector.shape_cast %54 : vector<10x16x128xf32> to vector<160x128xf32>
    %56 = arith.truncf %55 : vector<160x128xf32> to vector<160x128xbf16>
    %c640 = arith.constant 640 : index
    %c0_39 = arith.constant 0 : index
    %57 = vector.load %arg3[%c640, %c0_39] : memref<1152x128xbf16, #tpu.memory_space<vmem>>, vector<128x128xbf16>
    %cst_40 = arith.constant dense<0.000000e+00> : vector<160x128xf32>
    %58 = tpu.matmul %56, %57, %cst_40 {dimension_numbers = #tpu.dot_dimension_numbers<[1], [0], [0], [1], [0, 0, 1, 1], [], []>} : vector<160x128xbf16>, vector<128x128xbf16>, vector<160x128xf32> -> vector<160x128xf32>
    %59 = arith.addf %50, %58 : vector<160x128xf32>
    %c2_i32 = arith.constant 2 : i32
    %60 = arith.addi %1, %c2_i32 : i32
    %c0_41 = arith.constant 0 : index
    %61 = arith.index_cast %60 : i32 to index
    %c0_42 = arith.constant 0 : index
    %c0_43 = arith.constant 0 : index
    %62 = vector.load %arg2[%c0_41, %61, %c0_42, %c0_43] : memref<1x20x18x128xf32, #tpu.memory_space<vmem>>, vector<1x10x16x128xf32>
    %63 = vector.shape_cast %62 : vector<1x10x16x128xf32> to vector<10x16x128xf32>
    %64 = vector.shape_cast %63 : vector<10x16x128xf32> to vector<160x128xf32>
    %65 = arith.truncf %64 : vector<160x128xf32> to vector<160x128xbf16>
    %c768 = arith.constant 768 : index
    %c0_44 = arith.constant 0 : index
    %66 = vector.load %arg3[%c768, %c0_44] : memref<1152x128xbf16, #tpu.memory_space<vmem>>, vector<128x128xbf16>
    %cst_45 = arith.constant dense<0.000000e+00> : vector<160x128xf32>
    %67 = tpu.matmul %65, %66, %cst_45 {dimension_numbers = #tpu.dot_dimension_numbers<[1], [0], [0], [1], [0, 0, 1, 1], [], []>} : vector<160x128xbf16>, vector<128x128xbf16>, vector<160x128xf32> -> vector<160x128xf32>
    %68 = arith.addf %59, %67 : vector<160x128xf32>
    %c2_i32_46 = arith.constant 2 : i32
    %69 = arith.addi %1, %c2_i32_46 : i32
    %c0_47 = arith.constant 0 : index
    %70 = arith.index_cast %69 : i32 to index
    %c1_48 = arith.constant 1 : index
    %c0_49 = arith.constant 0 : index
    %71 = vector.load %arg2[%c0_47, %70, %c1_48, %c0_49] : memref<1x20x18x128xf32, #tpu.memory_space<vmem>>, vector<1x10x16x128xf32>
    %72 = vector.shape_cast %71 : vector<1x10x16x128xf32> to vector<10x16x128xf32>
    %73 = vector.shape_cast %72 : vector<10x16x128xf32> to vector<160x128xf32>
    %74 = arith.truncf %73 : vector<160x128xf32> to vector<160x128xbf16>
    %c896 = arith.constant 896 : index
    %c0_50 = arith.constant 0 : index
    %75 = vector.load %arg3[%c896, %c0_50] : memref<1152x128xbf16, #tpu.memory_space<vmem>>, vector<128x128xbf16>
    %cst_51 = arith.constant dense<0.000000e+00> : vector<160x128xf32>
    %76 = tpu.matmul %74, %75, %cst_51 {dimension_numbers = #tpu.dot_dimension_numbers<[1], [0], [0], [1], [0, 0, 1, 1], [], []>} : vector<160x128xbf16>, vector<128x128xbf16>, vector<160x128xf32> -> vector<160x128xf32>
    %77 = arith.addf %68, %76 : vector<160x128xf32>
    %c2_i32_52 = arith.constant 2 : i32
    %78 = arith.addi %1, %c2_i32_52 : i32
    %c0_53 = arith.constant 0 : index
    %79 = arith.index_cast %78 : i32 to index
    %c2_54 = arith.constant 2 : index
    %c0_55 = arith.constant 0 : index
    %80 = vector.load %arg2[%c0_53, %79, %c2_54, %c0_55] : memref<1x20x18x128xf32, #tpu.memory_space<vmem>>, vector<1x10x16x128xf32>
    %81 = vector.shape_cast %80 : vector<1x10x16x128xf32> to vector<10x16x128xf32>
    %82 = vector.shape_cast %81 : vector<10x16x128xf32> to vector<160x128xf32>
    %83 = arith.truncf %82 : vector<160x128xf32> to vector<160x128xbf16>
    %c1024 = arith.constant 1024 : index
    %c0_56 = arith.constant 0 : index
    %84 = vector.load %arg3[%c1024, %c0_56] : memref<1152x128xbf16, #tpu.memory_space<vmem>>, vector<128x128xbf16>
    %cst_57 = arith.constant dense<0.000000e+00> : vector<160x128xf32>
    %85 = tpu.matmul %83, %84, %cst_57 {dimension_numbers = #tpu.dot_dimension_numbers<[1], [0], [0], [1], [0, 0, 1, 1], [], []>} : vector<160x128xbf16>, vector<128x128xbf16>, vector<160x128xf32> -> vector<160x128xf32>
    %86 = arith.addf %77, %85 : vector<160x128xf32>
    %87 = vector.broadcast %2 : vector<1x128xf32> to vector<160x128xf32>
    %88 = arith.addf %86, %87 : vector<160x128xf32>
    %cst_58 = arith.constant 0.000000e+00 : f32
    %89 = vector.broadcast %cst_58 : f32 to vector<160x128xf32>
    %90 = arith.maximumf %88, %89 : vector<160x128xf32>
    %91 = vector.shape_cast %90 : vector<160x128xf32> to vector<10x16x128xf32>
    %92 = arith.truncf %91 : vector<10x16x128xf32> to vector<10x16x128xbf16>
    %c0_59 = arith.constant 0 : index
    %c1_60 = arith.constant 1 : index
    %c0_61 = arith.constant 0 : index
    %93 = vector.load %arg8[%c0_59, %c1_60, %c0_61] : memref<10x18x128xbf16, #tpu.memory_space<vmem>>, vector<10x16x128xbf16>
    tpu.vector_store %arg8[%c0_59, %c1_60, %c0_61], %92 {strides = array<i32>} : memref<10x18x128xbf16, #tpu.memory_space<vmem>>, vector<10x16x128xbf16>,
    %cst_62 = arith.constant 0.000000e+00 : bf16
    %94 = vector.broadcast %cst_62 : bf16 to vector<1x16x128xbf16>
    %c0_i32_63 = arith.constant 0 : i32
    %95 = arith.cmpi eq, %arg1, %c0_i32_63 : i32
    %96 = arith.extui %95 : i1 to i32
    %c0_i32_64 = arith.constant 0 : i32
    %97 = arith.cmpi ne, %96, %c0_i32_64 : i32
    scf.if %97 {
      %c0_129 = arith.constant 0 : index
      %c1_130 = arith.constant 1 : index
      %c0_131 = arith.constant 0 : index
      %158 = vector.load %arg8[%c0_129, %c1_130, %c0_131] : memref<10x18x128xbf16, #tpu.memory_space<vmem>>, vector<1x16x128xbf16>
      tpu.vector_store %arg8[%c0_129, %c1_130, %c0_131], %94 {strides = array<i32>} : memref<10x18x128xbf16, #tpu.memory_space<vmem>>, vector<1x16x128xbf16>,
    } else {
    }
    %c1_i32_65 = arith.constant 1 : i32
    %98 = arith.cmpi eq, %arg1, %c1_i32_65 : i32
    %99 = arith.extui %98 : i1 to i32
    %c0_i32_66 = arith.constant 0 : i32
    %100 = arith.cmpi ne, %99, %c0_i32_66 : i32
    scf.if %100 {
      %c9 = arith.constant 9 : index
      %c1_129 = arith.constant 1 : index
      %c0_130 = arith.constant 0 : index
      %158 = vector.load %arg8[%c9, %c1_129, %c0_130] : memref<10x18x128xbf16, #tpu.memory_space<vmem>>, vector<1x16x128xbf16>
      tpu.vector_store %arg8[%c9, %c1_129, %c0_130], %94 {strides = array<i32>} : memref<10x18x128xbf16, #tpu.memory_space<vmem>>, vector<1x16x128xbf16>,
    } else {
    }
    %c0_67 = arith.constant 0 : index
    %c0_68 = arith.constant 0 : index
    %c0_69 = arith.constant 0 : index
    %101 = vector.load %arg8[%c0_67, %c0_68, %c0_69] : memref<10x18x128xbf16, #tpu.memory_space<vmem>>, vector<8x16x128xbf16>
    %102 = vector.shape_cast %101 : vector<8x16x128xbf16> to vector<128x128xbf16>
    %c0_70 = arith.constant 0 : index
    %c0_71 = arith.constant 0 : index
    %103 = vector.load %arg5[%c0_70, %c0_71] : memref<1152x128xbf16, #tpu.memory_space<vmem>>, vector<128x128xbf16>
    %cst_72 = arith.constant dense<0.000000e+00> : vector<128x128xf32>
    %104 = tpu.matmul %102, %103, %cst_72 {dimension_numbers = #tpu.dot_dimension_numbers<[1], [0], [0], [1], [0, 0, 1, 1], [], []>} : vector<128x128xbf16>, vector<128x128xbf16>, vector<128x128xf32> -> vector<128x128xf32>
    %c0_73 = arith.constant 0 : index
    %c1_74 = arith.constant 1 : index
    %c0_75 = arith.constant 0 : index
    %105 = vector.load %arg8[%c0_73, %c1_74, %c0_75] : memref<10x18x128xbf16, #tpu.memory_space<vmem>>, vector<8x16x128xbf16>
    %106 = vector.shape_cast %105 : vector<8x16x128xbf16> to vector<128x128xbf16>
    %c128_76 = arith.constant 128 : index
    %c0_77 = arith.constant 0 : index
    %107 = vector.load %arg5[%c128_76, %c0_77] : memref<1152x128xbf16, #tpu.memory_space<vmem>>, vector<128x128xbf16>
    %cst_78 = arith.constant dense<0.000000e+00> : vector<128x128xf32>
    %108 = tpu.matmul %106, %107, %cst_78 {dimension_numbers = #tpu.dot_dimension_numbers<[1], [0], [0], [1], [0, 0, 1, 1], [], []>} : vector<128x128xbf16>, vector<128x128xbf16>, vector<128x128xf32> -> vector<128x128xf32>
    %109 = arith.addf %104, %108 : vector<128x128xf32>
    %c0_79 = arith.constant 0 : index
    %c2_80 = arith.constant 2 : index
    %c0_81 = arith.constant 0 : index
    %110 = vector.load %arg8[%c0_79, %c2_80, %c0_81] : memref<10x18x128xbf16, #tpu.memory_space<vmem>>, vector<8x16x128xbf16>
    %111 = vector.shape_cast %110 : vector<8x16x128xbf16> to vector<128x128xbf16>
    %c256_82 = arith.constant 256 : index
    %c0_83 = arith.constant 0 : index
    %112 = vector.load %arg5[%c256_82, %c0_83] : memref<1152x128xbf16, #tpu.memory_space<vmem>>, vector<128x128xbf16>
    %cst_84 = arith.constant dense<0.000000e+00> : vector<128x128xf32>
    %113 = tpu.matmul %111, %112, %cst_84 {dimension_numbers = #tpu.dot_dimension_numbers<[1], [0], [0], [1], [0, 0, 1, 1], [], []>} : vector<128x128xbf16>, vector<128x128xbf16>, vector<128x128xf32> -> vector<128x128xf32>
    %114 = arith.addf %109, %113 : vector<128x128xf32>
    %c1_85 = arith.constant 1 : index
    %c0_86 = arith.constant 0 : index
    %c0_87 = arith.constant 0 : index
    %115 = vector.load %arg8[%c1_85, %c0_86, %c0_87] : memref<10x18x128xbf16, #tpu.memory_space<vmem>>, vector<8x16x128xbf16>
    %116 = vector.shape_cast %115 : vector<8x16x128xbf16> to vector<128x128xbf16>
    %c384_88 = arith.constant 384 : index
    %c0_89 = arith.constant 0 : index
    %117 = vector.load %arg5[%c384_88, %c0_89] : memref<1152x128xbf16, #tpu.memory_space<vmem>>, vector<128x128xbf16>
    %cst_90 = arith.constant dense<0.000000e+00> : vector<128x128xf32>
    %118 = tpu.matmul %116, %117, %cst_90 {dimension_numbers = #tpu.dot_dimension_numbers<[1], [0], [0], [1], [0, 0, 1, 1], [], []>} : vector<128x128xbf16>, vector<128x128xbf16>, vector<128x128xf32> -> vector<128x128xf32>
    %119 = arith.addf %114, %118 : vector<128x128xf32>
    %c1_91 = arith.constant 1 : index
    %c1_92 = arith.constant 1 : index
    %c0_93 = arith.constant 0 : index
    %120 = vector.load %arg8[%c1_91, %c1_92, %c0_93] : memref<10x18x128xbf16, #tpu.memory_space<vmem>>, vector<8x16x128xbf16>
    %121 = vector.shape_cast %120 : vector<8x16x128xbf16> to vector<128x128xbf16>
    %c512_94 = arith.constant 512 : index
    %c0_95 = arith.constant 0 : index
    %122 = vector.load %arg5[%c512_94, %c0_95] : memref<1152x128xbf16, #tpu.memory_space<vmem>>, vector<128x128xbf16>
    %cst_96 = arith.constant dense<0.000000e+00> : vector<128x128xf32>
    %123 = tpu.matmul %121, %122, %cst_96 {dimension_numbers = #tpu.dot_dimension_numbers<[1], [0], [0], [1], [0, 0, 1, 1], [], []>} : vector<128x128xbf16>, vector<128x128xbf16>, vector<128x128xf32> -> vector<128x128xf32>
    %124 = arith.addf %119, %123 : vector<128x128xf32>
    %c1_97 = arith.constant 1 : index
    %c2_98 = arith.constant 2 : index
    %c0_99 = arith.constant 0 : index
    %125 = vector.load %arg8[%c1_97, %c2_98, %c0_99] : memref<10x18x128xbf16, #tpu.memory_space<vmem>>, vector<8x16x128xbf16>
    %126 = vector.shape_cast %125 : vector<8x16x128xbf16> to vector<128x128xbf16>
    %c640_100 = arith.constant 640 : index
    %c0_101 = arith.constant 0 : index
    %127 = vector.load %arg5[%c640_100, %c0_101] : memref<1152x128xbf16, #tpu.memory_space<vmem>>, vector<128x128xbf16>
    %cst_102 = arith.constant dense<0.000000e+00> : vector<128x128xf32>
    %128 = tpu.matmul %126, %127, %cst_102 {dimension_numbers = #tpu.dot_dimension_numbers<[1], [0], [0], [1], [0, 0, 1, 1], [], []>} : vector<128x128xbf16>, vector<128x128xbf16>, vector<128x128xf32> -> vector<128x128xf32>
    %129 = arith.addf %124, %128 : vector<128x128xf32>
    %c2_103 = arith.constant 2 : index
    %c0_104 = arith.constant 0 : index
    %c0_105 = arith.constant 0 : index
    %130 = vector.load %arg8[%c2_103, %c0_104, %c0_105] : memref<10x18x128xbf16, #tpu.memory_space<vmem>>, vector<8x16x128xbf16>
    %131 = vector.shape_cast %130 : vector<8x16x128xbf16> to vector<128x128xbf16>
    %c768_106 = arith.constant 768 : index
    %c0_107 = arith.constant 0 : index
    %132 = vector.load %arg5[%c768_106, %c0_107] : memref<1152x128xbf16, #tpu.memory_space<vmem>>, vector<128x128xbf16>
    %cst_108 = arith.constant dense<0.000000e+00> : vector<128x128xf32>
    %133 = tpu.matmul %131, %132, %cst_108 {dimension_numbers = #tpu.dot_dimension_numbers<[1], [0], [0], [1], [0, 0, 1, 1], [], []>} : vector<128x128xbf16>, vector<128x128xbf16>, vector<128x128xf32> -> vector<128x128xf32>
    %134 = arith.addf %129, %133 : vector<128x128xf32>
    %c2_109 = arith.constant 2 : index
    %c1_110 = arith.constant 1 : index
    %c0_111 = arith.constant 0 : index
    %135 = vector.load %arg8[%c2_109, %c1_110, %c0_111] : memref<10x18x128xbf16, #tpu.memory_space<vmem>>, vector<8x16x128xbf16>
    %136 = vector.shape_cast %135 : vector<8x16x128xbf16> to vector<128x128xbf16>
    %c896_112 = arith.constant 896 : index
    %c0_113 = arith.constant 0 : index
    %137 = vector.load %arg5[%c896_112, %c0_113] : memref<1152x128xbf16, #tpu.memory_space<vmem>>, vector<128x128xbf16>
    %cst_114 = arith.constant dense<0.000000e+00> : vector<128x128xf32>
    %138 = tpu.matmul %136, %137, %cst_114 {dimension_numbers = #tpu.dot_dimension_numbers<[1], [0], [0], [1], [0, 0, 1, 1], [], []>} : vector<128x128xbf16>, vector<128x128xbf16>, vector<128x128xf32> -> vector<128x128xf32>
    %139 = arith.addf %134, %138 : vector<128x128xf32>
    %c2_115 = arith.constant 2 : index
    %c2_116 = arith.constant 2 : index
    %c0_117 = arith.constant 0 : index
    %140 = vector.load %arg8[%c2_115, %c2_116, %c0_117] : memref<10x18x128xbf16, #tpu.memory_space<vmem>>, vector<8x16x128xbf16>
    %141 = vector.shape_cast %140 : vector<8x16x128xbf16> to vector<128x128xbf16>
    %c1024_118 = arith.constant 1024 : index
    %c0_119 = arith.constant 0 : index
    %142 = vector.load %arg5[%c1024_118, %c0_119] : memref<1152x128xbf16, #tpu.memory_space<vmem>>, vector<128x128xbf16>
    %cst_120 = arith.constant dense<0.000000e+00> : vector<128x128xf32>
    %143 = tpu.matmul %141, %142, %cst_120 {dimension_numbers = #tpu.dot_dimension_numbers<[1], [0], [0], [1], [0, 0, 1, 1], [], []>} : vector<128x128xbf16>, vector<128x128xbf16>, vector<128x128xf32> -> vector<128x128xf32>
    %144 = arith.addf %139, %143 : vector<128x128xf32>
    %c2_i32_121 = arith.constant 2 : i32
    %145 = arith.addi %1, %c2_i32_121 : i32
    %c0_122 = arith.constant 0 : index
    %146 = arith.index_cast %145 : i32 to index
    %c1_123 = arith.constant 1 : index
    %c0_124 = arith.constant 0 : index
    %147 = vector.load %arg2[%c0_122, %146, %c1_123, %c0_124] : memref<1x20x18x128xf32, #tpu.memory_space<vmem>>, vector<1x8x16x128xf32>
    %148 = vector.shape_cast %147 : vector<1x8x16x128xf32> to vector<8x16x128xf32>
    %149 = vector.shape_cast %148 : vector<8x16x128xf32> to vector<128x128xf32>
    %150 = vector.broadcast %3 : vector<1x128xf32> to vector<128x128xf32>
    %151 = arith.addf %144, %150 : vector<128x128xf32>
    %152 = arith.addf %151, %149 : vector<128x128xf32>
    %cst_125 = arith.constant 0.000000e+00 : f32
    %153 = vector.broadcast %cst_125 : f32 to vector<128x128xf32>
    %154 = arith.maximumf %152, %153 : vector<128x128xf32>
    %c0_126 = arith.constant 0 : index
    %c0_127 = arith.constant 0 : index
    %c0_128 = arith.constant 0 : index
    %155 = vector.load %arg7[%c0_126, %c0_127, %c0_128] : memref<1x128x128xf32, #tpu.memory_space<vmem>>, vector<1x128x128xf32>
    %156 = vector.shape_cast %155 : vector<1x128x128xf32> to vector<128x128xf32>
    %157 = vector.shape_cast %154 : vector<128x128xf32> to vector<1x128x128xf32>
    tpu.vector_store %arg7[%c0_126, %c0_127, %c0_128], %157 {strides = array<i32>} : memref<1x128x128xf32, #tpu.memory_space<vmem>>, vector<1x128x128xf32>,
    return
  }
  func.func @transform_0(%arg0: i32, %arg1: i32) -> (i32, i32, i32, i32) {
    %c0_i32 = arith.constant 0 : i32
    %c0_i32_0 = arith.constant 0 : i32
    %c0_i32_1 = arith.constant 0 : i32
    %c0_i32_2 = arith.constant 0 : i32
    return %arg0, %c0_i32, %c0_i32_0, %c0_i32_1 : i32, i32, i32, i32
  }
  func.func @transform_1(%arg0: i32, %arg1: i32) -> (i32, i32) {
    %c0_i32 = arith.constant 0 : i32
    %c0_i32_0 = arith.constant 0 : i32
    %c0_i32_1 = arith.constant 0 : i32
    return %c0_i32, %c0_i32_0 : i32, i32
  }
  func.func @transform_2(%arg0: i32, %arg1: i32) -> (i32, i32) {
    %c0_i32 = arith.constant 0 : i32
    %c0_i32_0 = arith.constant 0 : i32
    %c0_i32_1 = arith.constant 0 : i32
    return %c0_i32, %c0_i32_0 : i32, i32
  }
  func.func @transform_3(%arg0: i32, %arg1: i32) -> (i32, i32) {
    %c0_i32 = arith.constant 0 : i32
    %c0_i32_0 = arith.constant 0 : i32
    %c0_i32_1 = arith.constant 0 : i32
    return %c0_i32, %c0_i32_0 : i32, i32
  }
  func.func @transform_4(%arg0: i32, %arg1: i32) -> (i32, i32) {
    %c0_i32 = arith.constant 0 : i32
    %c0_i32_0 = arith.constant 0 : i32
    %c0_i32_1 = arith.constant 0 : i32
    return %c0_i32, %c0_i32_0 : i32, i32
  }
  func.func @transform_5(%arg0: i32, %arg1: i32) -> (i32, i32, i32) {
    %c0_i32 = arith.constant 0 : i32
    %c0_i32_0 = arith.constant 0 : i32
    return %arg0, %arg1, %c0_i32 : i32, i32, i32
  }
}

</mosaic_0001>

<llo_original>
// kernel: tpu_custom_call.1
$region0: #{tpu_custom_call.1}
  #allocation0 [shape = 'u32[]', space=smem, size = 0x4, offset = 0x4, fixed_abs, tag = 'smem constant byte address 0x4 - core index']
  #allocation1 [shape = 'u32[144,128]{1,0:T(1,128)}', space=vmem, size = 0x12000, scoped, tag = 'internal scratch']
  #allocation2 [shape = 'bf16[10,18,128]{2,1,0:T(8,128)(2,1)}', space=vmem, size = 0xf000, scoped, tag = 'scratch operand']
  %s0 = inlined_call_operand.vmem [shape: f32[2,20,18,128], index: 0, kind: input, shape index: {}]
  %s1 = inlined_call_operand.vmem [shape: bf16[1152,128], index: 1, kind: input, shape index: {}]
  %s2 = inlined_call_operand.vmem [shape: f32[1,128], index: 2, kind: input, shape index: {}]
  %s3 = inlined_call_operand.vmem [shape: bf16[1152,128], index: 3, kind: input, shape index: {}]
  %s4 = inlined_call_operand.vmem [shape: f32[1,128], index: 4, kind: input, shape index: {}]
  %s5 = inlined_call_operand.hbm [shape: f32[2,256,128], index: 5, kind: output, shape index: {}]
  %s6 = sld [smem:[#allocation0]]
  $region61: #{tpu_custom_call.1} parent=0
    _
  %s8 = ssub.s32 1, %s6
  %s9 = scalar_select 0, %s8, %s6
  $region1: #{tpu_custom_call.1} parent=0
    #allocation3 [shape = 'u8[131072]{0}', space=vmem, size = 0x20000, scoped, tag = 'output window, operand 0']
    #allocation4 [shape = 's32[2]{0}', space=sflag, size = 0x8, scoped, tag = 'scoped memory for tpu_custom_call.1']
    %10 = vsyncpa [#allocation4], 0
    %s11 = scalar_lea.sflag [#allocation4], 1
    %12 = vsyncpa %s11, 0
    loop: start=0, step=1, limit=6
    $region2: #{tpu_custom_call.1} parent=1 // loop_pre_header
      _
    $region3: #{tpu_custom_call.1} parent=1 // loop_header
      %s14 = sphi 0, %s18
      %p15 = scmp.ge.s32.totalorder %s14, 6
      %s21 = sphi 0, %s33
      %s22 = sphi 0, %s29
      %s23 = sphi 0, %s21
      %s24 = sphi 0, %s22
      %s25 = sphi 0, %s23
      %s26 = sphi 0, %s24
      %s36 = sphi 0, %s38
      %s39 = sphi 0, %s36
      %s40 = sphi 0, %s39
      %s56 = sphi 0, %s40
      %s60 = sphi 0, %s60
      %s62 = sphi 0, %s60
      %s63 = sphi 0, %s62
      %s77 = sphi 0, %s63
      %s81 = sphi 0, %s81
      %s83 = sphi 0, %s81
      %s84 = sphi 0, %s83
      %s98 = sphi 0, %s84
      %s102 = sphi 0, %s102
      %s104 = sphi 0, %s102
      %s105 = sphi 0, %s104
      %s119 = sphi 0, %s105
      %s123 = sphi 0, %s123
      %s125 = sphi 0, %s123
      %s126 = sphi 0, %s125
      %s140 = sphi 0, %s126
      %s148 = sphi 0, %s150
      %s151 = sphi 0, %s148
      %s152 = sphi 0, %s151
      %s168 = sphi 0, %s152
    $region4: #{tpu_custom_call.1} parent=1 // loop_header_branch
      %17 = sbr.rel (%p15) target = $region8
    $region5: #{tpu_custom_call.1} parent=1 // loop_body
      %s19 = ssub.s32 %s14, 1
      %s20 = ssub.s32 %s14, 2
      %s27 = sadd.s32 1, %s22
      %p28 = scmp.ge.s32.totalorder %s27, 2
      %s29 = scalar_select %p28, 0, %s27
      %s30 = sadd.s32 1, %s21
      %s31 = scalar_select %p28, %s30, %s21
      %p32 = scmp.ge.s32.totalorder %s31, 2
      %s33 = scalar_select %p32, 0, %s31
      %s34 = ssub.s32 %s21, %s33
      %p35 = scmp.eq.s32.totalorder %s34, 0
      %s37 = sadd.s32 %s36, 1
      %s38 = scalar_select %p35, %s36, %s37
      %p41 = pneg %p35
      %p42 = scmp.eq.s32.totalorder %s14, 3
      %p43 = por %p41, %p42
      %p44 = scmp.ne.s32.totalorder %s36, %s39
      %p45 = scmp.eq.s32.totalorder %s14, 0
      %p46 = por %p44, %p45
      %p47 = scmp.ne.s32.totalorder %s36, %s39
      %p48 = scmp.eq.s32.totalorder %s19, 3
      %p49 = por %p47, %p48
      %p50 = scmp.ne.s32.totalorder %s39, %s40
      %p51 = scmp.eq.s32.totalorder %s19, 0
      %p52 = por %p50, %p51
      %p53 = scmp.ne.s32.totalorder %s39, %s40
      %p54 = scmp.eq.s32.totalorder %s20, 3
      %p55 = por %p53, %p54
      %p57 = scmp.ne.s32.totalorder %s40, %s56
      %p58 = scmp.eq.s32.totalorder %s20, 0
      %p59 = por %p57, %p58
      %s61 = sadd.s32 %s60, 1
      %p64 = scmp.eq.s32.totalorder %s14, 3
      %p65 = scmp.ne.s32.totalorder %s60, %s62
      %p66 = scmp.eq.s32.totalorder %s14, 0
      %p67 = por %p65, %p66
      %p68 = scmp.ne.s32.totalorder %s60, %s62
      %p69 = scmp.eq.s32.totalorder %s19, 3
      %p70 = por %p68, %p69
      %p71 = scmp.ne.s32.totalorder %s62, %s63
      %p72 = scmp.eq.s32.totalorder %s19, 0
      %p73 = por %p71, %p72
      %p74 = scmp.ne.s32.totalorder %s62, %s63
      %p75 = scmp.eq.s32.totalorder %s20, 3
      %p76 = por %p74, %p75
      %p78 = scmp.ne.s32.totalorder %s63, %s77
      %p79 = scmp.eq.s32.totalorder %s20, 0
      %p80 = por %p78, %p79
      %s82 = sadd.s32 %s81, 1
      %p85 = scmp.eq.s32.totalorder %s14, 3
      %p86 = scmp.ne.s32.totalorder %s81, %s83
      %p87 = scmp.eq.s32.totalorder %s14, 0
      %p88 = por %p86, %p87
      %p89 = scmp.ne.s32.totalorder %s81, %s83
      %p90 = scmp.eq.s32.totalorder %s19, 3
      %p91 = por %p89, %p90
      %p92 = scmp.ne.s32.totalorder %s83, %s84
      %p93 = scmp.eq.s32.totalorder %s19, 0
      %p94 = por %p92, %p93
      %p95 = scmp.ne.s32.totalorder %s83, %s84
      %p96 = scmp.eq.s32.totalorder %s20, 3
      %p97 = por %p95, %p96
      %p99 = scmp.ne.s32.totalorder %s84, %s98
      %p100 = scmp.eq.s32.totalorder %s20, 0
      %p101 = por %p99, %p100
      %s103 = sadd.s32 %s102, 1
      %p106 = scmp.eq.s32.totalorder %s14, 3
      %p107 = scmp.ne.s32.totalorder %s102, %s104
      %p108 = scmp.eq.s32.totalorder %s14, 0
      %p109 = por %p107, %p108
      %p110 = scmp.ne.s32.totalorder %s102, %s104
      %p111 = scmp.eq.s32.totalorder %s19, 3
      %p112 = por %p110, %p111
      %p113 = scmp.ne.s32.totalorder %s104, %s105
      %p114 = scmp.eq.s32.totalorder %s19, 0
      %p115 = por %p113, %p114
      %p116 = scmp.ne.s32.totalorder %s104, %s105
      %p117 = scmp.eq.s32.totalorder %s20, 3
      %p118 = por %p116, %p117
      %p120 = scmp.ne.s32.totalorder %s105, %s119
      %p121 = scmp.eq.s32.totalorder %s20, 0
      %p122 = por %p120, %p121
      %s124 = sadd.s32 %s123, 1
      %p127 = scmp.eq.s32.totalorder %s14, 3
      %p128 = scmp.ne.s32.totalorder %s123, %s125
      %p129 = scmp.eq.s32.totalorder %s14, 0
      %p130 = por %p128, %p129
      %p131 = scmp.ne.s32.totalorder %s123, %s125
      %p132 = scmp.eq.s32.totalorder %s19, 3
      %p133 = por %p131, %p132
      %p134 = scmp.ne.s32.totalorder %s125, %s126
      %p135 = scmp.eq.s32.totalorder %s19, 0
      %p136 = por %p134, %p135
      %p137 = scmp.ne.s32.totalorder %s125, %s126
      %p138 = scmp.eq.s32.totalorder %s20, 3
      %p139 = por %p137, %p138
      %p141 = scmp.ne.s32.totalorder %s126, %s140
      %p142 = scmp.eq.s32.totalorder %s20, 0
      %p143 = por %p141, %p142
      %s144 = ssub.s32 %s21, %s33
      %s145 = ssub.s32 %s22, %s29
      %s146 = sor.u32 %s144, %s145
      %p147 = scmp.eq.s32.totalorder %s146, 0
      %s149 = sadd.s32 %s148, 1
      %s150 = scalar_select %p147, %s148, %s149
      %p153 = pneg %p147
      %p154 = scmp.eq.s32.totalorder %s14, 3
      %p155 = por %p153, %p154
      %p156 = scmp.ne.s32.totalorder %s148, %s151
      %p157 = scmp.eq.s32.totalorder %s14, 0
      %p158 = por %p156, %p157
      %p159 = scmp.ne.s32.totalorder %s148, %s151
      %p160 = scmp.eq.s32.totalorder %s19, 3
      %p161 = por %p159, %p160
      %p162 = scmp.ne.s32.totalorder %s151, %s152
      %p163 = scmp.eq.s32.totalorder %s19, 0
      %p164 = por %p162, %p163
      %p165 = scmp.ne.s32.totalorder %s151, %s152
      %p166 = scmp.eq.s32.totalorder %s20, 3
      %p167 = por %p165, %p166
      %p169 = scmp.ne.s32.totalorder %s152, %s168
      %p170 = scmp.eq.s32.totalorder %s20, 0
      %p171 = por %p169, %p170
      %p172 = scmp.le.s32.totalorder 1, %s14
      %p173 = scmp.lt.s32.totalorder %s14, 5
      %p174 = pnand %p172, %p173
      %p175 = pneg %p174
      // Predicated region
      $region9: #{tpu_custom_call.1} parent=5 // pred_check
        _
      $region10: #{tpu_custom_call.1} parent=5 // pred_check_branch
        %177 = sbr.rel (%p174) target = $region12
      $region11: #{tpu_custom_call.1} parent=5 // pred_region
        %s178 = ssub.s32 %s14, 1
        // Predicated region
        $region13: #{tpu_custom_call.1} parent=11 // pred_check
          %p179 = pneg %p73
        $region14: #{tpu_custom_call.1} parent=11 // pred_check_branch
          %181 = sbr.rel (%p179) target = $region16
        $region15: #{tpu_custom_call.1} parent=11 // pred_region
          _
        $region16: #{tpu_custom_call.1} parent=11 // pred_fallthru
          _
        // Predicated region
        $region17: #{tpu_custom_call.1} parent=11 // pred_check
          %p182 = pneg %p94
        $region18: #{tpu_custom_call.1} parent=11 // pred_check_branch
          %184 = sbr.rel (%p182) target = $region20
        $region19: #{tpu_custom_call.1} parent=11 // pred_region
          _
        $region20: #{tpu_custom_call.1} parent=11 // pred_fallthru
          _
        // Predicated region
        $region21: #{tpu_custom_call.1} parent=11 // pred_check
          %p185 = pneg %p115
        $region22: #{tpu_custom_call.1} parent=11 // pred_check_branch
          %187 = sbr.rel (%p185) target = $region24
        $region23: #{tpu_custom_call.1} parent=11 // pred_region
          _
        $region24: #{tpu_custom_call.1} parent=11 // pred_fallthru
          _
        // Predicated region
        $region25: #{tpu_custom_call.1} parent=11 // pred_check
          %p188 = pneg %p136
        $region26: #{tpu_custom_call.1} parent=11 // pred_check_branch
          %190 = sbr.rel (%p188) target = $region28
        $region27: #{tpu_custom_call.1} parent=11 // pred_region
          _
        $region28: #{tpu_custom_call.1} parent=11 // pred_fallthru
          _
      $region12: #{tpu_custom_call.1} parent=5 // pred_fallthru
        _
      %p191 = scmp.lt.s32.totalorder %s14, 4
      // Predicated region
      $region29: #{tpu_custom_call.1} parent=5 // pred_check
        %p192 = pneg %p191
      $region30: #{tpu_custom_call.1} parent=5 // pred_check_branch
        %194 = sbr.rel (%p192) target = $region32
      $region31: #{tpu_custom_call.1} parent=5 // pred_region
        // Predicated region
        $region33: #{tpu_custom_call.1} parent=31 // pred_check
          %p195 = pneg %p46
        $region34: #{tpu_custom_call.1} parent=31 // pred_check_branch
          %197 = sbr.rel (%p195) target = $region36
        $region35: #{tpu_custom_call.1} parent=31 // pred_region
          %p198 = scmp.lt.s32.totalorder %s21, 1
          %s199 = scalar_select %p198, %s21, 1
          %s200 = smul.addr %s199, 60
          %s201 = smul.addr %s200, 8
          %s202 = scalar_lea.vmem %s0, %s201
        $region36: #{tpu_custom_call.1} parent=31 // pred_fallthru
          _
      $region32: #{tpu_custom_call.1} parent=5 // pred_fallthru
        _
      %p203 = scmp.le.s32.totalorder 1, %s14
      %p204 = scmp.lt.s32.totalorder %s14, 5
      %p205 = pnand %p203, %p204
      %p206 = pneg %p205
      // Predicated region
      $region37: #{tpu_custom_call.1} parent=5 // pred_check
        _
      $region38: #{tpu_custom_call.1} parent=5 // pred_check_branch
        %208 = sbr.rel (%p205) target = $region40
      $region39: #{tpu_custom_call.1} parent=5 // pred_region
        %s209 = ssub.s32 %s14, 1
        %p210 = scmp.lt.s32.totalorder %s23, 1
        %s211 = scalar_select %p210, %s23, 1
        %s212 = smul.addr %s211, 60
        %s213 = smul.addr %s212, 8
        %s214 = scalar_lea.vmem %s0, %s213
        %p215 = pneg %p52
        %p216 = pneg %p49
        %p217 = pneg %p73
        %p218 = pneg %p70
        %p219 = pneg %p94
        %p220 = pneg %p91
        %p221 = pneg %p115
        %p222 = pneg %p112
        %p223 = pneg %p136
        %p224 = pneg %p133
        %p225 = pneg %p164
        %p226 = pneg %p161
        %s227 = sand.u32 %s151, 1
        %s228 = scalar_lea.sflag [#allocation4], %s227
        %s229 = sand.u32 %s151, 1
        %s230 = smul.addr %s229, 128
        %s231 = scalar_lea.vmem [#allocation3], %s230
        %p232 = scmp.lt.s32.totalorder %s23, 1
        %s233 = scalar_select %p232, %s23, 1
        %s234 = smul.addr %s233, 60
        %s235 = smul.addr %s234, 8
        %s236 = scalar_lea.vmem %s0, %s235
        %s237 = smul.u32 16, %s24
        %s239 = smul.u32 %s24, 8
        %v240 = vld [vmem:[%s2] sm:$0x1]
        %v241 = vld [vmem:[%s4] sm:$0x1]
        %vm242 = vcmask 1040384
        %vm243 = vsmask.f32 256
        %vm244 = vmand %vm242, %vm243
        %v245 = vld [vmem:[#allocation2] sm:$0x1]
        %v246 = vsel %vm244, 0, %v245
        %247 = vst [vmem:[#allocation2] sm:$0x1] %v246
        %v248 = vld [vmem:[#allocation2 + $0xc] sm:$0x1]
        %v249 = vsel %vm244, 0, %v248
        %250 = vst [vmem:[#allocation2 + $0xc] sm:$0x1] %v249
        %v251 = vld [vmem:[#allocation2 + $0x18] sm:$0x1]
        %v252 = vsel %vm244, 0, %v251
        %253 = vst [vmem:[#allocation2 + $0x18] sm:$0x1] %v252
        %v254 = vld [vmem:[#allocation2 + $0x24] sm:$0x1]
        %v255 = vsel %vm244, 0, %v254
        %256 = vst [vmem:[#allocation2 + $0x24] sm:$0x1] %v255
        %v257 = vld [vmem:[#allocation2 + $0x30] sm:$0x1]
        %v258 = vsel %vm244, 0, %v257
        %259 = vst [vmem:[#allocation2 + $0x30] sm:$0x1] %v258
        %v260 = vld [vmem:[#allocation2 + $0x3c] sm:$0x1]
        %v261 = vsel %vm244, 0, %v260
        %262 = vst [vmem:[#allocation2 + $0x3c] sm:$0x1] %v261
        %v263 = vld [vmem:[#allocation2 + $0x48] sm:$0x1]
        %v264 = vsel %vm244, 0, %v263
        %265 = vst [vmem:[#allocation2 + $0x48] sm:$0x1] %v264
        %v266 = vld [vmem:[#allocation2 + $0x54] sm:$0x1]
        %v267 = vsel %vm244, 0, %v266
        %268 = vst [vmem:[#allocation2 + $0x54] sm:$0x1] %v267
        %v269 = vld [vmem:[#allocation2 + $0x60] sm:$0x1]
        %v270 = vsel %vm244, 0, %v269
        %271 = vst [vmem:[#allocation2 + $0x60] sm:$0x1] %v270
        %v272 = vld [vmem:[#allocation2 + $0x6c] sm:$0x1]
        %v273 = vsel %vm244, 0, %v272
        %274 = vst [vmem:[#allocation2 + $0x6c] sm:$0x1] %v273
        %vm275 = vsmask.f32 7938
        %vm276 = vmand %vm242, %vm275
        %v277 = vld [vmem:[#allocation2 + $0x8] sm:$0x1]
        %v278 = vsel %vm276, 0, %v277
        %279 = vst [vmem:[#allocation2 + $0x8] sm:$0x1] %v278
        %v280 = vld [vmem:[#allocation2 + $0x14] sm:$0x1]
        %v281 = vsel %vm276, 0, %v280
        %282 = vst [vmem:[#allocation2 + $0x14] sm:$0x1] %v281
        %v283 = vld [vmem:[#allocation2 + $0x20] sm:$0x1]
        %v284 = vsel %vm276, 0, %v283
        %285 = vst [vmem:[#allocation2 + $0x20] sm:$0x1] %v284
        %v286 = vld [vmem:[#allocation2 + $0x2c] sm:$0x1]
        %v287 = vsel %vm276, 0, %v286
        %288 = vst [vmem:[#allocation2 + $0x2c] sm:$0x1] %v287
        %v289 = vld [vmem:[#allocation2 + $0x38] sm:$0x1]
        %v290 = vsel %vm276, 0, %v289
        %291 = vst [vmem:[#allocation2 + $0x38] sm:$0x1] %v290
        %v292 = vld [vmem:[#allocation2 + $0x44] sm:$0x1]
        %v293 = vsel %vm276, 0, %v292
        %294 = vst [vmem:[#allocation2 + $0x44] sm:$0x1] %v293
        %v295 = vld [vmem:[#allocation2 + $0x50] sm:$0x1]
        %v296 = vsel %vm276, 0, %v295
        %297 = vst [vmem:[#allocation2 + $0x50] sm:$0x1] %v296
        %v298 = vld [vmem:[#allocation2 + $0x5c] sm:$0x1]
        %v299 = vsel %vm276, 0, %v298
        %300 = vst [vmem:[#allocation2 + $0x5c] sm:$0x1] %v299
        %v301 = vld [vmem:[#allocation2 + $0x68] sm:$0x1]
        %v302 = vsel %vm276, 0, %v301
        %303 = vst [vmem:[#allocation2 + $0x68] sm:$0x1] %v302
        %v304 = vld [vmem:[#allocation2 + $0x74] sm:$0x1]
        %v305 = vsel %vm276, 0, %v304
        %306 = vst [vmem:[#allocation2 + $0x74] sm:$0x1] %v305
        %s307 = smul.u32 %s239, 24
        %s308 = scalar_lea.vmem %s236, %s307
        %v309 = vld [vmem:[%s308] sm:$0xff]
        %v310 = vld [vmem:[%s308 + $0x8] sm:$0xff]
        %v311 = vld [vmem:[%s308 + $0x18] sm:$0xff]
        %v312 = vld [vmem:[%s308 + $0x20] sm:$0xff]
        %v313 = vld [vmem:[%s308 + $0x30] sm:$0xff]
        %v314 = vld [vmem:[%s308 + $0x38] sm:$0xff]
        %v315 = vld [vmem:[%s308 + $0x48] sm:$0xff]
        %v316 = vld [vmem:[%s308 + $0x50] sm:$0xff]
        %v317 = vld [vmem:[%s308 + $0x60] sm:$0xff]
        %v318 = vld [vmem:[%s308 + $0x68] sm:$0xff]
        %v319 = vld [vmem:[%s308 + $0x78] sm:$0xff]
        %v320 = vld [vmem:[%s308 + $0x80] sm:$0xff]
        %v321 = vld [vmem:[%s308 + $0x90] sm:$0xff]
        %v322 = vld [vmem:[%s308 + $0x98] sm:$0xff]
        %v323 = vld [vmem:[%s308 + $0xa8] sm:$0xff]
        %v324 = vld [vmem:[%s308 + $0xb0] sm:$0xff]
        %v325 = vld [vmem:[%s308 + $0xc0] sm:$0xff]
        %v326 = vld [vmem:[%s308 + $0xc8] sm:$0xff]
        %v327 = vld [vmem:[%s308 + $0xd8] sm:$0xff]
        %v328 = vld [vmem:[%s308 + $0xe0] sm:$0xff]
        %v329 = vpack.c.bf16 %v310, %v309
        %v330 = vpack.c.bf16 %v312, %v311
        %v331 = vpack.c.bf16 %v314, %v313
        %v332 = vpack.c.bf16 %v316, %v315
        %v333 = vpack.c.bf16 %v318, %v317
        %v334 = vpack.c.bf16 %v320, %v319
        %v335 = vpack.c.bf16 %v322, %v321
        %v336 = vpack.c.bf16 %v324, %v323
        %v337 = vpack.c.bf16 %v326, %v325
        %v338 = vpack.c.bf16 %v328, %v327
        %v339 = vld [vmem:[%s1] sm:$0xf]
        %v340 = vld [vmem:[%s1 + $0x4] sm:$0xf]
        %v341 = vld [vmem:[%s1 + $0x8] sm:$0xf]
        %v342 = vld [vmem:[%s1 + $0xc] sm:$0xf]
        %v343 = vld [vmem:[%s1 + $0x10] sm:$0xf]
        %v344 = vld [vmem:[%s1 + $0x14] sm:$0xf]
        %v345 = vld [vmem:[%s1 + $0x18] sm:$0xf]
        %v346 = vld [vmem:[%s1 + $0x1c] sm:$0xf]
        %v347 = vld [vmem:[%s1 + $0x20] sm:$0xf]
        %v348 = vld [vmem:[%s1 + $0x24] sm:$0xf]
        %v349 = vld [vmem:[%s1 + $0x28] sm:$0xf]
        %v350 = vld [vmem:[%s1 + $0x2c] sm:$0xf]
        %v351 = vld [vmem:[%s1 + $0x30] sm:$0xf]
        %v352 = vld [vmem:[%s1 + $0x34] sm:$0xf]
        %v353 = vld [vmem:[%s1 + $0x38] sm:$0xf]
        %v354 = vld [vmem:[%s1 + $0x3c] sm:$0xf]
        %v355 = vld [vmem:[%s308 + $0x1] sm:$0xff]
        %v356 = vld [vmem:[%s308 + $0x9] sm:$0xff]
        %v357 = vld [vmem:[%s308 + $0x19] sm:$0xff]
        %v358 = vld [vmem:[%s308 + $0x21] sm:$0xff]
        %v359 = vld [vmem:[%s308 + $0x31] sm:$0xff]
        %v360 = vld [vmem:[%s308 + $0x39] sm:$0xff]
        %v361 = vld [vmem:[%s308 + $0x49] sm:$0xff]
        %v362 = vld [vmem:[%s308 + $0x51] sm:$0xff]
        %v363 = vld [vmem:[%s308 + $0x61] sm:$0xff]
        %v364 = vld [vmem:[%s308 + $0x69] sm:$0xff]
        %v365 = vld [vmem:[%s308 + $0x79] sm:$0xff]
        %v366 = vld [vmem:[%s308 + $0x81] sm:$0xff]
        %v367 = vld [vmem:[%s308 + $0x91] sm:$0xff]
        %v368 = vld [vmem:[%s308 + $0x99] sm:$0xff]
        %v369 = vld [vmem:[%s308 + $0xa9] sm:$0xff]
        %v370 = vld [vmem:[%s308 + $0xb1] sm:$0xff]
        %v371 = vld [vmem:[%s308 + $0xc1] sm:$0xff]
        %v372 = vld [vmem:[%s308 + $0xc9] sm:$0xff]
        %v373 = vld [vmem:[%s308 + $0xd9] sm:$0xff]
        %v374 = vld [vmem:[%s308 + $0xe1] sm:$0xff]
        %v375 = vpack.c.bf16 %v356, %v355
        %v376 = vpack.c.bf16 %v358, %v357
        %v377 = vpack.c.bf16 %v360, %v359
        %v378 = vpack.c.bf16 %v362, %v361
        %v379 = vpack.c.bf16 %v364, %v363
        %v380 = vpack.c.bf16 %v366, %v365
        %v381 = vpack.c.bf16 %v368, %v367
        %v382 = vpack.c.bf16 %v370, %v369
        %v383 = vpack.c.bf16 %v372, %v371
        %v384 = vpack.c.bf16 %v374, %v373
        %v385 = vld [vmem:[%s1 + $0x40] sm:$0xf]
        %v386 = vld [vmem:[%s1 + $0x44] sm:$0xf]
        %v387 = vld [vmem:[%s1 + $0x48] sm:$0xf]
        %v388 = vld [vmem:[%s1 + $0x4c] sm:$0xf]
        %v389 = vld [vmem:[%s1 + $0x50] sm:$0xf]
        %v390 = vld [vmem:[%s1 + $0x54] sm:$0xf]
        %v391 = vld [vmem:[%s1 + $0x58] sm:$0xf]
        %v392 = vld [vmem:[%s1 + $0x5c] sm:$0xf]
        %v393 = vld [vmem:[%s1 + $0x60] sm:$0xf]
        %v394 = vld [vmem:[%s1 + $0x64] sm:$0xf]
        %v395 = vld [vmem:[%s1 + $0x68] sm:$0xf]
        %v396 = vld [vmem:[%s1 + $0x6c] sm:$0xf]
        %v397 = vld [vmem:[%s1 + $0x70] sm:$0xf]
        %v398 = vld [vmem:[%s1 + $0x74] sm:$0xf]
        %v399 = vld [vmem:[%s1 + $0x78] sm:$0xf]
        %v400 = vld [vmem:[%s1 + $0x7c] sm:$0xf]
        %v417 = vunpack.c.l.b16 %v385
        %v418 = vunpack.c.l.b16 %v386
        %v419 = vunpack.c.l.b16 %v387
        %v420 = vunpack.c.l.b16 %v388
        %v421 = vunpack.c.l.b16 %v389
        %v422 = vunpack.c.l.b16 %v390
        %v423 = vunpack.c.l.b16 %v391
        %v424 = vunpack.c.l.b16 %v392
        %v425 = vunpack.c.l.b16 %v393
        %v426 = vunpack.c.l.b16 %v394
        %v427 = vunpack.c.l.b16 %v395
        %v428 = vunpack.c.l.b16 %v396
        %v429 = vunpack.c.l.b16 %v397
        %v430 = vunpack.c.l.b16 %v398
        %v431 = vunpack.c.l.b16 %v399
        %v432 = vunpack.c.l.b16 %v400
        %v433 = vpack.c.b16 %v418, %v417
        %v434 = vpack.c.b16 %v420, %v419
        %v435 = vpack.c.b16 %v422, %v421
        %v436 = vpack.c.b16 %v424, %v423
        %v437 = vpack.c.b16 %v426, %v425
        %v438 = vpack.c.b16 %v428, %v427
        %v439 = vpack.c.b16 %v430, %v429
        %v440 = vpack.c.b16 %v432, %v431
        %449 = vmatprep.subr.bf16.mxu0 0
        %450 = vmatpush1.bf16.msra.mxu0 %v440
        %451 = vmatprep.subr.bf16.mxu0 0
        %452 = vmatpush1.bf16.msra.mxu0 %v439
        %453 = vmatprep.subr.bf16.mxu0 0
        %454 = vmatpush1.bf16.msra.mxu0 %v438
        %455 = vmatprep.subr.bf16.mxu0 0
        %456 = vmatpush1.bf16.msra.mxu0 %v437
        %457 = vmatprep.subr.bf16.mxu0 0
        %458 = vmatpush1.bf16.msra.mxu0 %v436
        %459 = vmatprep.subr.bf16.mxu0 0
        %460 = vmatpush1.bf16.msra.mxu0 %v435
        %461 = vmatprep.subr.bf16.mxu0 0
        %462 = vmatpush1.bf16.msra.mxu0 %v434
        %463 = vmatprep.subr.bf16.mxu0 0
        %464 = vmatpush1.bf16.msra.mxu0 %v433
        %465 = vmatprep.subr.bf16.mxu0 0
        %466 = vmatpush2.bf16.msra.mxu0 0
        %467 = vmatprep.subr.bf16.mxu0 0
        %468 = vmatpush2.bf16.msra.mxu0 0
        %469 = vmatprep.subr.bf16.mxu0 0
        %470 = vmatpush2.bf16.msra.mxu0 0
        %471 = vmatprep.subr.bf16.mxu0 0
        %472 = vmatpush2.bf16.msra.mxu0 0
        %473 = vmatprep.subr.bf16.mxu0 0
        %474 = vmatpush2.bf16.msra.mxu0 0
        %475 = vmatprep.subr.bf16.mxu0 0
        %476 = vmatpush2.bf16.msra.mxu0 0
        %477 = vmatprep.subr.bf16.mxu0 0
        %478 = vmatpush2.bf16.msra.mxu0 0
        %479 = vmatprep.subr.bf16.mxu0 0
        %480 = vmatpush2.bf16.msra.mxu0 0
        %481 = vmatprep.mubr.bf16.mxu0 0
        %482 = vmatmul.mubr.bf16.gmra.mxu0 %v375
        %v483 = vpop.f32.mrf.mxu0
        %v484 = vadd.f32 0.0, %v483
        %v485 = vpop.f32.mrf.mxu0
        %v486 = vpop.f32.mrf.mxu0
        %v487 = vadd.f32 0.0, %v486
        %v488 = vpop.f32.mrf.mxu0
        %489 = vmatprep.mubr.bf16.mxu0 0
        %490 = vmatmul.mubr.bf16.gmra.mxu0 %v376
        %v491 = vpop.f32.mrf.mxu0
        %v492 = vadd.f32 0.0, %v491
        %v493 = vpop.f32.mrf.mxu0
        %v494 = vpop.f32.mrf.mxu0
        %v495 = vadd.f32 0.0, %v494
        %v496 = vpop.f32.mrf.mxu0
        %497 = vmatprep.mubr.bf16.mxu0 0
        %498 = vmatmul.mubr.bf16.gmra.mxu0 %v377
        %v499 = vpop.f32.mrf.mxu0
        %v500 = vadd.f32 0.0, %v499
        %v501 = vpop.f32.mrf.mxu0
        %v502 = vpop.f32.mrf.mxu0
        %v503 = vadd.f32 0.0, %v502
        %v504 = vpop.f32.mrf.mxu0
        %505 = vmatprep.mubr.bf16.mxu0 0
        %506 = vmatmul.mubr.bf16.gmra.mxu0 %v378
        %v507 = vpop.f32.mrf.mxu0
        %v508 = vadd.f32 0.0, %v507
        %v509 = vpop.f32.mrf.mxu0
        %v510 = vpop.f32.mrf.mxu0
        %v511 = vadd.f32 0.0, %v510
        %v512 = vpop.f32.mrf.mxu0
        %513 = vmatprep.mubr.bf16.mxu0 0
        %514 = vmatmul.mubr.bf16.gmra.mxu0 %v379
        %v515 = vpop.f32.mrf.mxu0
        %v516 = vadd.f32 0.0, %v515
        %v517 = vpop.f32.mrf.mxu0
        %v518 = vpop.f32.mrf.mxu0
        %v519 = vadd.f32 0.0, %v518
        %v520 = vpop.f32.mrf.mxu0
        %521 = vmatprep.mubr.bf16.mxu0 0
        %522 = vmatmul.mubr.bf16.gmra.mxu0 %v380
        %v523 = vpop.f32.mrf.mxu0
        %v524 = vadd.f32 0.0, %v523
        %v525 = vpop.f32.mrf.mxu0
        %v526 = vpop.f32.mrf.mxu0
        %v527 = vadd.f32 0.0, %v526
        %v528 = vpop.f32.mrf.mxu0
        %529 = vmatprep.mubr.bf16.mxu0 0
        %530 = vmatmul.mubr.bf16.gmra.mxu0 %v381
        %v531 = vpop.f32.mrf.mxu0
        %v532 = vadd.f32 0.0, %v531
        %v533 = vpop.f32.mrf.mxu0
        %v534 = vpop.f32.mrf.mxu0
        %v535 = vadd.f32 0.0, %v534
        %v536 = vpop.f32.mrf.mxu0
        %537 = vmatprep.mubr.bf16.mxu0 0
        %538 = vmatmul.mubr.bf16.gmra.mxu0 %v382
        %v539 = vpop.f32.mrf.mxu0
        %v540 = vadd.f32 0.0, %v539
        %v541 = vpop.f32.mrf.mxu0
        %v542 = vpop.f32.mrf.mxu0
        %v543 = vadd.f32 0.0, %v542
        %v544 = vpop.f32.mrf.mxu0
        %545 = vmatprep.mubr.bf16.mxu0 0
        %546 = vmatmul.mubr.bf16.gmra.mxu0 %v383
        %v547 = vpop.f32.mrf.mxu0
        %v548 = vadd.f32 0.0, %v547
        %v549 = vpop.f32.mrf.mxu0
        %v550 = vpop.f32.mrf.mxu0
        %v551 = vadd.f32 0.0, %v550
        %v552 = vpop.f32.mrf.mxu0
        %553 = vmatprep.mubr.bf16.mxu0 0
        %554 = vmatmul.mubr.bf16.gmra.mxu0 %v384
        %v555 = vpop.f32.mrf.mxu0
        %v556 = vadd.f32 0.0, %v555
        %v557 = vpop.f32.mrf.mxu0
        %v558 = vpop.f32.mrf.mxu0
        %v559 = vadd.f32 0.0, %v558
        %v560 = vpop.f32.mrf.mxu0
        %561 = vdwg.mxu0
        %v578 = vunpack.c.l.b16 %v339
        %v579 = vunpack.c.l.b16 %v340
        %v580 = vunpack.c.l.b16 %v341
        %v581 = vunpack.c.l.b16 %v342
        %v582 = vunpack.c.l.b16 %v343
        %v583 = vunpack.c.l.b16 %v344
        %v584 = vunpack.c.l.b16 %v345
        %v585 = vunpack.c.l.b16 %v346
        %v586 = vunpack.c.l.b16 %v347
        %v587 = vunpack.c.l.b16 %v348
        %v588 = vunpack.c.l.b16 %v349
        %v589 = vunpack.c.l.b16 %v350
        %v590 = vunpack.c.l.b16 %v351
        %v591 = vunpack.c.l.b16 %v352
        %v592 = vunpack.c.l.b16 %v353
        %v593 = vunpack.c.l.b16 %v354
        %v594 = vpack.c.b16 %v579, %v578
        %v595 = vpack.c.b16 %v581, %v580
        %v596 = vpack.c.b16 %v583, %v582
        %v597 = vpack.c.b16 %v585, %v584
        %v598 = vpack.c.b16 %v587, %v586
        %v599 = vpack.c.b16 %v589, %v588
        %v600 = vpack.c.b16 %v591, %v590
        %v601 = vpack.c.b16 %v593, %v592
        %610 = vmatprep.subr.bf16.mxu0 0
        %611 = vmatpush1.bf16.msra.mxu0 %v601
        %612 = vmatprep.subr.bf16.mxu0 0
        %613 = vmatpush1.bf16.msra.mxu0 %v600
        %614 = vmatprep.subr.bf16.mxu0 0
        %615 = vmatpush1.bf16.msra.mxu0 %v599
        %616 = vmatprep.subr.bf16.mxu0 0
        %617 = vmatpush1.bf16.msra.mxu0 %v598
        %618 = vmatprep.subr.bf16.mxu0 0
        %619 = vmatpush1.bf16.msra.mxu0 %v597
        %620 = vmatprep.subr.bf16.mxu0 0
        %621 = vmatpush1.bf16.msra.mxu0 %v596
        %622 = vmatprep.subr.bf16.mxu0 0
        %623 = vmatpush1.bf16.msra.mxu0 %v595
        %624 = vmatprep.subr.bf16.mxu0 0
        %625 = vmatpush1.bf16.msra.mxu0 %v594
        %626 = vmatprep.subr.bf16.mxu0 0
        %627 = vmatpush2.bf16.msra.mxu0 0
        %628 = vmatprep.subr.bf16.mxu0 0
        %629 = vmatpush2.bf16.msra.mxu0 0
        %630 = vmatprep.subr.bf16.mxu0 0
        %631 = vmatpush2.bf16.msra.mxu0 0
        %632 = vmatprep.subr.bf16.mxu0 0
        %633 = vmatpush2.bf16.msra.mxu0 0
        %634 = vmatprep.subr.bf16.mxu0 0
        %635 = vmatpush2.bf16.msra.mxu0 0
        %636 = vmatprep.subr.bf16.mxu0 0
        %637 = vmatpush2.bf16.msra.mxu0 0
        %638 = vmatprep.subr.bf16.mxu0 0
        %639 = vmatpush2.bf16.msra.mxu0 0
        %640 = vmatprep.subr.bf16.mxu0 0
        %641 = vmatpush2.bf16.msra.mxu0 0
        %642 = vmatprep.mubr.bf16.mxu0 0
        %643 = vmatmul.mubr.bf16.gmra.mxu0 %v329
        %v644 = vpop.f32.mrf.mxu0
        %v645 = vadd.f32 %v484, %v644
        %v646 = vpop.f32.mrf.mxu0
        %v647 = vpop.f32.mrf.mxu0
        %v648 = vadd.f32 %v487, %v647
        %v649 = vpop.f32.mrf.mxu0
        %650 = vmatprep.mubr.bf16.mxu0 0
        %651 = vmatmul.mubr.bf16.gmra.mxu0 %v330
        %v652 = vpop.f32.mrf.mxu0
        %v653 = vadd.f32 %v492, %v652
        %v654 = vpop.f32.mrf.mxu0
        %v655 = vpop.f32.mrf.mxu0
        %v656 = vadd.f32 %v495, %v655
        %v657 = vpop.f32.mrf.mxu0
        %658 = vmatprep.mubr.bf16.mxu0 0
        %659 = vmatmul.mubr.bf16.gmra.mxu0 %v331
        %v660 = vpop.f32.mrf.mxu0
        %v661 = vadd.f32 %v500, %v660
        %v662 = vpop.f32.mrf.mxu0
        %v663 = vpop.f32.mrf.mxu0
        %v664 = vadd.f32 %v503, %v663
        %v665 = vpop.f32.mrf.mxu0
        %666 = vmatprep.mubr.bf16.mxu0 0
        %667 = vmatmul.mubr.bf16.gmra.mxu0 %v332
        %v668 = vpop.f32.mrf.mxu0
        %v669 = vadd.f32 %v508, %v668
        %v670 = vpop.f32.mrf.mxu0
        %v671 = vpop.f32.mrf.mxu0
        %v672 = vadd.f32 %v511, %v671
        %v673 = vpop.f32.mrf.mxu0
        %674 = vmatprep.mubr.bf16.mxu0 0
        %675 = vmatmul.mubr.bf16.gmra.mxu0 %v333
        %v676 = vpop.f32.mrf.mxu0
        %v677 = vadd.f32 %v516, %v676
        %v678 = vpop.f32.mrf.mxu0
        %v679 = vpop.f32.mrf.mxu0
        %v680 = vadd.f32 %v519, %v679
        %v681 = vpop.f32.mrf.mxu0
        %682 = vmatprep.mubr.bf16.mxu0 0
        %683 = vmatmul.mubr.bf16.gmra.mxu0 %v334
        %v684 = vpop.f32.mrf.mxu0
        %v685 = vadd.f32 %v524, %v684
        %v686 = vpop.f32.mrf.mxu0
        %v687 = vpop.f32.mrf.mxu0
        %v688 = vadd.f32 %v527, %v687
        %v689 = vpop.f32.mrf.mxu0
        %690 = vmatprep.mubr.bf16.mxu0 0
        %691 = vmatmul.mubr.bf16.gmra.mxu0 %v335
        %v692 = vpop.f32.mrf.mxu0
        %v693 = vadd.f32 %v532, %v692
        %v694 = vpop.f32.mrf.mxu0
        %v695 = vpop.f32.mrf.mxu0
        %v696 = vadd.f32 %v535, %v695
        %v697 = vpop.f32.mrf.mxu0
        %698 = vmatprep.mubr.bf16.mxu0 0
        %699 = vmatmul.mubr.bf16.gmra.mxu0 %v336
        %v700 = vpop.f32.mrf.mxu0
        %v701 = vadd.f32 %v540, %v700
        %v702 = vpop.f32.mrf.mxu0
        %v703 = vpop.f32.mrf.mxu0
        %v704 = vadd.f32 %v543, %v703
        %v705 = vpop.f32.mrf.mxu0
        %706 = vmatprep.mubr.bf16.mxu0 0
        %707 = vmatmul.mubr.bf16.gmra.mxu0 %v337
        %v708 = vpop.f32.mrf.mxu0
        %v709 = vadd.f32 %v548, %v708
        %v710 = vpop.f32.mrf.mxu0
        %v711 = vpop.f32.mrf.mxu0
        %v712 = vadd.f32 %v551, %v711
        %v713 = vpop.f32.mrf.mxu0
        %714 = vmatprep.mubr.bf16.mxu0 0
        %715 = vmatmul.mubr.bf16.gmra.mxu0 %v338
        %v716 = vpop.f32.mrf.mxu0
        %v717 = vadd.f32 %v556, %v716
        %v718 = vpop.f32.mrf.mxu0
        %v719 = vpop.f32.mrf.mxu0
        %v720 = vadd.f32 %v559, %v719
        %v721 = vpop.f32.mrf.mxu0
        %722 = vdwg.mxu0
        %v723 = vld [vmem:[%s308 + $0x2] sm:$0xff]
        %v724 = vld [vmem:[%s308 + $0xa] sm:$0xff]
        %v725 = vld [vmem:[%s308 + $0x1a] sm:$0xff]
        %v726 = vld [vmem:[%s308 + $0x22] sm:$0xff]
        %v727 = vld [vmem:[%s308 + $0x32] sm:$0xff]
        %v728 = vld [vmem:[%s308 + $0x3a] sm:$0xff]
        %v729 = vld [vmem:[%s308 + $0x4a] sm:$0xff]
        %v730 = vld [vmem:[%s308 + $0x52] sm:$0xff]
        %v731 = vld [vmem:[%s308 + $0x62] sm:$0xff]
        %v732 = vld [vmem:[%s308 + $0x6a] sm:$0xff]
        %v733 = vld [vmem:[%s308 + $0x7a] sm:$0xff]
        %v734 = vld [vmem:[%s308 + $0x82] sm:$0xff]
        %v735 = vld [vmem:[%s308 + $0x92] sm:$0xff]
        %v736 = vld [vmem:[%s308 + $0x9a] sm:$0xff]
        %v737 = vld [vmem:[%s308 + $0xaa] sm:$0xff]
        %v738 = vld [vmem:[%s308 + $0xb2] sm:$0xff]
        %v739 = vld [vmem:[%s308 + $0xc2] sm:$0xff]
        %v740 = vld [vmem:[%s308 + $0xca] sm:$0xff]
        %v741 = vld [vmem:[%s308 + $0xda] sm:$0xff]
        %v742 = vld [vmem:[%s308 + $0xe2] sm:$0xff]
        %v743 = vpack.c.bf16 %v724, %v723
        %v744 = vpack.c.bf16 %v726, %v725
        %v745 = vpack.c.bf16 %v728, %v727
        %v746 = vpack.c.bf16 %v730, %v729
        %v747 = vpack.c.bf16 %v732, %v731
        %v748 = vpack.c.bf16 %v734, %v733
        %v749 = vpack.c.bf16 %v736, %v735
        %v750 = vpack.c.bf16 %v738, %v737
        %v751 = vpack.c.bf16 %v740, %v739
        %v752 = vpack.c.bf16 %v742, %v741
        %v753 = vld [vmem:[%s1 + $0x80] sm:$0xf]
        %v754 = vld [vmem:[%s1 + $0x84] sm:$0xf]
        %v755 = vld [vmem:[%s1 + $0x88] sm:$0xf]
        %v756 = vld [vmem:[%s1 + $0x8c] sm:$0xf]
        %v757 = vld [vmem:[%s1 + $0x90] sm:$0xf]
        %v758 = vld [vmem:[%s1 + $0x94] sm:$0xf]
        %v759 = vld [vmem:[%s1 + $0x98] sm:$0xf]
        %v760 = vld [vmem:[%s1 + $0x9c] sm:$0xf]
        %v761 = vld [vmem:[%s1 + $0xa0] sm:$0xf]
        %v762 = vld [vmem:[%s1 + $0xa4] sm:$0xf]
        %v763 = vld [vmem:[%s1 + $0xa8] sm:$0xf]
        %v764 = vld [vmem:[%s1 + $0xac] sm:$0xf]
        %v765 = vld [vmem:[%s1 + $0xb0] sm:$0xf]
        %v766 = vld [vmem:[%s1 + $0xb4] sm:$0xf]
        %v767 = vld [vmem:[%s1 + $0xb8] sm:$0xf]
        %v768 = vld [vmem:[%s1 + $0xbc] sm:$0xf]
        %v785 = vunpack.c.l.b16 %v753
        %v786 = vunpack.c.l.b16 %v754
        %v787 = vunpack.c.l.b16 %v755
        %v788 = vunpack.c.l.b16 %v756
        %v789 = vunpack.c.l.b16 %v757
        %v790 = vunpack.c.l.b16 %v758
        %v791 = vunpack.c.l.b16 %v759
        %v792 = vunpack.c.l.b16 %v760
        %v793 = vunpack.c.l.b16 %v761
        %v794 = vunpack.c.l.b16 %v762
        %v795 = vunpack.c.l.b16 %v763
        %v796 = vunpack.c.l.b16 %v764
        %v797 = vunpack.c.l.b16 %v765
        %v798 = vunpack.c.l.b16 %v766
        %v799 = vunpack.c.l.b16 %v767
        %v800 = vunpack.c.l.b16 %v768
        %v801 = vpack.c.b16 %v786, %v785
        %v802 = vpack.c.b16 %v788, %v787
        %v803 = vpack.c.b16 %v790, %v789
        %v804 = vpack.c.b16 %v792, %v791
        %v805 = vpack.c.b16 %v794, %v793
        %v806 = vpack.c.b16 %v796, %v795
        %v807 = vpack.c.b16 %v798, %v797
        %v808 = vpack.c.b16 %v800, %v799
        %817 = vmatprep.subr.bf16.mxu0 0
        %818 = vmatpush1.bf16.msra.mxu0 %v808
        %819 = vmatprep.subr.bf16.mxu0 0
        %820 = vmatpush1.bf16.msra.mxu0 %v807
        %821 = vmatprep.subr.bf16.mxu0 0
        %822 = vmatpush1.bf16.msra.mxu0 %v806
        %823 = vmatprep.subr.bf16.mxu0 0
        %824 = vmatpush1.bf16.msra.mxu0 %v805
        %825 = vmatprep.subr.bf16.mxu0 0
        %826 = vmatpush1.bf16.msra.mxu0 %v804
        %827 = vmatprep.subr.bf16.mxu0 0
        %828 = vmatpush1.bf16.msra.mxu0 %v803
        %829 = vmatprep.subr.bf16.mxu0 0
        %830 = vmatpush1.bf16.msra.mxu0 %v802
        %831 = vmatprep.subr.bf16.mxu0 0
        %832 = vmatpush1.bf16.msra.mxu0 %v801
        %833 = vmatprep.subr.bf16.mxu0 0
        %834 = vmatpush2.bf16.msra.mxu0 0
        %835 = vmatprep.subr.bf16.mxu0 0
        %836 = vmatpush2.bf16.msra.mxu0 0
        %837 = vmatprep.subr.bf16.mxu0 0
        %838 = vmatpush2.bf16.msra.mxu0 0
        %839 = vmatprep.subr.bf16.mxu0 0
        %840 = vmatpush2.bf16.msra.mxu0 0
        %841 = vmatprep.subr.bf16.mxu0 0
        %842 = vmatpush2.bf16.msra.mxu0 0
        %843 = vmatprep.subr.bf16.mxu0 0
        %844 = vmatpush2.bf16.msra.mxu0 0
        %845 = vmatprep.subr.bf16.mxu0 0
        %846 = vmatpush2.bf16.msra.mxu0 0
        %847 = vmatprep.subr.bf16.mxu0 0
        %848 = vmatpush2.bf16.msra.mxu0 0
        %849 = vmatprep.mubr.bf16.mxu0 0
        %850 = vmatmul.mubr.bf16.gmra.mxu0 %v743
        %v851 = vpop.f32.mrf.mxu0
        %v852 = vadd.f32 0.0, %v851
        %v853 = vpop.f32.mrf.mxu0
        %v854 = vpop.f32.mrf.mxu0
        %v855 = vadd.f32 0.0, %v854
        %v856 = vpop.f32.mrf.mxu0
        %857 = vmatprep.mubr.bf16.mxu0 0
        %858 = vmatmul.mubr.bf16.gmra.mxu0 %v744
        %v859 = vpop.f32.mrf.mxu0
        %v860 = vadd.f32 0.0, %v859
        %v861 = vpop.f32.mrf.mxu0
        %v862 = vpop.f32.mrf.mxu0
        %v863 = vadd.f32 0.0, %v862
        %v864 = vpop.f32.mrf.mxu0
        %865 = vmatprep.mubr.bf16.mxu0 0
        %866 = vmatmul.mubr.bf16.gmra.mxu0 %v745
        %v867 = vpop.f32.mrf.mxu0
        %v868 = vadd.f32 0.0, %v867
        %v869 = vpop.f32.mrf.mxu0
        %v870 = vpop.f32.mrf.mxu0
        %v871 = vadd.f32 0.0, %v870
        %v872 = vpop.f32.mrf.mxu0
        %873 = vmatprep.mubr.bf16.mxu0 0
        %874 = vmatmul.mubr.bf16.gmra.mxu0 %v746
        %v875 = vpop.f32.mrf.mxu0
        %v876 = vadd.f32 0.0, %v875
        %v877 = vpop.f32.mrf.mxu0
        %v878 = vpop.f32.mrf.mxu0
        %v879 = vadd.f32 0.0, %v878
        %v880 = vpop.f32.mrf.mxu0
        %881 = vmatprep.mubr.bf16.mxu0 0
        %882 = vmatmul.mubr.bf16.gmra.mxu0 %v747
        %v883 = vpop.f32.mrf.mxu0
        %v884 = vadd.f32 0.0, %v883
        %v885 = vpop.f32.mrf.mxu0
        %v886 = vpop.f32.mrf.mxu0
        %v887 = vadd.f32 0.0, %v886
        %v888 = vpop.f32.mrf.mxu0
        %889 = vmatprep.mubr.bf16.mxu0 0
        %890 = vmatmul.mubr.bf16.gmra.mxu0 %v748
        %v891 = vpop.f32.mrf.mxu0
        %v892 = vadd.f32 0.0, %v891
        %v893 = vpop.f32.mrf.mxu0
        %v894 = vpop.f32.mrf.mxu0
        %v895 = vadd.f32 0.0, %v894
        %v896 = vpop.f32.mrf.mxu0
        %897 = vmatprep.mubr.bf16.mxu0 0
        %898 = vmatmul.mubr.bf16.gmra.mxu0 %v749
        %v899 = vpop.f32.mrf.mxu0
        %v900 = vadd.f32 0.0, %v899
        %v901 = vpop.f32.mrf.mxu0
        %v902 = vpop.f32.mrf.mxu0
        %v903 = vadd.f32 0.0, %v902
        %v904 = vpop.f32.mrf.mxu0
        %905 = vmatprep.mubr.bf16.mxu0 0
        %906 = vmatmul.mubr.bf16.gmra.mxu0 %v750
        %v907 = vpop.f32.mrf.mxu0
        %v908 = vadd.f32 0.0, %v907
        %v909 = vpop.f32.mrf.mxu0
        %v910 = vpop.f32.mrf.mxu0
        %v911 = vadd.f32 0.0, %v910
        %v912 = vpop.f32.mrf.mxu0
        %913 = vmatprep.mubr.bf16.mxu0 0
        %914 = vmatmul.mubr.bf16.gmra.mxu0 %v751
        %v915 = vpop.f32.mrf.mxu0
        %v916 = vadd.f32 0.0, %v915
        %v917 = vpop.f32.mrf.mxu0
        %v918 = vpop.f32.mrf.mxu0
        %v919 = vadd.f32 0.0, %v918
        %v920 = vpop.f32.mrf.mxu0
        %921 = vmatprep.mubr.bf16.mxu0 0
        %922 = vmatmul.mubr.bf16.gmra.mxu0 %v752
        %v923 = vpop.f32.mrf.mxu0
        %v924 = vadd.f32 0.0, %v923
        %v925 = vpop.f32.mrf.mxu0
        %v926 = vpop.f32.mrf.mxu0
        %v927 = vadd.f32 0.0, %v926
        %v928 = vpop.f32.mrf.mxu0
        %929 = vdwg.mxu0
        %v930 = vadd.f32 %v645, %v852
        %v931 = vadd.f32 %v648, %v855
        %v932 = vadd.f32 %v653, %v860
        %v933 = vadd.f32 %v656, %v863
        %v934 = vadd.f32 %v661, %v868
        %v935 = vadd.f32 %v664, %v871
        %v936 = vadd.f32 %v669, %v876
        %v937 = vadd.f32 %v672, %v879
        %v938 = vadd.f32 %v677, %v884
        %v939 = vadd.f32 %v680, %v887
        %v940 = vadd.f32 %v685, %v892
        %v941 = vadd.f32 %v688, %v895
        %v942 = vadd.f32 %v693, %v900
        %v943 = vadd.f32 %v696, %v903
        %v944 = vadd.f32 %v701, %v908
        %v945 = vadd.f32 %v704, %v911
        %v946 = vadd.f32 %v709, %v916
        %v947 = vadd.f32 %v712, %v919
        %v948 = vadd.f32 %v717, %v924
        %v949 = vadd.f32 %v720, %v927
        %s950 = sadd.s32 %s239, 1
        %s951 = smul.u32 %s950, 24
        %s952 = scalar_lea.vmem %s236, %s951
        %v953 = vld [vmem:[%s952] sm:$0xff]
        %v954 = vld [vmem:[%s952 + $0x8] sm:$0xff]
        %v955 = vld [vmem:[%s952 + $0x18] sm:$0xff]
        %v956 = vld [vmem:[%s952 + $0x20] sm:$0xff]
        %v957 = vld [vmem:[%s952 + $0x30] sm:$0xff]
        %v958 = vld [vmem:[%s952 + $0x38] sm:$0xff]
        %v959 = vld [vmem:[%s952 + $0x48] sm:$0xff]
        %v960 = vld [vmem:[%s952 + $0x50] sm:$0xff]
        %v961 = vld [vmem:[%s952 + $0x60] sm:$0xff]
        %v962 = vld [vmem:[%s952 + $0x68] sm:$0xff]
        %v963 = vld [vmem:[%s952 + $0x78] sm:$0xff]
        %v964 = vld [vmem:[%s952 + $0x80] sm:$0xff]
        %v965 = vld [vmem:[%s952 + $0x90] sm:$0xff]
        %v966 = vld [vmem:[%s952 + $0x98] sm:$0xff]
        %v967 = vld [vmem:[%s952 + $0xa8] sm:$0xff]
        %v968 = vld [vmem:[%s952 + $0xb0] sm:$0xff]
        %v969 = vld [vmem:[%s952 + $0xc0] sm:$0xff]
        %v970 = vld [vmem:[%s952 + $0xc8] sm:$0xff]
        %v971 = vld [vmem:[%s952 + $0xd8] sm:$0xff]
        %v972 = vld [vmem:[%s952 + $0xe0] sm:$0xff]
        %v973 = vpack.c.bf16 %v954, %v953
        %v974 = vpack.c.bf16 %v956, %v955
        %v975 = vpack.c.bf16 %v958, %v957
        %v976 = vpack.c.bf16 %v960, %v959
        %v977 = vpack.c.bf16 %v962, %v961
        %v978 = vpack.c.bf16 %v964, %v963
        %v979 = vpack.c.bf16 %v966, %v965
        %v980 = vpack.c.bf16 %v968, %v967
        %v981 = vpack.c.bf16 %v970, %v969
        %v982 = vpack.c.bf16 %v972, %v971
        %v983 = vld [vmem:[%s1 + $0xc0] sm:$0xf]
        %v984 = vld [vmem:[%s1 + $0xc4] sm:$0xf]
        %v985 = vld [vmem:[%s1 + $0xc8] sm:$0xf]
        %v986 = vld [vmem:[%s1 + $0xcc] sm:$0xf]
        %v987 = vld [vmem:[%s1 + $0xd0] sm:$0xf]
        %v988 = vld [vmem:[%s1 + $0xd4] sm:$0xf]
        %v989 = vld [vmem:[%s1 + $0xd8] sm:$0xf]
        %v990 = vld [vmem:[%s1 + $0xdc] sm:$0xf]
        %v991 = vld [vmem:[%s1 + $0xe0] sm:$0xf]
        %v992 = vld [vmem:[%s1 + $0xe4] sm:$0xf]
        %v993 = vld [vmem:[%s1 + $0xe8] sm:$0xf]
        %v994 = vld [vmem:[%s1 + $0xec] sm:$0xf]
        %v995 = vld [vmem:[%s1 + $0xf0] sm:$0xf]
        %v996 = vld [vmem:[%s1 + $0xf4] sm:$0xf]
        %v997 = vld [vmem:[%s1 + $0xf8] sm:$0xf]
        %v998 = vld [vmem:[%s1 + $0xfc] sm:$0xf]
        %v1015 = vunpack.c.l.b16 %v983
        %v1016 = vunpack.c.l.b16 %v984
        %v1017 = vunpack.c.l.b16 %v985
        %v1018 = vunpack.c.l.b16 %v986
        %v1019 = vunpack.c.l.b16 %v987
        %v1020 = vunpack.c.l.b16 %v988
        %v1021 = vunpack.c.l.b16 %v989
        %v1022 = vunpack.c.l.b16 %v990
        %v1023 = vunpack.c.l.b16 %v991
        %v1024 = vunpack.c.l.b16 %v992
        %v1025 = vunpack.c.l.b16 %v993
        %v1026 = vunpack.c.l.b16 %v994
        %v1027 = vunpack.c.l.b16 %v995
        %v1028 = vunpack.c.l.b16 %v996
        %v1029 = vunpack.c.l.b16 %v997
        %v1030 = vunpack.c.l.b16 %v998
        %v1031 = vpack.c.b16 %v1016, %v1015
        %v1032 = vpack.c.b16 %v1018, %v1017
        %v1033 = vpack.c.b16 %v1020, %v1019
        %v1034 = vpack.c.b16 %v1022, %v1021
        %v1035 = vpack.c.b16 %v1024, %v1023
        %v1036 = vpack.c.b16 %v1026, %v1025
        %v1037 = vpack.c.b16 %v1028, %v1027
        %v1038 = vpack.c.b16 %v1030, %v1029
        %1047 = vmatprep.subr.bf16.mxu0 0
        %1048 = vmatpush1.bf16.msra.mxu0 %v1038
        %1049 = vmatprep.subr.bf16.mxu0 0
        %1050 = vmatpush1.bf16.msra.mxu0 %v1037
        %1051 = vmatprep.subr.bf16.mxu0 0
        %1052 = vmatpush1.bf16.msra.mxu0 %v1036
        %1053 = vmatprep.subr.bf16.mxu0 0
        %1054 = vmatpush1.bf16.msra.mxu0 %v1035
        %1055 = vmatprep.subr.bf16.mxu0 0
        %1056 = vmatpush1.bf16.msra.mxu0 %v1034
        %1057 = vmatprep.subr.bf16.mxu0 0
        %1058 = vmatpush1.bf16.msra.mxu0 %v1033
        %1059 = vmatprep.subr.bf16.mxu0 0
        %1060 = vmatpush1.bf16.msra.mxu0 %v1032
        %1061 = vmatprep.subr.bf16.mxu0 0
        %1062 = vmatpush1.bf16.msra.mxu0 %v1031
        %1063 = vmatprep.subr.bf16.mxu0 0
        %1064 = vmatpush2.bf16.msra.mxu0 0
        %1065 = vmatprep.subr.bf16.mxu0 0
        %1066 = vmatpush2.bf16.msra.mxu0 0
        %1067 = vmatprep.subr.bf16.mxu0 0
        %1068 = vmatpush2.bf16.msra.mxu0 0
        %1069 = vmatprep.subr.bf16.mxu0 0
        %1070 = vmatpush2.bf16.msra.mxu0 0
        %1071 = vmatprep.subr.bf16.mxu0 0
        %1072 = vmatpush2.bf16.msra.mxu0 0
        %1073 = vmatprep.subr.bf16.mxu0 0
        %1074 = vmatpush2.bf16.msra.mxu0 0
        %1075 = vmatprep.subr.bf16.mxu0 0
        %1076 = vmatpush2.bf16.msra.mxu0 0
        %1077 = vmatprep.subr.bf16.mxu0 0
        %1078 = vmatpush2.bf16.msra.mxu0 0
        %1079 = vmatprep.mubr.bf16.mxu0 0
        %1080 = vmatmul.mubr.bf16.gmra.mxu0 %v973
        %v1081 = vpop.f32.mrf.mxu0
        %v1082 = vadd.f32 0.0, %v1081
        %v1083 = vpop.f32.mrf.mxu0
        %v1084 = vpop.f32.mrf.mxu0
        %v1085 = vadd.f32 0.0, %v1084
        %v1086 = vpop.f32.mrf.mxu0
        %1087 = vmatprep.mubr.bf16.mxu0 0
        %1088 = vmatmul.mubr.bf16.gmra.mxu0 %v974
        %v1089 = vpop.f32.mrf.mxu0
        %v1090 = vadd.f32 0.0, %v1089
        %v1091 = vpop.f32.mrf.mxu0
        %v1092 = vpop.f32.mrf.mxu0
        %v1093 = vadd.f32 0.0, %v1092
        %v1094 = vpop.f32.mrf.mxu0
        %1095 = vmatprep.mubr.bf16.mxu0 0
        %1096 = vmatmul.mubr.bf16.gmra.mxu0 %v975
        %v1097 = vpop.f32.mrf.mxu0
        %v1098 = vadd.f32 0.0, %v1097
        %v1099 = vpop.f32.mrf.mxu0
        %v1100 = vpop.f32.mrf.mxu0
        %v1101 = vadd.f32 0.0, %v1100
        %v1102 = vpop.f32.mrf.mxu0
        %1103 = vmatprep.mubr.bf16.mxu0 0
        %1104 = vmatmul.mubr.bf16.gmra.mxu0 %v976
        %v1105 = vpop.f32.mrf.mxu0
        %v1106 = vadd.f32 0.0, %v1105
        %v1107 = vpop.f32.mrf.mxu0
        %v1108 = vpop.f32.mrf.mxu0
        %v1109 = vadd.f32 0.0, %v1108
        %v1110 = vpop.f32.mrf.mxu0
        %1111 = vmatprep.mubr.bf16.mxu0 0
        %1112 = vmatmul.mubr.bf16.gmra.mxu0 %v977
        %v1113 = vpop.f32.mrf.mxu0
        %v1114 = vadd.f32 0.0, %v1113
        %v1115 = vpop.f32.mrf.mxu0
        %v1116 = vpop.f32.mrf.mxu0
        %v1117 = vadd.f32 0.0, %v1116
        %v1118 = vpop.f32.mrf.mxu0
        %1119 = vmatprep.mubr.bf16.mxu0 0
        %1120 = vmatmul.mubr.bf16.gmra.mxu0 %v978
        %v1121 = vpop.f32.mrf.mxu0
        %v1122 = vadd.f32 0.0, %v1121
        %v1123 = vpop.f32.mrf.mxu0
        %v1124 = vpop.f32.mrf.mxu0
        %v1125 = vadd.f32 0.0, %v1124
        %v1126 = vpop.f32.mrf.mxu0
        %1127 = vmatprep.mubr.bf16.mxu0 0
        %1128 = vmatmul.mubr.bf16.gmra.mxu0 %v979
        %v1129 = vpop.f32.mrf.mxu0
        %v1130 = vadd.f32 0.0, %v1129
        %v1131 = vpop.f32.mrf.mxu0
        %v1132 = vpop.f32.mrf.mxu0
        %v1133 = vadd.f32 0.0, %v1132
        %v1134 = vpop.f32.mrf.mxu0
        %1135 = vmatprep.mubr.bf16.mxu0 0
        %1136 = vmatmul.mubr.bf16.gmra.mxu0 %v980
        %v1137 = vpop.f32.mrf.mxu0
        %v1138 = vadd.f32 0.0, %v1137
        %v1139 = vpop.f32.mrf.mxu0
        %v1140 = vpop.f32.mrf.mxu0
        %v1141 = vadd.f32 0.0, %v1140
        %v1142 = vpop.f32.mrf.mxu0
        %1143 = vmatprep.mubr.bf16.mxu0 0
        %1144 = vmatmul.mubr.bf16.gmra.mxu0 %v981
        %v1145 = vpop.f32.mrf.mxu0
        %v1146 = vadd.f32 0.0, %v1145
        %v1147 = vpop.f32.mrf.mxu0
        %v1148 = vpop.f32.mrf.mxu0
        %v1149 = vadd.f32 0.0, %v1148
        %v1150 = vpop.f32.mrf.mxu0
        %1151 = vmatprep.mubr.bf16.mxu0 0
        %1152 = vmatmul.mubr.bf16.gmra.mxu0 %v982
        %v1153 = vpop.f32.mrf.mxu0
        %v1154 = vadd.f32 0.0, %v1153
        %v1155 = vpop.f32.mrf.mxu0
        %v1156 = vpop.f32.mrf.mxu0
        %v1157 = vadd.f32 0.0, %v1156
        %v1158 = vpop.f32.mrf.mxu0
        %1159 = vdwg.mxu0
        %v1160 = vadd.f32 %v930, %v1082
        %v1161 = vadd.f32 %v931, %v1085
        %v1162 = vadd.f32 %v932, %v1090
        %v1163 = vadd.f32 %v933, %v1093
        %v1164 = vadd.f32 %v934, %v1098
        %v1165 = vadd.f32 %v935, %v1101
        %v1166 = vadd.f32 %v936, %v1106
        %v1167 = vadd.f32 %v937, %v1109
        %v1168 = vadd.f32 %v938, %v1114
        %v1169 = vadd.f32 %v939, %v1117
        %v1170 = vadd.f32 %v940, %v1122
        %v1171 = vadd.f32 %v941, %v1125
        %v1172 = vadd.f32 %v942, %v1130
        %v1173 = vadd.f32 %v943, %v1133
        %v1174 = vadd.f32 %v944, %v1138
        %v1175 = vadd.f32 %v945, %v1141
        %v1176 = vadd.f32 %v946, %v1146
        %v1177 = vadd.f32 %v947, %v1149
        %v1178 = vadd.f32 %v948, %v1154
        %v1179 = vadd.f32 %v949, %v1157
        %v1180 = vld [vmem:[%s952 + $0x1] sm:$0xff]
        %v1181 = vld [vmem:[%s952 + $0x9] sm:$0xff]
        %v1182 = vld [vmem:[%s952 + $0x19] sm:$0xff]
        %v1183 = vld [vmem:[%s952 + $0x21] sm:$0xff]
        %v1184 = vld [vmem:[%s952 + $0x31] sm:$0xff]
        %v1185 = vld [vmem:[%s952 + $0x39] sm:$0xff]
        %v1186 = vld [vmem:[%s952 + $0x49] sm:$0xff]
        %v1187 = vld [vmem:[%s952 + $0x51] sm:$0xff]
        %v1188 = vld [vmem:[%s952 + $0x61] sm:$0xff]
        %v1189 = vld [vmem:[%s952 + $0x69] sm:$0xff]
        %v1190 = vld [vmem:[%s952 + $0x79] sm:$0xff]
        %v1191 = vld [vmem:[%s952 + $0x81] sm:$0xff]
        %v1192 = vld [vmem:[%s952 + $0x91] sm:$0xff]
        %v1193 = vld [vmem:[%s952 + $0x99] sm:$0xff]
        %v1194 = vld [vmem:[%s952 + $0xa9] sm:$0xff]
        %v1195 = vld [vmem:[%s952 + $0xb1] sm:$0xff]
        %v1196 = vld [vmem:[%s952 + $0xc1] sm:$0xff]
        %v1197 = vld [vmem:[%s952 + $0xc9] sm:$0xff]
        %v1198 = vld [vmem:[%s952 + $0xd9] sm:$0xff]
        %v1199 = vld [vmem:[%s952 + $0xe1] sm:$0xff]
        %v1200 = vpack.c.bf16 %v1181, %v1180
        %v1201 = vpack.c.bf16 %v1183, %v1182
        %v1202 = vpack.c.bf16 %v1185, %v1184
        %v1203 = vpack.c.bf16 %v1187, %v1186
        %v1204 = vpack.c.bf16 %v1189, %v1188
        %v1205 = vpack.c.bf16 %v1191, %v1190
        %v1206 = vpack.c.bf16 %v1193, %v1192
        %v1207 = vpack.c.bf16 %v1195, %v1194
        %v1208 = vpack.c.bf16 %v1197, %v1196
        %v1209 = vpack.c.bf16 %v1199, %v1198
        %v1210 = vld [vmem:[%s1 + $0x100] sm:$0xf]
        %v1211 = vld [vmem:[%s1 + $0x104] sm:$0xf]
        %v1212 = vld [vmem:[%s1 + $0x108] sm:$0xf]
        %v1213 = vld [vmem:[%s1 + $0x10c] sm:$0xf]
        %v1214 = vld [vmem:[%s1 + $0x110] sm:$0xf]
        %v1215 = vld [vmem:[%s1 + $0x114] sm:$0xf]
        %v1216 = vld [vmem:[%s1 + $0x118] sm:$0xf]
        %v1217 = vld [vmem:[%s1 + $0x11c] sm:$0xf]
        %v1218 = vld [vmem:[%s1 + $0x120] sm:$0xf]
        %v1219 = vld [vmem:[%s1 + $0x124] sm:$0xf]
        %v1220 = vld [vmem:[%s1 + $0x128] sm:$0xf]
        %v1221 = vld [vmem:[%s1 + $0x12c] sm:$0xf]
        %v1222 = vld [vmem:[%s1 + $0x130] sm:$0xf]
        %v1223 = vld [vmem:[%s1 + $0x134] sm:$0xf]
        %v1224 = vld [vmem:[%s1 + $0x138] sm:$0xf]
        %v1225 = vld [vmem:[%s1 + $0x13c] sm:$0xf]
        %v1242 = vunpack.c.l.b16 %v1210
        %v1243 = vunpack.c.l.b16 %v1211
        %v1244 = vunpack.c.l.b16 %v1212
        %v1245 = vunpack.c.l.b16 %v1213
        %v1246 = vunpack.c.l.b16 %v1214
        %v1247 = vunpack.c.l.b16 %v1215
        %v1248 = vunpack.c.l.b16 %v1216
        %v1249 = vunpack.c.l.b16 %v1217
        %v1250 = vunpack.c.l.b16 %v1218
        %v1251 = vunpack.c.l.b16 %v1219
        %v1252 = vunpack.c.l.b16 %v1220
        %v1253 = vunpack.c.l.b16 %v1221
        %v1254 = vunpack.c.l.b16 %v1222
        %v1255 = vunpack.c.l.b16 %v1223
        %v1256 = vunpack.c.l.b16 %v1224
        %v1257 = vunpack.c.l.b16 %v1225
        %v1258 = vpack.c.b16 %v1243, %v1242
        %v1259 = vpack.c.b16 %v1245, %v1244
        %v1260 = vpack.c.b16 %v1247, %v1246
        %v1261 = vpack.c.b16 %v1249, %v1248
        %v1262 = vpack.c.b16 %v1251, %v1250
        %v1263 = vpack.c.b16 %v1253, %v1252
        %v1264 = vpack.c.b16 %v1255, %v1254
        %v1265 = vpack.c.b16 %v1257, %v1256
        %1274 = vmatprep.subr.bf16.mxu0 0
        %1275 = vmatpush1.bf16.msra.mxu0 %v1265
        %1276 = vmatprep.subr.bf16.mxu0 0
        %1277 = vmatpush1.bf16.msra.mxu0 %v1264
        %1278 = vmatprep.subr.bf16.mxu0 0
        %1279 = vmatpush1.bf16.msra.mxu0 %v1263
        %1280 = vmatprep.subr.bf16.mxu0 0
        %1281 = vmatpush1.bf16.msra.mxu0 %v1262
        %1282 = vmatprep.subr.bf16.mxu0 0
        %1283 = vmatpush1.bf16.msra.mxu0 %v1261
        %1284 = vmatprep.subr.bf16.mxu0 0
        %1285 = vmatpush1.bf16.msra.mxu0 %v1260
        %1286 = vmatprep.subr.bf16.mxu0 0
        %1287 = vmatpush1.bf16.msra.mxu0 %v1259
        %1288 = vmatprep.subr.bf16.mxu0 0
        %1289 = vmatpush1.bf16.msra.mxu0 %v1258
        %1290 = vmatprep.subr.bf16.mxu0 0
        %1291 = vmatpush2.bf16.msra.mxu0 0
        %1292 = vmatprep.subr.bf16.mxu0 0
        %1293 = vmatpush2.bf16.msra.mxu0 0
        %1294 = vmatprep.subr.bf16.mxu0 0
        %1295 = vmatpush2.bf16.msra.mxu0 0
        %1296 = vmatprep.subr.bf16.mxu0 0
        %1297 = vmatpush2.bf16.msra.mxu0 0
        %1298 = vmatprep.subr.bf16.mxu0 0
        %1299 = vmatpush2.bf16.msra.mxu0 0
        %1300 = vmatprep.subr.bf16.mxu0 0
        %1301 = vmatpush2.bf16.msra.mxu0 0
        %1302 = vmatprep.subr.bf16.mxu0 0
        %1303 = vmatpush2.bf16.msra.mxu0 0
        %1304 = vmatprep.subr.bf16.mxu0 0
        %1305 = vmatpush2.bf16.msra.mxu0 0
        %1306 = vmatprep.mubr.bf16.mxu0 0
        %1307 = vmatmul.mubr.bf16.gmra.mxu0 %v1200
        %v1308 = vpop.f32.mrf.mxu0
        %v1309 = vadd.f32 0.0, %v1308
        %v1310 = vpop.f32.mrf.mxu0
        %v1311 = vpop.f32.mrf.mxu0
        %v1312 = vadd.f32 0.0, %v1311
        %v1313 = vpop.f32.mrf.mxu0
        %1314 = vmatprep.mubr.bf16.mxu0 0
        %1315 = vmatmul.mubr.bf16.gmra.mxu0 %v1201
        %v1316 = vpop.f32.mrf.mxu0
        %v1317 = vadd.f32 0.0, %v1316
        %v1318 = vpop.f32.mrf.mxu0
        %v1319 = vpop.f32.mrf.mxu0
        %v1320 = vadd.f32 0.0, %v1319
        %v1321 = vpop.f32.mrf.mxu0
        %1322 = vmatprep.mubr.bf16.mxu0 0
        %1323 = vmatmul.mubr.bf16.gmra.mxu0 %v1202
        %v1324 = vpop.f32.mrf.mxu0
        %v1325 = vadd.f32 0.0, %v1324
        %v1326 = vpop.f32.mrf.mxu0
        %v1327 = vpop.f32.mrf.mxu0
        %v1328 = vadd.f32 0.0, %v1327
        %v1329 = vpop.f32.mrf.mxu0
        %1330 = vmatprep.mubr.bf16.mxu0 0
        %1331 = vmatmul.mubr.bf16.gmra.mxu0 %v1203
        %v1332 = vpop.f32.mrf.mxu0
        %v1333 = vadd.f32 0.0, %v1332
        %v1334 = vpop.f32.mrf.mxu0
        %v1335 = vpop.f32.mrf.mxu0
        %v1336 = vadd.f32 0.0, %v1335
        %v1337 = vpop.f32.mrf.mxu0
        %1338 = vmatprep.mubr.bf16.mxu0 0
        %1339 = vmatmul.mubr.bf16.gmra.mxu0 %v1204
        %v1340 = vpop.f32.mrf.mxu0
        %v1341 = vadd.f32 0.0, %v1340
        %v1342 = vpop.f32.mrf.mxu0
        %v1343 = vpop.f32.mrf.mxu0
        %v1344 = vadd.f32 0.0, %v1343
        %v1345 = vpop.f32.mrf.mxu0
        %1346 = vmatprep.mubr.bf16.mxu0 0
        %1347 = vmatmul.mubr.bf16.gmra.mxu0 %v1205
        %v1348 = vpop.f32.mrf.mxu0
        %v1349 = vadd.f32 0.0, %v1348
        %v1350 = vpop.f32.mrf.mxu0
        %v1351 = vpop.f32.mrf.mxu0
        %v1352 = vadd.f32 0.0, %v1351
        %v1353 = vpop.f32.mrf.mxu0
        %1354 = vmatprep.mubr.bf16.mxu0 0
        %1355 = vmatmul.mubr.bf16.gmra.mxu0 %v1206
        %v1356 = vpop.f32.mrf.mxu0
        %v1357 = vadd.f32 0.0, %v1356
        %v1358 = vpop.f32.mrf.mxu0
        %v1359 = vpop.f32.mrf.mxu0
        %v1360 = vadd.f32 0.0, %v1359
        %v1361 = vpop.f32.mrf.mxu0
        %1362 = vmatprep.mubr.bf16.mxu0 0
        %1363 = vmatmul.mubr.bf16.gmra.mxu0 %v1207
        %v1364 = vpop.f32.mrf.mxu0
        %v1365 = vadd.f32 0.0, %v1364
        %v1366 = vpop.f32.mrf.mxu0
        %v1367 = vpop.f32.mrf.mxu0
        %v1368 = vadd.f32 0.0, %v1367
        %v1369 = vpop.f32.mrf.mxu0
        %1370 = vmatprep.mubr.bf16.mxu0 0
        %1371 = vmatmul.mubr.bf16.gmra.mxu0 %v1208
        %v1372 = vpop.f32.mrf.mxu0
        %v1373 = vadd.f32 0.0, %v1372
        %v1374 = vpop.f32.mrf.mxu0
        %v1375 = vpop.f32.mrf.mxu0
        %v1376 = vadd.f32 0.0, %v1375
        %v1377 = vpop.f32.mrf.mxu0
        %1378 = vmatprep.mubr.bf16.mxu0 0
        %1379 = vmatmul.mubr.bf16.gmra.mxu0 %v1209
        %v1380 = vpop.f32.mrf.mxu0
        %v1381 = vadd.f32 0.0, %v1380
        %v1382 = vpop.f32.mrf.mxu0
        %v1383 = vpop.f32.mrf.mxu0
        %v1384 = vadd.f32 0.0, %v1383
        %v1385 = vpop.f32.mrf.mxu0
        %1386 = vdwg.mxu0
        %v1387 = vadd.f32 %v1160, %v1309
        %v1388 = vadd.f32 %v1161, %v1312
        %v1389 = vadd.f32 %v1162, %v1317
        %v1390 = vadd.f32 %v1163, %v1320
        %v1391 = vadd.f32 %v1164, %v1325
        %v1392 = vadd.f32 %v1165, %v1328
        %v1393 = vadd.f32 %v1166, %v1333
        %v1394 = vadd.f32 %v1167, %v1336
        %v1395 = vadd.f32 %v1168, %v1341
        %v1396 = vadd.f32 %v1169, %v1344
        %v1397 = vadd.f32 %v1170, %v1349
        %v1398 = vadd.f32 %v1171, %v1352
        %v1399 = vadd.f32 %v1172, %v1357
        %v1400 = vadd.f32 %v1173, %v1360
        %v1401 = vadd.f32 %v1174, %v1365
        %v1402 = vadd.f32 %v1175, %v1368
        %v1403 = vadd.f32 %v1176, %v1373
        %v1404 = vadd.f32 %v1177, %v1376
        %v1405 = vadd.f32 %v1178, %v1381
        %v1406 = vadd.f32 %v1179, %v1384
        %v1407 = vld [vmem:[%s952 + $0x2] sm:$0xff]
        %v1408 = vld [vmem:[%s952 + $0xa] sm:$0xff]
        %v1409 = vld [vmem:[%s952 + $0x1a] sm:$0xff]
        %v1410 = vld [vmem:[%s952 + $0x22] sm:$0xff]
        %v1411 = vld [vmem:[%s952 + $0x32] sm:$0xff]
        %v1412 = vld [vmem:[%s952 + $0x3a] sm:$0xff]
        %v1413 = vld [vmem:[%s952 + $0x4a] sm:$0xff]
        %v1414 = vld [vmem:[%s952 + $0x52] sm:$0xff]
        %v1415 = vld [vmem:[%s952 + $0x62] sm:$0xff]
        %v1416 = vld [vmem:[%s952 + $0x6a] sm:$0xff]
        %v1417 = vld [vmem:[%s952 + $0x7a] sm:$0xff]
        %v1418 = vld [vmem:[%s952 + $0x82] sm:$0xff]
        %v1419 = vld [vmem:[%s952 + $0x92] sm:$0xff]
        %v1420 = vld [vmem:[%s952 + $0x9a] sm:$0xff]
        %v1421 = vld [vmem:[%s952 + $0xaa] sm:$0xff]
        %v1422 = vld [vmem:[%s952 + $0xb2] sm:$0xff]
        %v1423 = vld [vmem:[%s952 + $0xc2] sm:$0xff]
        %v1424 = vld [vmem:[%s952 + $0xca] sm:$0xff]
        %v1425 = vld [vmem:[%s952 + $0xda] sm:$0xff]
        %v1426 = vld [vmem:[%s952 + $0xe2] sm:$0xff]
        %v1427 = vpack.c.bf16 %v1408, %v1407
        %v1428 = vpack.c.bf16 %v1410, %v1409
        %v1429 = vpack.c.bf16 %v1412, %v1411
        %v1430 = vpack.c.bf16 %v1414, %v1413
        %v1431 = vpack.c.bf16 %v1416, %v1415
        %v1432 = vpack.c.bf16 %v1418, %v1417
        %v1433 = vpack.c.bf16 %v1420, %v1419
        %v1434 = vpack.c.bf16 %v1422, %v1421
        %v1435 = vpack.c.bf16 %v1424, %v1423
        %v1436 = vpack.c.bf16 %v1426, %v1425
        %v1437 = vld [vmem:[%s1 + $0x140] sm:$0xf]
        %v1438 = vld [vmem:[%s1 + $0x144] sm:$0xf]
        %v1439 = vld [vmem:[%s1 + $0x148] sm:$0xf]
        %v1440 = vld [vmem:[%s1 + $0x14c] sm:$0xf]
        %v1441 = vld [vmem:[%s1 + $0x150] sm:$0xf]
        %v1442 = vld [vmem:[%s1 + $0x154] sm:$0xf]
        %v1443 = vld [vmem:[%s1 + $0x158] sm:$0xf]
        %v1444 = vld [vmem:[%s1 + $0x15c] sm:$0xf]
        %v1445 = vld [vmem:[%s1 + $0x160] sm:$0xf]
        %v1446 = vld [vmem:[%s1 + $0x164] sm:$0xf]
        %v1447 = vld [vmem:[%s1 + $0x168] sm:$0xf]
        %v1448 = vld [vmem:[%s1 + $0x16c] sm:$0xf]
        %v1449 = vld [vmem:[%s1 + $0x170] sm:$0xf]
        %v1450 = vld [vmem:[%s1 + $0x174] sm:$0xf]
        %v1451 = vld [vmem:[%s1 + $0x178] sm:$0xf]
        %v1452 = vld [vmem:[%s1 + $0x17c] sm:$0xf]
        %v1469 = vunpack.c.l.b16 %v1437
        %v1470 = vunpack.c.l.b16 %v1438
        %v1471 = vunpack.c.l.b16 %v1439
        %v1472 = vunpack.c.l.b16 %v1440
        %v1473 = vunpack.c.l.b16 %v1441
        %v1474 = vunpack.c.l.b16 %v1442
        %v1475 = vunpack.c.l.b16 %v1443
        %v1476 = vunpack.c.l.b16 %v1444
        %v1477 = vunpack.c.l.b16 %v1445
        %v1478 = vunpack.c.l.b16 %v1446
        %v1479 = vunpack.c.l.b16 %v1447
        %v1480 = vunpack.c.l.b16 %v1448
        %v1481 = vunpack.c.l.b16 %v1449
        %v1482 = vunpack.c.l.b16 %v1450
        %v1483 = vunpack.c.l.b16 %v1451
        %v1484 = vunpack.c.l.b16 %v1452
        %v1485 = vpack.c.b16 %v1470, %v1469
        %v1486 = vpack.c.b16 %v1472, %v1471
        %v1487 = vpack.c.b16 %v1474, %v1473
        %v1488 = vpack.c.b16 %v1476, %v1475
        %v1489 = vpack.c.b16 %v1478, %v1477
        %v1490 = vpack.c.b16 %v1480, %v1479
        %v1491 = vpack.c.b16 %v1482, %v1481
        %v1492 = vpack.c.b16 %v1484, %v1483
        %1501 = vmatprep.subr.bf16.mxu0 0
        %1502 = vmatpush1.bf16.msra.mxu0 %v1492
        %1503 = vmatprep.subr.bf16.mxu0 0
        %1504 = vmatpush1.bf16.msra.mxu0 %v1491
        %1505 = vmatprep.subr.bf16.mxu0 0
        %1506 = vmatpush1.bf16.msra.mxu0 %v1490
        %1507 = vmatprep.subr.bf16.mxu0 0
        %1508 = vmatpush1.bf16.msra.mxu0 %v1489
        %1509 = vmatprep.subr.bf16.mxu0 0
        %1510 = vmatpush1.bf16.msra.mxu0 %v1488
        %1511 = vmatprep.subr.bf16.mxu0 0
        %1512 = vmatpush1.bf16.msra.mxu0 %v1487
        %1513 = vmatprep.subr.bf16.mxu0 0
        %1514 = vmatpush1.bf16.msra.mxu0 %v1486
        %1515 = vmatprep.subr.bf16.mxu0 0
        %1516 = vmatpush1.bf16.msra.mxu0 %v1485
        %1517 = vmatprep.subr.bf16.mxu0 0
        %1518 = vmatpush2.bf16.msra.mxu0 0
        %1519 = vmatprep.subr.bf16.mxu0 0
        %1520 = vmatpush2.bf16.msra.mxu0 0
        %1521 = vmatprep.subr.bf16.mxu0 0
        %1522 = vmatpush2.bf16.msra.mxu0 0
        %1523 = vmatprep.subr.bf16.mxu0 0
        %1524 = vmatpush2.bf16.msra.mxu0 0
        %1525 = vmatprep.subr.bf16.mxu0 0
        %1526 = vmatpush2.bf16.msra.mxu0 0
        %1527 = vmatprep.subr.bf16.mxu0 0
        %1528 = vmatpush2.bf16.msra.mxu0 0
        %1529 = vmatprep.subr.bf16.mxu0 0
        %1530 = vmatpush2.bf16.msra.mxu0 0
        %1531 = vmatprep.subr.bf16.mxu0 0
        %1532 = vmatpush2.bf16.msra.mxu0 0
        %1533 = vmatprep.mubr.bf16.mxu0 0
        %1534 = vmatmul.mubr.bf16.gmra.mxu0 %v1427
        %v1535 = vpop.f32.mrf.mxu0
        %v1536 = vadd.f32 0.0, %v1535
        %v1537 = vpop.f32.mrf.mxu0
        %v1538 = vpop.f32.mrf.mxu0
        %v1539 = vadd.f32 0.0, %v1538
        %v1540 = vpop.f32.mrf.mxu0
        %1541 = vmatprep.mubr.bf16.mxu0 0
        %1542 = vmatmul.mubr.bf16.gmra.mxu0 %v1428
        %v1543 = vpop.f32.mrf.mxu0
        %v1544 = vadd.f32 0.0, %v1543
        %v1545 = vpop.f32.mrf.mxu0
        %v1546 = vpop.f32.mrf.mxu0
        %v1547 = vadd.f32 0.0, %v1546
        %v1548 = vpop.f32.mrf.mxu0
        %1549 = vmatprep.mubr.bf16.mxu0 0
        %1550 = vmatmul.mubr.bf16.gmra.mxu0 %v1429
        %v1551 = vpop.f32.mrf.mxu0
        %v1552 = vadd.f32 0.0, %v1551
        %v1553 = vpop.f32.mrf.mxu0
        %v1554 = vpop.f32.mrf.mxu0
        %v1555 = vadd.f32 0.0, %v1554
        %v1556 = vpop.f32.mrf.mxu0
        %1557 = vmatprep.mubr.bf16.mxu0 0
        %1558 = vmatmul.mubr.bf16.gmra.mxu0 %v1430
        %v1559 = vpop.f32.mrf.mxu0
        %v1560 = vadd.f32 0.0, %v1559
        %v1561 = vpop.f32.mrf.mxu0
        %v1562 = vpop.f32.mrf.mxu0
        %v1563 = vadd.f32 0.0, %v1562
        %v1564 = vpop.f32.mrf.mxu0
        %1565 = vmatprep.mubr.bf16.mxu0 0
        %1566 = vmatmul.mubr.bf16.gmra.mxu0 %v1431
        %v1567 = vpop.f32.mrf.mxu0
        %v1568 = vadd.f32 0.0, %v1567
        %v1569 = vpop.f32.mrf.mxu0
        %v1570 = vpop.f32.mrf.mxu0
        %v1571 = vadd.f32 0.0, %v1570
        %v1572 = vpop.f32.mrf.mxu0
        %1573 = vmatprep.mubr.bf16.mxu0 0
        %1574 = vmatmul.mubr.bf16.gmra.mxu0 %v1432
        %v1575 = vpop.f32.mrf.mxu0
        %v1576 = vadd.f32 0.0, %v1575
        %v1577 = vpop.f32.mrf.mxu0
        %v1578 = vpop.f32.mrf.mxu0
        %v1579 = vadd.f32 0.0, %v1578
        %v1580 = vpop.f32.mrf.mxu0
        %1581 = vmatprep.mubr.bf16.mxu0 0
        %1582 = vmatmul.mubr.bf16.gmra.mxu0 %v1433
        %v1583 = vpop.f32.mrf.mxu0
        %v1584 = vadd.f32 0.0, %v1583
        %v1585 = vpop.f32.mrf.mxu0
        %v1586 = vpop.f32.mrf.mxu0
        %v1587 = vadd.f32 0.0, %v1586
        %v1588 = vpop.f32.mrf.mxu0
        %1589 = vmatprep.mubr.bf16.mxu0 0
        %1590 = vmatmul.mubr.bf16.gmra.mxu0 %v1434
        %v1591 = vpop.f32.mrf.mxu0
        %v1592 = vadd.f32 0.0, %v1591
        %v1593 = vpop.f32.mrf.mxu0
        %v1594 = vpop.f32.mrf.mxu0
        %v1595 = vadd.f32 0.0, %v1594
        %v1596 = vpop.f32.mrf.mxu0
        %1597 = vmatprep.mubr.bf16.mxu0 0
        %1598 = vmatmul.mubr.bf16.gmra.mxu0 %v1435
        %v1599 = vpop.f32.mrf.mxu0
        %v1600 = vadd.f32 0.0, %v1599
        %v1601 = vpop.f32.mrf.mxu0
        %v1602 = vpop.f32.mrf.mxu0
        %v1603 = vadd.f32 0.0, %v1602
        %v1604 = vpop.f32.mrf.mxu0
        %1605 = vmatprep.mubr.bf16.mxu0 0
        %1606 = vmatmul.mubr.bf16.gmra.mxu0 %v1436
        %v1607 = vpop.f32.mrf.mxu0
        %v1608 = vadd.f32 0.0, %v1607
        %v1609 = vpop.f32.mrf.mxu0
        %v1610 = vpop.f32.mrf.mxu0
        %v1611 = vadd.f32 0.0, %v1610
        %v1612 = vpop.f32.mrf.mxu0
        %1613 = vdwg.mxu0
        %v1614 = vadd.f32 %v1387, %v1536
        %v1615 = vadd.f32 %v1388, %v1539
        %v1616 = vadd.f32 %v1389, %v1544
        %v1617 = vadd.f32 %v1390, %v1547
        %v1618 = vadd.f32 %v1391, %v1552
        %v1619 = vadd.f32 %v1392, %v1555
        %v1620 = vadd.f32 %v1393, %v1560
        %v1621 = vadd.f32 %v1394, %v1563
        %v1622 = vadd.f32 %v1395, %v1568
        %v1623 = vadd.f32 %v1396, %v1571
        %v1624 = vadd.f32 %v1397, %v1576
        %v1625 = vadd.f32 %v1398, %v1579
        %v1626 = vadd.f32 %v1399, %v1584
        %v1627 = vadd.f32 %v1400, %v1587
        %v1628 = vadd.f32 %v1401, %v1592
        %v1629 = vadd.f32 %v1402, %v1595
        %v1630 = vadd.f32 %v1403, %v1600
        %v1631 = vadd.f32 %v1404, %v1603
        %v1632 = vadd.f32 %v1405, %v1608
        %v1633 = vadd.f32 %v1406, %v1611
        %s1634 = sadd.s32 %s239, 2
        %s1635 = smul.u32 %s1634, 24
        %s1636 = scalar_lea.vmem %s236, %s1635
        %v1637 = vld [vmem:[%s1636] sm:$0xff]
        %v1638 = vld [vmem:[%s1636 + $0x8] sm:$0xff]
        %v1639 = vld [vmem:[%s1636 + $0x18] sm:$0xff]
        %v1640 = vld [vmem:[%s1636 + $0x20] sm:$0xff]
        %v1641 = vld [vmem:[%s1636 + $0x30] sm:$0xff]
        %v1642 = vld [vmem:[%s1636 + $0x38] sm:$0xff]
        %v1643 = vld [vmem:[%s1636 + $0x48] sm:$0xff]
        %v1644 = vld [vmem:[%s1636 + $0x50] sm:$0xff]
        %v1645 = vld [vmem:[%s1636 + $0x60] sm:$0xff]
        %v1646 = vld [vmem:[%s1636 + $0x68] sm:$0xff]
        %v1647 = vld [vmem:[%s1636 + $0x78] sm:$0xff]
        %v1648 = vld [vmem:[%s1636 + $0x80] sm:$0xff]
        %v1649 = vld [vmem:[%s1636 + $0x90] sm:$0xff]
        %v1650 = vld [vmem:[%s1636 + $0x98] sm:$0xff]
        %v1651 = vld [vmem:[%s1636 + $0xa8] sm:$0xff]
        %v1652 = vld [vmem:[%s1636 + $0xb0] sm:$0xff]
        %v1653 = vld [vmem:[%s1636 + $0xc0] sm:$0xff]
        %v1654 = vld [vmem:[%s1636 + $0xc8] sm:$0xff]
        %v1655 = vld [vmem:[%s1636 + $0xd8] sm:$0xff]
        %v1656 = vld [vmem:[%s1636 + $0xe0] sm:$0xff]
        %v1657 = vpack.c.bf16 %v1638, %v1637
        %v1658 = vpack.c.bf16 %v1640, %v1639
        %v1659 = vpack.c.bf16 %v1642, %v1641
        %v1660 = vpack.c.bf16 %v1644, %v1643
        %v1661 = vpack.c.bf16 %v1646, %v1645
        %v1662 = vpack.c.bf16 %v1648, %v1647
        %v1663 = vpack.c.bf16 %v1650, %v1649
        %v1664 = vpack.c.bf16 %v1652, %v1651
        %v1665 = vpack.c.bf16 %v1654, %v1653
        %v1666 = vpack.c.bf16 %v1656, %v1655
        %v1667 = vld [vmem:[%s1 + $0x180] sm:$0xf]
        %v1668 = vld [vmem:[%s1 + $0x184] sm:$0xf]
        %v1669 = vld [vmem:[%s1 + $0x188] sm:$0xf]
        %v1670 = vld [vmem:[%s1 + $0x18c] sm:$0xf]
        %v1671 = vld [vmem:[%s1 + $0x190] sm:$0xf]
        %v1672 = vld [vmem:[%s1 + $0x194] sm:$0xf]
        %v1673 = vld [vmem:[%s1 + $0x198] sm:$0xf]
        %v1674 = vld [vmem:[%s1 + $0x19c] sm:$0xf]
        %v1675 = vld [vmem:[%s1 + $0x1a0] sm:$0xf]
        %v1676 = vld [vmem:[%s1 + $0x1a4] sm:$0xf]
        %v1677 = vld [vmem:[%s1 + $0x1a8] sm:$0xf]
        %v1678 = vld [vmem:[%s1 + $0x1ac] sm:$0xf]
        %v1679 = vld [vmem:[%s1 + $0x1b0] sm:$0xf]
        %v1680 = vld [vmem:[%s1 + $0x1b4] sm:$0xf]
        %v1681 = vld [vmem:[%s1 + $0x1b8] sm:$0xf]
        %v1682 = vld [vmem:[%s1 + $0x1bc] sm:$0xf]
        %v1699 = vunpack.c.l.b16 %v1667
        %v1700 = vunpack.c.l.b16 %v1668
        %v1701 = vunpack.c.l.b16 %v1669
        %v1702 = vunpack.c.l.b16 %v1670
        %v1703 = vunpack.c.l.b16 %v1671
        %v1704 = vunpack.c.l.b16 %v1672
        %v1705 = vunpack.c.l.b16 %v1673
        %v1706 = vunpack.c.l.b16 %v1674
        %v1707 = vunpack.c.l.b16 %v1675
        %v1708 = vunpack.c.l.b16 %v1676
        %v1709 = vunpack.c.l.b16 %v1677
        %v1710 = vunpack.c.l.b16 %v1678
        %v1711 = vunpack.c.l.b16 %v1679
        %v1712 = vunpack.c.l.b16 %v1680
        %v1713 = vunpack.c.l.b16 %v1681
        %v1714 = vunpack.c.l.b16 %v1682
        %v1715 = vpack.c.b16 %v1700, %v1699
        %v1716 = vpack.c.b16 %v1702, %v1701
        %v1717 = vpack.c.b16 %v1704, %v1703
        %v1718 = vpack.c.b16 %v1706, %v1705
        %v1719 = vpack.c.b16 %v1708, %v1707
        %v1720 = vpack.c.b16 %v1710, %v1709
        %v1721 = vpack.c.b16 %v1712, %v1711
        %v1722 = vpack.c.b16 %v1714, %v1713
        %1731 = vmatprep.subr.bf16.mxu0 0
        %1732 = vmatpush1.bf16.msra.mxu0 %v1722
        %1733 = vmatprep.subr.bf16.mxu0 0
        %1734 = vmatpush1.bf16.msra.mxu0 %v1721
        %1735 = vmatprep.subr.bf16.mxu0 0
        %1736 = vmatpush1.bf16.msra.mxu0 %v1720
        %1737 = vmatprep.subr.bf16.mxu0 0
        %1738 = vmatpush1.bf16.msra.mxu0 %v1719
        %1739 = vmatprep.subr.bf16.mxu0 0
        %1740 = vmatpush1.bf16.msra.mxu0 %v1718
        %1741 = vmatprep.subr.bf16.mxu0 0
        %1742 = vmatpush1.bf16.msra.mxu0 %v1717
        %1743 = vmatprep.subr.bf16.mxu0 0
        %1744 = vmatpush1.bf16.msra.mxu0 %v1716
        %1745 = vmatprep.subr.bf16.mxu0 0
        %1746 = vmatpush1.bf16.msra.mxu0 %v1715
        %1747 = vmatprep.subr.bf16.mxu0 0
        %1748 = vmatpush2.bf16.msra.mxu0 0
        %1749 = vmatprep.subr.bf16.mxu0 0
        %1750 = vmatpush2.bf16.msra.mxu0 0
        %1751 = vmatprep.subr.bf16.mxu0 0
        %1752 = vmatpush2.bf16.msra.mxu0 0
        %1753 = vmatprep.subr.bf16.mxu0 0
        %1754 = vmatpush2.bf16.msra.mxu0 0
        %1755 = vmatprep.subr.bf16.mxu0 0
        %1756 = vmatpush2.bf16.msra.mxu0 0
        %1757 = vmatprep.subr.bf16.mxu0 0
        %1758 = vmatpush2.bf16.msra.mxu0 0
        %1759 = vmatprep.subr.bf16.mxu0 0
        %1760 = vmatpush2.bf16.msra.mxu0 0
        %1761 = vmatprep.subr.bf16.mxu0 0
        %1762 = vmatpush2.bf16.msra.mxu0 0
        %1763 = vmatprep.mubr.bf16.mxu0 0
        %1764 = vmatmul.mubr.bf16.gmra.mxu0 %v1657
        %v1765 = vpop.f32.mrf.mxu0
        %v1766 = vadd.f32 0.0, %v1765
        %v1767 = vpop.f32.mrf.mxu0
        %v1768 = vpop.f32.mrf.mxu0
        %v1769 = vadd.f32 0.0, %v1768
        %v1770 = vpop.f32.mrf.mxu0
        %1771 = vmatprep.mubr.bf16.mxu0 0
        %1772 = vmatmul.mubr.bf16.gmra.mxu0 %v1658
        %v1773 = vpop.f32.mrf.mxu0
        %v1774 = vadd.f32 0.0, %v1773
        %v1775 = vpop.f32.mrf.mxu0
        %v1776 = vpop.f32.mrf.mxu0
        %v1777 = vadd.f32 0.0, %v1776
        %v1778 = vpop.f32.mrf.mxu0
        %1779 = vmatprep.mubr.bf16.mxu0 0
        %1780 = vmatmul.mubr.bf16.gmra.mxu0 %v1659
        %v1781 = vpop.f32.mrf.mxu0
        %v1782 = vadd.f32 0.0, %v1781
        %v1783 = vpop.f32.mrf.mxu0
        %v1784 = vpop.f32.mrf.mxu0
        %v1785 = vadd.f32 0.0, %v1784
        %v1786 = vpop.f32.mrf.mxu0
        %1787 = vmatprep.mubr.bf16.mxu0 0
        %1788 = vmatmul.mubr.bf16.gmra.mxu0 %v1660
        %v1789 = vpop.f32.mrf.mxu0
        %v1790 = vadd.f32 0.0, %v1789
        %v1791 = vpop.f32.mrf.mxu0
        %v1792 = vpop.f32.mrf.mxu0
        %v1793 = vadd.f32 0.0, %v1792
        %v1794 = vpop.f32.mrf.mxu0
        %1795 = vmatprep.mubr.bf16.mxu0 0
        %1796 = vmatmul.mubr.bf16.gmra.mxu0 %v1661
        %v1797 = vpop.f32.mrf.mxu0
        %v1798 = vadd.f32 0.0, %v1797
        %v1799 = vpop.f32.mrf.mxu0
        %v1800 = vpop.f32.mrf.mxu0
        %v1801 = vadd.f32 0.0, %v1800
        %v1802 = vpop.f32.mrf.mxu0
        %1803 = vmatprep.mubr.bf16.mxu0 0
        %1804 = vmatmul.mubr.bf16.gmra.mxu0 %v1662
        %v1805 = vpop.f32.mrf.mxu0
        %v1806 = vadd.f32 0.0, %v1805
        %v1807 = vpop.f32.mrf.mxu0
        %v1808 = vpop.f32.mrf.mxu0
        %v1809 = vadd.f32 0.0, %v1808
        %v1810 = vpop.f32.mrf.mxu0
        %1811 = vmatprep.mubr.bf16.mxu0 0
        %1812 = vmatmul.mubr.bf16.gmra.mxu0 %v1663
        %v1813 = vpop.f32.mrf.mxu0
        %v1814 = vadd.f32 0.0, %v1813
        %v1815 = vpop.f32.mrf.mxu0
        %v1816 = vpop.f32.mrf.mxu0
        %v1817 = vadd.f32 0.0, %v1816
        %v1818 = vpop.f32.mrf.mxu0
        %1819 = vmatprep.mubr.bf16.mxu0 0
        %1820 = vmatmul.mubr.bf16.gmra.mxu0 %v1664
        %v1821 = vpop.f32.mrf.mxu0
        %v1822 = vadd.f32 0.0, %v1821
        %v1823 = vpop.f32.mrf.mxu0
        %v1824 = vpop.f32.mrf.mxu0
        %v1825 = vadd.f32 0.0, %v1824
        %v1826 = vpop.f32.mrf.mxu0
        %1827 = vmatprep.mubr.bf16.mxu0 0
        %1828 = vmatmul.mubr.bf16.gmra.mxu0 %v1665
        %v1829 = vpop.f32.mrf.mxu0
        %v1830 = vadd.f32 0.0, %v1829
        %v1831 = vpop.f32.mrf.mxu0
        %v1832 = vpop.f32.mrf.mxu0
        %v1833 = vadd.f32 0.0, %v1832
        %v1834 = vpop.f32.mrf.mxu0
        %1835 = vmatprep.mubr.bf16.mxu0 0
        %1836 = vmatmul.mubr.bf16.gmra.mxu0 %v1666
        %v1837 = vpop.f32.mrf.mxu0
        %v1838 = vadd.f32 0.0, %v1837
        %v1839 = vpop.f32.mrf.mxu0
        %v1840 = vpop.f32.mrf.mxu0
        %v1841 = vadd.f32 0.0, %v1840
        %v1842 = vpop.f32.mrf.mxu0
        %1843 = vdwg.mxu0
        %v1844 = vadd.f32 %v1614, %v1766
        %v1845 = vadd.f32 %v1615, %v1769
        %v1846 = vadd.f32 %v1616, %v1774
        %v1847 = vadd.f32 %v1617, %v1777
        %v1848 = vadd.f32 %v1618, %v1782
        %v1849 = vadd.f32 %v1619, %v1785
        %v1850 = vadd.f32 %v1620, %v1790
        %v1851 = vadd.f32 %v1621, %v1793
        %v1852 = vadd.f32 %v1622, %v1798
        %v1853 = vadd.f32 %v1623, %v1801
        %v1854 = vadd.f32 %v1624, %v1806
        %v1855 = vadd.f32 %v1625, %v1809
        %v1856 = vadd.f32 %v1626, %v1814
        %v1857 = vadd.f32 %v1627, %v1817
        %v1858 = vadd.f32 %v1628, %v1822
        %v1859 = vadd.f32 %v1629, %v1825
        %v1860 = vadd.f32 %v1630, %v1830
        %v1861 = vadd.f32 %v1631, %v1833
        %v1862 = vadd.f32 %v1632, %v1838
        %v1863 = vadd.f32 %v1633, %v1841
        %v1864 = vld [vmem:[%s1636 + $0x1] sm:$0xff]
        %v1865 = vld [vmem:[%s1636 + $0x9] sm:$0xff]
        %v1866 = vld [vmem:[%s1636 + $0x19] sm:$0xff]
        %v1867 = vld [vmem:[%s1636 + $0x21] sm:$0xff]
        %v1868 = vld [vmem:[%s1636 + $0x31] sm:$0xff]
        %v1869 = vld [vmem:[%s1636 + $0x39] sm:$0xff]
        %v1870 = vld [vmem:[%s1636 + $0x49] sm:$0xff]
        %v1871 = vld [vmem:[%s1636 + $0x51] sm:$0xff]
        %v1872 = vld [vmem:[%s1636 + $0x61] sm:$0xff]
        %v1873 = vld [vmem:[%s1636 + $0x69] sm:$0xff]
        %v1874 = vld [vmem:[%s1636 + $0x79] sm:$0xff]
        %v1875 = vld [vmem:[%s1636 + $0x81] sm:$0xff]
        %v1876 = vld [vmem:[%s1636 + $0x91] sm:$0xff]
        %v1877 = vld [vmem:[%s1636 + $0x99] sm:$0xff]
        %v1878 = vld [vmem:[%s1636 + $0xa9] sm:$0xff]
        %v1879 = vld [vmem:[%s1636 + $0xb1] sm:$0xff]
        %v1880 = vld [vmem:[%s1636 + $0xc1] sm:$0xff]
        %v1881 = vld [vmem:[%s1636 + $0xc9] sm:$0xff]
        %v1882 = vld [vmem:[%s1636 + $0xd9] sm:$0xff]
        %v1883 = vld [vmem:[%s1636 + $0xe1] sm:$0xff]
        %v1884 = vpack.c.bf16 %v1865, %v1864
        %v1885 = vpack.c.bf16 %v1867, %v1866
        %v1886 = vpack.c.bf16 %v1869, %v1868
        %v1887 = vpack.c.bf16 %v1871, %v1870
        %v1888 = vpack.c.bf16 %v1873, %v1872
        %v1889 = vpack.c.bf16 %v1875, %v1874
        %v1890 = vpack.c.bf16 %v1877, %v1876
        %v1891 = vpack.c.bf16 %v1879, %v1878
        %v1892 = vpack.c.bf16 %v1881, %v1880
        %v1893 = vpack.c.bf16 %v1883, %v1882
        %v1894 = vld [vmem:[%s1 + $0x1c0] sm:$0xf]
        %v1895 = vld [vmem:[%s1 + $0x1c4] sm:$0xf]
        %v1896 = vld [vmem:[%s1 + $0x1c8] sm:$0xf]
        %v1897 = vld [vmem:[%s1 + $0x1cc] sm:$0xf]
        %v1898 = vld [vmem:[%s1 + $0x1d0] sm:$0xf]
        %v1899 = vld [vmem:[%s1 + $0x1d4] sm:$0xf]
        %v1900 = vld [vmem:[%s1 + $0x1d8] sm:$0xf]
        %v1901 = vld [vmem:[%s1 + $0x1dc] sm:$0xf]
        %v1902 = vld [vmem:[%s1 + $0x1e0] sm:$0xf]
        %v1903 = vld [vmem:[%s1 + $0x1e4] sm:$0xf]
        %v1904 = vld [vmem:[%s1 + $0x1e8] sm:$0xf]
        %v1905 = vld [vmem:[%s1 + $0x1ec] sm:$0xf]
        %v1906 = vld [vmem:[%s1 + $0x1f0] sm:$0xf]
        %v1907 = vld [vmem:[%s1 + $0x1f4] sm:$0xf]
        %v1908 = vld [vmem:[%s1 + $0x1f8] sm:$0xf]
        %v1909 = vld [vmem:[%s1 + $0x1fc] sm:$0xf]
        %v1926 = vunpack.c.l.b16 %v1894
        %v1927 = vunpack.c.l.b16 %v1895
        %v1928 = vunpack.c.l.b16 %v1896
        %v1929 = vunpack.c.l.b16 %v1897
        %v1930 = vunpack.c.l.b16 %v1898
        %v1931 = vunpack.c.l.b16 %v1899
        %v1932 = vunpack.c.l.b16 %v1900
        %v1933 = vunpack.c.l.b16 %v1901
        %v1934 = vunpack.c.l.b16 %v1902
        %v1935 = vunpack.c.l.b16 %v1903
        %v1936 = vunpack.c.l.b16 %v1904
        %v1937 = vunpack.c.l.b16 %v1905
        %v1938 = vunpack.c.l.b16 %v1906
        %v1939 = vunpack.c.l.b16 %v1907
        %v1940 = vunpack.c.l.b16 %v1908
        %v1941 = vunpack.c.l.b16 %v1909
        %v1942 = vpack.c.b16 %v1927, %v1926
        %v1943 = vpack.c.b16 %v1929, %v1928
        %v1944 = vpack.c.b16 %v1931, %v1930
        %v1945 = vpack.c.b16 %v1933, %v1932
        %v1946 = vpack.c.b16 %v1935, %v1934
        %v1947 = vpack.c.b16 %v1937, %v1936
        %v1948 = vpack.c.b16 %v1939, %v1938
        %v1949 = vpack.c.b16 %v1941, %v1940
        %1958 = vmatprep.subr.bf16.mxu0 0
        %1959 = vmatpush1.bf16.msra.mxu0 %v1949
        %1960 = vmatprep.subr.bf16.mxu0 0
        %1961 = vmatpush1.bf16.msra.mxu0 %v1948
        %1962 = vmatprep.subr.bf16.mxu0 0
        %1963 = vmatpush1.bf16.msra.mxu0 %v1947
        %1964 = vmatprep.subr.bf16.mxu0 0
        %1965 = vmatpush1.bf16.msra.mxu0 %v1946
        %1966 = vmatprep.subr.bf16.mxu0 0
        %1967 = vmatpush1.bf16.msra.mxu0 %v1945
        %1968 = vmatprep.subr.bf16.mxu0 0
        %1969 = vmatpush1.bf16.msra.mxu0 %v1944
        %1970 = vmatprep.subr.bf16.mxu0 0
        %1971 = vmatpush1.bf16.msra.mxu0 %v1943
        %1972 = vmatprep.subr.bf16.mxu0 0
        %1973 = vmatpush1.bf16.msra.mxu0 %v1942
        %1974 = vmatprep.subr.bf16.mxu0 0
        %1975 = vmatpush2.bf16.msra.mxu0 0
        %1976 = vmatprep.subr.bf16.mxu0 0
        %1977 = vmatpush2.bf16.msra.mxu0 0
        %1978 = vmatprep.subr.bf16.mxu0 0
        %1979 = vmatpush2.bf16.msra.mxu0 0
        %1980 = vmatprep.subr.bf16.mxu0 0
        %1981 = vmatpush2.bf16.msra.mxu0 0
        %1982 = vmatprep.subr.bf16.mxu0 0
        %1983 = vmatpush2.bf16.msra.mxu0 0
        %1984 = vmatprep.subr.bf16.mxu0 0
        %1985 = vmatpush2.bf16.msra.mxu0 0
        %1986 = vmatprep.subr.bf16.mxu0 0
        %1987 = vmatpush2.bf16.msra.mxu0 0
        %1988 = vmatprep.subr.bf16.mxu0 0
        %1989 = vmatpush2.bf16.msra.mxu0 0
        %1990 = vmatprep.mubr.bf16.mxu0 0
        %1991 = vmatmul.mubr.bf16.gmra.mxu0 %v1884
        %v1992 = vpop.f32.mrf.mxu0
        %v1993 = vadd.f32 0.0, %v1992
        %v1994 = vpop.f32.mrf.mxu0
        %v1995 = vpop.f32.mrf.mxu0
        %v1996 = vadd.f32 0.0, %v1995
        %v1997 = vpop.f32.mrf.mxu0
        %1998 = vmatprep.mubr.bf16.mxu0 0
        %1999 = vmatmul.mubr.bf16.gmra.mxu0 %v1885
        %v2000 = vpop.f32.mrf.mxu0
        %v2001 = vadd.f32 0.0, %v2000
        %v2002 = vpop.f32.mrf.mxu0
        %v2003 = vpop.f32.mrf.mxu0
        %v2004 = vadd.f32 0.0, %v2003
        %v2005 = vpop.f32.mrf.mxu0
        %2006 = vmatprep.mubr.bf16.mxu0 0
        %2007 = vmatmul.mubr.bf16.gmra.mxu0 %v1886
        %v2008 = vpop.f32.mrf.mxu0
        %v2009 = vadd.f32 0.0, %v2008
        %v2010 = vpop.f32.mrf.mxu0
        %v2011 = vpop.f32.mrf.mxu0
        %v2012 = vadd.f32 0.0, %v2011
        %v2013 = vpop.f32.mrf.mxu0
        %2014 = vmatprep.mubr.bf16.mxu0 0
        %2015 = vmatmul.mubr.bf16.gmra.mxu0 %v1887
        %v2016 = vpop.f32.mrf.mxu0
        %v2017 = vadd.f32 0.0, %v2016
        %v2018 = vpop.f32.mrf.mxu0
        %v2019 = vpop.f32.mrf.mxu0
        %v2020 = vadd.f32 0.0, %v2019
        %v2021 = vpop.f32.mrf.mxu0
        %2022 = vmatprep.mubr.bf16.mxu0 0
        %2023 = vmatmul.mubr.bf16.gmra.mxu0 %v1888
        %v2024 = vpop.f32.mrf.mxu0
        %v2025 = vadd.f32 0.0, %v2024
        %v2026 = vpop.f32.mrf.mxu0
        %v2027 = vpop.f32.mrf.mxu0
        %v2028 = vadd.f32 0.0, %v2027
        %v2029 = vpop.f32.mrf.mxu0
        %2030 = vmatprep.mubr.bf16.mxu0 0
        %2031 = vmatmul.mubr.bf16.gmra.mxu0 %v1889
        %v2032 = vpop.f32.mrf.mxu0
        %v2033 = vadd.f32 0.0, %v2032
        %v2034 = vpop.f32.mrf.mxu0
        %v2035 = vpop.f32.mrf.mxu0
        %v2036 = vadd.f32 0.0, %v2035
        %v2037 = vpop.f32.mrf.mxu0
        %2038 = vmatprep.mubr.bf16.mxu0 0
        %2039 = vmatmul.mubr.bf16.gmra.mxu0 %v1890
        %v2040 = vpop.f32.mrf.mxu0
        %v2041 = vadd.f32 0.0, %v2040
        %v2042 = vpop.f32.mrf.mxu0
        %v2043 = vpop.f32.mrf.mxu0
        %v2044 = vadd.f32 0.0, %v2043
        %v2045 = vpop.f32.mrf.mxu0
        %2046 = vmatprep.mubr.bf16.mxu0 0
        %2047 = vmatmul.mubr.bf16.gmra.mxu0 %v1891
        %v2048 = vpop.f32.mrf.mxu0
        %v2049 = vadd.f32 0.0, %v2048
        %v2050 = vpop.f32.mrf.mxu0
        %v2051 = vpop.f32.mrf.mxu0
        %v2052 = vadd.f32 0.0, %v2051
        %v2053 = vpop.f32.mrf.mxu0
        %2054 = vmatprep.mubr.bf16.mxu0 0
        %2055 = vmatmul.mubr.bf16.gmra.mxu0 %v1892
        %v2056 = vpop.f32.mrf.mxu0
        %v2057 = vadd.f32 0.0, %v2056
        %v2058 = vpop.f32.mrf.mxu0
        %v2059 = vpop.f32.mrf.mxu0
        %v2060 = vadd.f32 0.0, %v2059
        %v2061 = vpop.f32.mrf.mxu0
        %2062 = vmatprep.mubr.bf16.mxu0 0
        %2063 = vmatmul.mubr.bf16.gmra.mxu0 %v1893
        %v2064 = vpop.f32.mrf.mxu0
        %v2065 = vadd.f32 0.0, %v2064
        %v2066 = vpop.f32.mrf.mxu0
        %v2067 = vpop.f32.mrf.mxu0
        %v2068 = vadd.f32 0.0, %v2067
        %v2069 = vpop.f32.mrf.mxu0
        %2070 = vdwg.mxu0
        %v2071 = vadd.f32 %v1844, %v1993
        %v2072 = vadd.f32 %v1845, %v1996
        %v2073 = vadd.f32 %v1846, %v2001
        %v2074 = vadd.f32 %v1847, %v2004
        %v2075 = vadd.f32 %v1848, %v2009
        %v2076 = vadd.f32 %v1849, %v2012
        %v2077 = vadd.f32 %v1850, %v2017
        %v2078 = vadd.f32 %v1851, %v2020
        %v2079 = vadd.f32 %v1852, %v2025
        %v2080 = vadd.f32 %v1853, %v2028
        %v2081 = vadd.f32 %v1854, %v2033
        %v2082 = vadd.f32 %v1855, %v2036
        %v2083 = vadd.f32 %v1856, %v2041
        %v2084 = vadd.f32 %v1857, %v2044
        %v2085 = vadd.f32 %v1858, %v2049
        %v2086 = vadd.f32 %v1859, %v2052
        %v2087 = vadd.f32 %v1860, %v2057
        %v2088 = vadd.f32 %v1861, %v2060
        %v2089 = vadd.f32 %v1862, %v2065
        %v2090 = vadd.f32 %v1863, %v2068
        %v2091 = vld [vmem:[%s1636 + $0x2] sm:$0xff]
        %v2092 = vld [vmem:[%s1636 + $0xa] sm:$0xff]
        %v2093 = vld [vmem:[%s1636 + $0x1a] sm:$0xff]
        %v2094 = vld [vmem:[%s1636 + $0x22] sm:$0xff]
        %v2095 = vld [vmem:[%s1636 + $0x32] sm:$0xff]
        %v2096 = vld [vmem:[%s1636 + $0x3a] sm:$0xff]
        %v2097 = vld [vmem:[%s1636 + $0x4a] sm:$0xff]
        %v2098 = vld [vmem:[%s1636 + $0x52] sm:$0xff]
        %v2099 = vld [vmem:[%s1636 + $0x62] sm:$0xff]
        %v2100 = vld [vmem:[%s1636 + $0x6a] sm:$0xff]
        %v2101 = vld [vmem:[%s1636 + $0x7a] sm:$0xff]
        %v2102 = vld [vmem:[%s1636 + $0x82] sm:$0xff]
        %v2103 = vld [vmem:[%s1636 + $0x92] sm:$0xff]
        %v2104 = vld [vmem:[%s1636 + $0x9a] sm:$0xff]
        %v2105 = vld [vmem:[%s1636 + $0xaa] sm:$0xff]
        %v2106 = vld [vmem:[%s1636 + $0xb2] sm:$0xff]
        %v2107 = vld [vmem:[%s1636 + $0xc2] sm:$0xff]
        %v2108 = vld [vmem:[%s1636 + $0xca] sm:$0xff]
        %v2109 = vld [vmem:[%s1636 + $0xda] sm:$0xff]
        %v2110 = vld [vmem:[%s1636 + $0xe2] sm:$0xff]
        %v2111 = vpack.c.bf16 %v2092, %v2091
        %v2112 = vpack.c.bf16 %v2094, %v2093
        %v2113 = vpack.c.bf16 %v2096, %v2095
        %v2114 = vpack.c.bf16 %v2098, %v2097
        %v2115 = vpack.c.bf16 %v2100, %v2099
        %v2116 = vpack.c.bf16 %v2102, %v2101
        %v2117 = vpack.c.bf16 %v2104, %v2103
        %v2118 = vpack.c.bf16 %v2106, %v2105
        %v2119 = vpack.c.bf16 %v2108, %v2107
        %v2120 = vpack.c.bf16 %v2110, %v2109
        %v2121 = vld [vmem:[%s1 + $0x200] sm:$0xf]
        %v2122 = vld [vmem:[%s1 + $0x204] sm:$0xf]
        %v2123 = vld [vmem:[%s1 + $0x208] sm:$0xf]
        %v2124 = vld [vmem:[%s1 + $0x20c] sm:$0xf]
        %v2125 = vld [vmem:[%s1 + $0x210] sm:$0xf]
        %v2126 = vld [vmem:[%s1 + $0x214] sm:$0xf]
        %v2127 = vld [vmem:[%s1 + $0x218] sm:$0xf]
        %v2128 = vld [vmem:[%s1 + $0x21c] sm:$0xf]
        %v2129 = vld [vmem:[%s1 + $0x220] sm:$0xf]
        %v2130 = vld [vmem:[%s1 + $0x224] sm:$0xf]
        %v2131 = vld [vmem:[%s1 + $0x228] sm:$0xf]
        %v2132 = vld [vmem:[%s1 + $0x22c] sm:$0xf]
        %v2133 = vld [vmem:[%s1 + $0x230] sm:$0xf]
        %v2134 = vld [vmem:[%s1 + $0x234] sm:$0xf]
        %v2135 = vld [vmem:[%s1 + $0x238] sm:$0xf]
        %v2136 = vld [vmem:[%s1 + $0x23c] sm:$0xf]
        %v2153 = vunpack.c.l.b16 %v2121
        %v2154 = vunpack.c.l.b16 %v2122
        %v2155 = vunpack.c.l.b16 %v2123
        %v2156 = vunpack.c.l.b16 %v2124
        %v2157 = vunpack.c.l.b16 %v2125
        %v2158 = vunpack.c.l.b16 %v2126
        %v2159 = vunpack.c.l.b16 %v2127
        %v2160 = vunpack.c.l.b16 %v2128
        %v2161 = vunpack.c.l.b16 %v2129
        %v2162 = vunpack.c.l.b16 %v2130
        %v2163 = vunpack.c.l.b16 %v2131
        %v2164 = vunpack.c.l.b16 %v2132
        %v2165 = vunpack.c.l.b16 %v2133
        %v2166 = vunpack.c.l.b16 %v2134
        %v2167 = vunpack.c.l.b16 %v2135
        %v2168 = vunpack.c.l.b16 %v2136
        %v2169 = vpack.c.b16 %v2154, %v2153
        %v2170 = vpack.c.b16 %v2156, %v2155
        %v2171 = vpack.c.b16 %v2158, %v2157
        %v2172 = vpack.c.b16 %v2160, %v2159
        %v2173 = vpack.c.b16 %v2162, %v2161
        %v2174 = vpack.c.b16 %v2164, %v2163
        %v2175 = vpack.c.b16 %v2166, %v2165
        %v2176 = vpack.c.b16 %v2168, %v2167
        %2185 = vmatprep.subr.bf16.mxu0 0
        %2186 = vmatpush1.bf16.msra.mxu0 %v2176
        %2187 = vmatprep.subr.bf16.mxu0 0
        %2188 = vmatpush1.bf16.msra.mxu0 %v2175
        %2189 = vmatprep.subr.bf16.mxu0 0
        %2190 = vmatpush1.bf16.msra.mxu0 %v2174
        %2191 = vmatprep.subr.bf16.mxu0 0
        %2192 = vmatpush1.bf16.msra.mxu0 %v2173
        %2193 = vmatprep.subr.bf16.mxu0 0
        %2194 = vmatpush1.bf16.msra.mxu0 %v2172
        %2195 = vmatprep.subr.bf16.mxu0 0
        %2196 = vmatpush1.bf16.msra.mxu0 %v2171
        %2197 = vmatprep.subr.bf16.mxu0 0
        %2198 = vmatpush1.bf16.msra.mxu0 %v2170
        %2199 = vmatprep.subr.bf16.mxu0 0
        %2200 = vmatpush1.bf16.msra.mxu0 %v2169
        %2201 = vmatprep.subr.bf16.mxu0 0
        %2202 = vmatpush2.bf16.msra.mxu0 0
        %2203 = vmatprep.subr.bf16.mxu0 0
        %2204 = vmatpush2.bf16.msra.mxu0 0
        %2205 = vmatprep.subr.bf16.mxu0 0
        %2206 = vmatpush2.bf16.msra.mxu0 0
        %2207 = vmatprep.subr.bf16.mxu0 0
        %2208 = vmatpush2.bf16.msra.mxu0 0
        %2209 = vmatprep.subr.bf16.mxu0 0
        %2210 = vmatpush2.bf16.msra.mxu0 0
        %2211 = vmatprep.subr.bf16.mxu0 0
        %2212 = vmatpush2.bf16.msra.mxu0 0
        %2213 = vmatprep.subr.bf16.mxu0 0
        %2214 = vmatpush2.bf16.msra.mxu0 0
        %2215 = vmatprep.subr.bf16.mxu0 0
        %2216 = vmatpush2.bf16.msra.mxu0 0
        %2217 = vmatprep.mubr.bf16.mxu0 0
        %2218 = vmatmul.mubr.bf16.gmra.mxu0 %v2111
        %v2219 = vpop.f32.mrf.mxu0
        %v2220 = vadd.f32 0.0, %v2219
        %v2221 = vpop.f32.mrf.mxu0
        %v2222 = vpop.f32.mrf.mxu0
        %v2223 = vadd.f32 0.0, %v2222
        %v2224 = vpop.f32.mrf.mxu0
        %2225 = vmatprep.mubr.bf16.mxu0 0
        %2226 = vmatmul.mubr.bf16.gmra.mxu0 %v2112
        %v2227 = vpop.f32.mrf.mxu0
        %v2228 = vadd.f32 0.0, %v2227
        %v2229 = vpop.f32.mrf.mxu0
        %v2230 = vpop.f32.mrf.mxu0
        %v2231 = vadd.f32 0.0, %v2230
        %v2232 = vpop.f32.mrf.mxu0
        %2233 = vmatprep.mubr.bf16.mxu0 0
        %2234 = vmatmul.mubr.bf16.gmra.mxu0 %v2113
        %v2235 = vpop.f32.mrf.mxu0
        %v2236 = vadd.f32 0.0, %v2235
        %v2237 = vpop.f32.mrf.mxu0
        %v2238 = vpop.f32.mrf.mxu0
        %v2239 = vadd.f32 0.0, %v2238
        %v2240 = vpop.f32.mrf.mxu0
        %2241 = vmatprep.mubr.bf16.mxu0 0
        %2242 = vmatmul.mubr.bf16.gmra.mxu0 %v2114
        %v2243 = vpop.f32.mrf.mxu0
        %v2244 = vadd.f32 0.0, %v2243
        %v2245 = vpop.f32.mrf.mxu0
        %v2246 = vpop.f32.mrf.mxu0
        %v2247 = vadd.f32 0.0, %v2246
        %v2248 = vpop.f32.mrf.mxu0
        %2249 = vmatprep.mubr.bf16.mxu0 0
        %2250 = vmatmul.mubr.bf16.gmra.mxu0 %v2115
        %v2251 = vpop.f32.mrf.mxu0
        %v2252 = vadd.f32 0.0, %v2251
        %v2253 = vpop.f32.mrf.mxu0
        %v2254 = vpop.f32.mrf.mxu0
        %v2255 = vadd.f32 0.0, %v2254
        %v2256 = vpop.f32.mrf.mxu0
        %2257 = vmatprep.mubr.bf16.mxu0 0
        %2258 = vmatmul.mubr.bf16.gmra.mxu0 %v2116
        %v2259 = vpop.f32.mrf.mxu0
        %v2260 = vadd.f32 0.0, %v2259
        %v2261 = vpop.f32.mrf.mxu0
        %v2262 = vpop.f32.mrf.mxu0
        %v2263 = vadd.f32 0.0, %v2262
        %v2264 = vpop.f32.mrf.mxu0
        %2265 = vmatprep.mubr.bf16.mxu0 0
        %2266 = vmatmul.mubr.bf16.gmra.mxu0 %v2117
        %v2267 = vpop.f32.mrf.mxu0
        %v2268 = vadd.f32 0.0, %v2267
        %v2269 = vpop.f32.mrf.mxu0
        %v2270 = vpop.f32.mrf.mxu0
        %v2271 = vadd.f32 0.0, %v2270
        %v2272 = vpop.f32.mrf.mxu0
        %2273 = vmatprep.mubr.bf16.mxu0 0
        %2274 = vmatmul.mubr.bf16.gmra.mxu0 %v2118
        %v2275 = vpop.f32.mrf.mxu0
        %v2276 = vadd.f32 0.0, %v2275
        %v2277 = vpop.f32.mrf.mxu0
        %v2278 = vpop.f32.mrf.mxu0
        %v2279 = vadd.f32 0.0, %v2278
        %v2280 = vpop.f32.mrf.mxu0
        %2281 = vmatprep.mubr.bf16.mxu0 0
        %2282 = vmatmul.mubr.bf16.gmra.mxu0 %v2119
        %v2283 = vpop.f32.mrf.mxu0
        %v2284 = vadd.f32 0.0, %v2283
        %v2285 = vpop.f32.mrf.mxu0
        %v2286 = vpop.f32.mrf.mxu0
        %v2287 = vadd.f32 0.0, %v2286
        %v2288 = vpop.f32.mrf.mxu0
        %2289 = vmatprep.mubr.bf16.mxu0 0
        %2290 = vmatmul.mubr.bf16.gmra.mxu0 %v2120
        %v2291 = vpop.f32.mrf.mxu0
        %v2292 = vadd.f32 0.0, %v2291
        %v2293 = vpop.f32.mrf.mxu0
        %v2294 = vpop.f32.mrf.mxu0
        %v2295 = vadd.f32 0.0, %v2294
        %v2296 = vpop.f32.mrf.mxu0
        %2297 = vdwg.mxu0
        %v2298 = vadd.f32 %v2071, %v2220
        %v2299 = vadd.f32 %v2072, %v2223
        %v2300 = vadd.f32 %v2073, %v2228
        %v2301 = vadd.f32 %v2074, %v2231
        %v2302 = vadd.f32 %v2075, %v2236
        %v2303 = vadd.f32 %v2076, %v2239
        %v2304 = vadd.f32 %v2077, %v2244
        %v2305 = vadd.f32 %v2078, %v2247
        %v2306 = vadd.f32 %v2079, %v2252
        %v2307 = vadd.f32 %v2080, %v2255
        %v2308 = vadd.f32 %v2081, %v2260
        %v2309 = vadd.f32 %v2082, %v2263
        %v2310 = vadd.f32 %v2083, %v2268
        %v2311 = vadd.f32 %v2084, %v2271
        %v2312 = vadd.f32 %v2085, %v2276
        %v2313 = vadd.f32 %v2086, %v2279
        %v2314 = vadd.f32 %v2087, %v2284
        %v2315 = vadd.f32 %v2088, %v2287
        %v2316 = vadd.f32 %v2089, %v2292
        %v2317 = vadd.f32 %v2090, %v2295
        %v2319 = vlaneseq
        %v2320 = vshrl.u32 %v2319, 7
        %v2321 = vsub.s32 0, %v2320
        %v2322 = vrot.slane %v240, %v2321
        %v2324 = vadd.f32 %v2298, %v2322
        %v2325 = vadd.f32 %v2299, %v2322
        %v2326 = vadd.f32 %v2300, %v2322
        %v2327 = vadd.f32 %v2301, %v2322
        %v2328 = vadd.f32 %v2302, %v2322
        %v2329 = vadd.f32 %v2303, %v2322
        %v2330 = vadd.f32 %v2304, %v2322
        %v2331 = vadd.f32 %v2305, %v2322
        %v2332 = vadd.f32 %v2306, %v2322
        %v2333 = vadd.f32 %v2307, %v2322
        %v2334 = vadd.f32 %v2308, %v2322
        %v2335 = vadd.f32 %v2309, %v2322
        %v2336 = vadd.f32 %v2310, %v2322
        %v2337 = vadd.f32 %v2311, %v2322
        %v2338 = vadd.f32 %v2312, %v2322
        %v2339 = vadd.f32 %v2313, %v2322
        %v2340 = vadd.f32 %v2314, %v2322
        %v2341 = vadd.f32 %v2315, %v2322
        %v2342 = vadd.f32 %v2316, %v2322
        %v2343 = vadd.f32 %v2317, %v2322
        %v2344 = vmax.f32 %v2324, 0.0
        %v2345 = vmax.f32 %v2325, 0.0
        %v2346 = vmax.f32 %v2326, 0.0
        %v2347 = vmax.f32 %v2327, 0.0
        %v2348 = vmax.f32 %v2328, 0.0
        %v2349 = vmax.f32 %v2329, 0.0
        %v2350 = vmax.f32 %v2330, 0.0
        %v2351 = vmax.f32 %v2331, 0.0
        %v2352 = vmax.f32 %v2332, 0.0
        %v2353 = vmax.f32 %v2333, 0.0
        %v2354 = vmax.f32 %v2334, 0.0
        %v2355 = vmax.f32 %v2335, 0.0
        %v2356 = vmax.f32 %v2336, 0.0
        %v2357 = vmax.f32 %v2337, 0.0
        %v2358 = vmax.f32 %v2338, 0.0
        %v2359 = vmax.f32 %v2339, 0.0
        %v2360 = vmax.f32 %v2340, 0.0
        %v2361 = vmax.f32 %v2341, 0.0
        %v2362 = vmax.f32 %v2342, 0.0
        %v2363 = vmax.f32 %v2343, 0.0
        %v2364 = vpack.c.bf16 %v2345, %v2344
        %v2365 = vpack.c.bf16 %v2347, %v2346
        %v2366 = vpack.c.bf16 %v2349, %v2348
        %v2367 = vpack.c.bf16 %v2351, %v2350
        %v2368 = vpack.c.bf16 %v2353, %v2352
        %v2369 = vpack.c.bf16 %v2355, %v2354
        %v2370 = vpack.c.bf16 %v2357, %v2356
        %v2371 = vpack.c.bf16 %v2359, %v2358
        %v2372 = vpack.c.bf16 %v2361, %v2360
        %v2373 = vpack.c.bf16 %v2363, %v2362
        %v2384 = vunpack.c.l.b16 %v2364
        %v2385 = vunpack.c.h.b16 %v2364
        %v2386 = vunpack.c.l.b16 %v2365
        %v2387 = vunpack.c.h.b16 %v2365
        %v2388 = vunpack.c.l.b16 %v2366
        %v2389 = vunpack.c.h.b16 %v2366
        %v2390 = vunpack.c.l.b16 %v2367
        %v2391 = vunpack.c.h.b16 %v2367
        %v2392 = vunpack.c.l.b16 %v2368
        %v2393 = vunpack.c.h.b16 %v2368
        %v2394 = vunpack.c.l.b16 %v2369
        %v2395 = vunpack.c.h.b16 %v2369
        %v2396 = vunpack.c.l.b16 %v2370
        %v2397 = vunpack.c.h.b16 %v2370
        %v2398 = vunpack.c.l.b16 %v2371
        %v2399 = vunpack.c.h.b16 %v2371
        %v2400 = vunpack.c.l.b16 %v2372
        %v2401 = vunpack.c.h.b16 %v2372
        %v2402 = vunpack.c.l.b16 %v2373
        %v2403 = vunpack.c.h.b16 %v2373
        %v2404 = vpack.c.b16 %v2384, %v2384
        %v2405 = vpack.c.b16 %v2385, %v2385
        %v2406 = vpack.c.b16 %v2386, %v2386
        %v2407 = vpack.c.b16 %v2387, %v2387
        %v2408 = vpack.c.b16 %v2388, %v2388
        %v2409 = vpack.c.b16 %v2389, %v2389
        %v2410 = vpack.c.b16 %v2390, %v2390
        %v2411 = vpack.c.b16 %v2391, %v2391
        %v2412 = vpack.c.b16 %v2392, %v2392
        %v2413 = vpack.c.b16 %v2393, %v2393
        %v2414 = vpack.c.b16 %v2394, %v2394
        %v2415 = vpack.c.b16 %v2395, %v2395
        %v2416 = vpack.c.b16 %v2396, %v2396
        %v2417 = vpack.c.b16 %v2397, %v2397
        %v2418 = vpack.c.b16 %v2398, %v2398
        %v2419 = vpack.c.b16 %v2399, %v2399
        %v2420 = vpack.c.b16 %v2400, %v2400
        %v2421 = vpack.c.b16 %v2401, %v2401
        %v2422 = vpack.c.b16 %v2402, %v2402
        %v2423 = vpack.c.b16 %v2403, %v2403
        %vm2424 = vsmask.f32 4368
        %vm2425 = vmor %vm243, %vm2424
        %v2427 = vshrl.u32 %v2404, 16
        %v2429 = vrot.slane %v2427, 7
        %v2430 = vshll.u32 %v2404, 16
        %v2432 = vor.u32 %v2429, %v2430
        %v2433 = vrot.slane %v2429, 4
        %v2435 = vshrl.u32 %v2405, 16
        %v2437 = vrot.slane %v2435, 7
        %v2438 = vshll.u32 %v2405, 16
        %v2440 = vor.u32 %v2437, %v2438
        %v2441 = vsel %vm2425, %v2433, %v2440
        %v2442 = vrot.slane %v2437, 4
        %v2444 = vshrl.u32 %v2406, 16
        %v2446 = vrot.slane %v2444, 7
        %v2447 = vshll.u32 %v2406, 16
        %v2449 = vor.u32 %v2446, %v2447
        %v2450 = vrot.slane %v2446, 4
        %v2452 = vshrl.u32 %v2407, 16
        %v2454 = vrot.slane %v2452, 7
        %v2455 = vshll.u32 %v2407, 16
        %v2457 = vor.u32 %v2454, %v2455
        %v2458 = vsel %vm2425, %v2450, %v2457
        %v2459 = vrot.slane %v2454, 4
        %v2461 = vshrl.u32 %v2408, 16
        %v2463 = vrot.slane %v2461, 7
        %v2464 = vshll.u32 %v2408, 16
        %v2466 = vor.u32 %v2463, %v2464
        %v2467 = vrot.slane %v2463, 4
        %v2469 = vshrl.u32 %v2409, 16
        %v2471 = vrot.slane %v2469, 7
        %v2472 = vshll.u32 %v2409, 16
        %v2474 = vor.u32 %v2471, %v2472
        %v2475 = vsel %vm2425, %v2467, %v2474
        %v2476 = vrot.slane %v2471, 4
        %v2478 = vshrl.u32 %v2410, 16
        %v2480 = vrot.slane %v2478, 7
        %v2481 = vshll.u32 %v2410, 16
        %v2483 = vor.u32 %v2480, %v2481
        %v2484 = vrot.slane %v2480, 4
        %v2486 = vshrl.u32 %v2411, 16
        %v2488 = vrot.slane %v2486, 7
        %v2489 = vshll.u32 %v2411, 16
        %v2491 = vor.u32 %v2488, %v2489
        %v2492 = vsel %vm2425, %v2484, %v2491
        %v2493 = vrot.slane %v2488, 4
        %v2495 = vshrl.u32 %v2412, 16
        %v2497 = vrot.slane %v2495, 7
        %v2498 = vshll.u32 %v2412, 16
        %v2500 = vor.u32 %v2497, %v2498
        %v2501 = vrot.slane %v2497, 4
        %v2503 = vshrl.u32 %v2413, 16
        %v2505 = vrot.slane %v2503, 7
        %v2506 = vshll.u32 %v2413, 16
        %v2508 = vor.u32 %v2505, %v2506
        %v2509 = vsel %vm2425, %v2501, %v2508
        %v2510 = vrot.slane %v2505, 4
        %v2512 = vshrl.u32 %v2414, 16
        %v2514 = vrot.slane %v2512, 7
        %v2515 = vshll.u32 %v2414, 16
        %v2517 = vor.u32 %v2514, %v2515
        %v2518 = vrot.slane %v2514, 4
        %v2520 = vshrl.u32 %v2415, 16
        %v2522 = vrot.slane %v2520, 7
        %v2523 = vshll.u32 %v2415, 16
        %v2525 = vor.u32 %v2522, %v2523
        %v2526 = vsel %vm2425, %v2518, %v2525
        %v2527 = vrot.slane %v2522, 4
        %v2529 = vshrl.u32 %v2416, 16
        %v2531 = vrot.slane %v2529, 7
        %v2532 = vshll.u32 %v2416, 16
        %v2534 = vor.u32 %v2531, %v2532
        %v2535 = vrot.slane %v2531, 4
        %v2537 = vshrl.u32 %v2417, 16
        %v2539 = vrot.slane %v2537, 7
        %v2540 = vshll.u32 %v2417, 16
        %v2542 = vor.u32 %v2539, %v2540
        %v2543 = vsel %vm2425, %v2535, %v2542
        %v2544 = vrot.slane %v2539, 4
        %v2546 = vshrl.u32 %v2418, 16
        %v2548 = vrot.slane %v2546, 7
        %v2549 = vshll.u32 %v2418, 16
        %v2551 = vor.u32 %v2548, %v2549
        %v2552 = vrot.slane %v2548, 4
        %v2554 = vshrl.u32 %v2419, 16
        %v2556 = vrot.slane %v2554, 7
        %v2557 = vshll.u32 %v2419, 16
        %v2559 = vor.u32 %v2556, %v2557
        %v2560 = vsel %vm2425, %v2552, %v2559
        %v2561 = vrot.slane %v2556, 4
        %v2563 = vshrl.u32 %v2420, 16
        %v2565 = vrot.slane %v2563, 7
        %v2566 = vshll.u32 %v2420, 16
        %v2568 = vor.u32 %v2565, %v2566
        %v2569 = vrot.slane %v2565, 4
        %v2571 = vshrl.u32 %v2421, 16
        %v2573 = vrot.slane %v2571, 7
        %v2574 = vshll.u32 %v2421, 16
        %v2576 = vor.u32 %v2573, %v2574
        %v2577 = vsel %vm2425, %v2569, %v2576
        %v2578 = vrot.slane %v2573, 4
        %v2580 = vshrl.u32 %v2422, 16
        %v2582 = vrot.slane %v2580, 7
        %v2583 = vshll.u32 %v2422, 16
        %v2585 = vor.u32 %v2582, %v2583
        %v2586 = vrot.slane %v2582, 4
        %v2588 = vshrl.u32 %v2423, 16
        %v2590 = vrot.slane %v2588, 7
        %v2591 = vshll.u32 %v2423, 16
        %v2593 = vor.u32 %v2590, %v2591
        %v2594 = vsel %vm2425, %v2586, %v2593
        %v2595 = vrot.slane %v2590, 4
        %vm2626 = vcmask 1043456
        %vm2627 = vmand %vm2626, %vm275
        %v2628 = vld [vmem:[#allocation2] sm:$0xf]
        %v2629 = vsel %vm2627, %v2432, %v2628
        %2630 = vst [vmem:[#allocation2] sm:$0xf] %v2629
        %2631 = vst [vmem:[#allocation2 + $0x4] sm:$0xf] %v2441
        %v2632 = vld [vmem:[#allocation2 + $0x8] sm:$0x1]
        %v2633 = vsel %vm244, %v2442, %v2632
        %2634 = vst [vmem:[#allocation2 + $0x8] sm:$0x1] %v2633
        %v2635 = vld [vmem:[#allocation2 + $0xc] sm:$0xf]
        %v2636 = vsel %vm2627, %v2449, %v2635
        %2637 = vst [vmem:[#allocation2 + $0xc] sm:$0xf] %v2636
        %2638 = vst [vmem:[#allocation2 + $0x10] sm:$0xf] %v2458
        %v2639 = vld [vmem:[#allocation2 + $0x14] sm:$0x1]
        %v2640 = vsel %vm244, %v2459, %v2639
        %2641 = vst [vmem:[#allocation2 + $0x14] sm:$0x1] %v2640
        %v2642 = vld [vmem:[#allocation2 + $0x18] sm:$0xf]
        %v2643 = vsel %vm2627, %v2466, %v2642
        %2644 = vst [vmem:[#allocation2 + $0x18] sm:$0xf] %v2643
        %2645 = vst [vmem:[#allocation2 + $0x1c] sm:$0xf] %v2475
        %v2646 = vld [vmem:[#allocation2 + $0x20] sm:$0x1]
        %v2647 = vsel %vm244, %v2476, %v2646
        %2648 = vst [vmem:[#allocation2 + $0x20] sm:$0x1] %v2647
        %v2649 = vld [vmem:[#allocation2 + $0x24] sm:$0xf]
        %v2650 = vsel %vm2627, %v2483, %v2649
        %2651 = vst [vmem:[#allocation2 + $0x24] sm:$0xf] %v2650
        %2652 = vst [vmem:[#allocation2 + $0x28] sm:$0xf] %v2492
        %v2653 = vld [vmem:[#allocation2 + $0x2c] sm:$0x1]
        %v2654 = vsel %vm244, %v2493, %v2653
        %2655 = vst [vmem:[#allocation2 + $0x2c] sm:$0x1] %v2654
        %v2656 = vld [vmem:[#allocation2 + $0x30] sm:$0xf]
        %v2657 = vsel %vm2627, %v2500, %v2656
        %2658 = vst [vmem:[#allocation2 + $0x30] sm:$0xf] %v2657
        %2659 = vst [vmem:[#allocation2 + $0x34] sm:$0xf] %v2509
        %v2660 = vld [vmem:[#allocation2 + $0x38] sm:$0x1]
        %v2661 = vsel %vm244, %v2510, %v2660
        %2662 = vst [vmem:[#allocation2 + $0x38] sm:$0x1] %v2661
        %v2663 = vld [vmem:[#allocation2 + $0x3c] sm:$0xf]
        %v2664 = vsel %vm2627, %v2517, %v2663
        %2665 = vst [vmem:[#allocation2 + $0x3c] sm:$0xf] %v2664
        %2666 = vst [vmem:[#allocation2 + $0x40] sm:$0xf] %v2526
        %v2667 = vld [vmem:[#allocation2 + $0x44] sm:$0x1]
        %v2668 = vsel %vm244, %v2527, %v2667
        %2669 = vst [vmem:[#allocation2 + $0x44] sm:$0x1] %v2668
        %v2670 = vld [vmem:[#allocation2 + $0x48] sm:$0xf]
        %v2671 = vsel %vm2627, %v2534, %v2670
        %2672 = vst [vmem:[#allocation2 + $0x48] sm:$0xf] %v2671
        %2673 = vst [vmem:[#allocation2 + $0x4c] sm:$0xf] %v2543
        %v2674 = vld [vmem:[#allocation2 + $0x50] sm:$0x1]
        %v2675 = vsel %vm244, %v2544, %v2674
        %2676 = vst [vmem:[#allocation2 + $0x50] sm:$0x1] %v2675
        %v2677 = vld [vmem:[#allocation2 + $0x54] sm:$0xf]
        %v2678 = vsel %vm2627, %v2551, %v2677
        %2679 = vst [vmem:[#allocation2 + $0x54] sm:$0xf] %v2678
        %2680 = vst [vmem:[#allocation2 + $0x58] sm:$0xf] %v2560
        %v2681 = vld [vmem:[#allocation2 + $0x5c] sm:$0x1]
        %v2682 = vsel %vm244, %v2561, %v2681
        %2683 = vst [vmem:[#allocation2 + $0x5c] sm:$0x1] %v2682
        %v2684 = vld [vmem:[#allocation2 + $0x60] sm:$0xf]
        %v2685 = vsel %vm2627, %v2568, %v2684
        %2686 = vst [vmem:[#allocation2 + $0x60] sm:$0xf] %v2685
        %2687 = vst [vmem:[#allocation2 + $0x64] sm:$0xf] %v2577
        %v2688 = vld [vmem:[#allocation2 + $0x68] sm:$0x1]
        %v2689 = vsel %vm244, %v2578, %v2688
        %2690 = vst [vmem:[#allocation2 + $0x68] sm:$0x1] %v2689
        %v2691 = vld [vmem:[#allocation2 + $0x6c] sm:$0xf]
        %v2692 = vsel %vm2627, %v2585, %v2691
        %2693 = vst [vmem:[#allocation2 + $0x6c] sm:$0xf] %v2692
        %2694 = vst [vmem:[#allocation2 + $0x70] sm:$0xf] %v2594
        %v2695 = vld [vmem:[#allocation2 + $0x74] sm:$0x1]
        %v2696 = vsel %vm244, %v2595, %v2695
        %2697 = vst [vmem:[#allocation2 + $0x74] sm:$0x1] %v2696
        %p2698 = scmp.eq.s32.totalorder %s24, 0
        // Predicated region
        $region41: #{tpu_custom_call.1} parent=39 // pred_check
          %p2699 = pneg %p2698
        $region42: #{tpu_custom_call.1} parent=39 // pred_check_branch
          %2701 = sbr.rel (%p2699) target = $region44
        $region43: #{tpu_custom_call.1} parent=39 // pred_region
          %v2702 = vld [vmem:[#allocation2] sm:$0xf]
          %v2703 = vsel %vm2627, 0, %v2702
          %2704 = vst [vmem:[#allocation2] sm:$0xf] %v2703
          %2705 = vst [vmem:[#allocation2 + $0x4] sm:$0xf] 0
          %v2706 = vld [vmem:[#allocation2 + $0x8] sm:$0x1]
          %v2707 = vsel %vm244, 0, %v2706
          %2708 = vst [vmem:[#allocation2 + $0x8] sm:$0x1] %v2707
        $region44: #{tpu_custom_call.1} parent=39 // pred_fallthru
          _
        %p2709 = scmp.eq.s32.totalorder %s24, 1
        // Predicated region
        $region45: #{tpu_custom_call.1} parent=39 // pred_check
          %p2710 = pneg %p2709
        $region46: #{tpu_custom_call.1} parent=39 // pred_check_branch
          %2712 = sbr.rel (%p2710) target = $region48
        $region47: #{tpu_custom_call.1} parent=39 // pred_region
          %s2713 = scalar_lea.vmem [#allocation2], 108
          %v2714 = vld [vmem:[%s2713] sm:$0xf]
          %v2715 = vsel %vm2627, 0, %v2714
          %2716 = vst [vmem:[%s2713] sm:$0xf] %v2715
          %2717 = vst [vmem:[%s2713 + $0x4] sm:$0xf] 0
          %v2718 = vld [vmem:[%s2713 + $0x8] sm:$0x1]
          %v2719 = vsel %vm244, 0, %v2718
          %2720 = vst [vmem:[%s2713 + $0x8] sm:$0x1] %v2719
        $region48: #{tpu_custom_call.1} parent=39 // pred_fallthru
          _
        %v2721 = vld [vmem:[#allocation2] sm:$0xf]
        %v2722 = vld [vmem:[#allocation2 + $0x4] sm:$0xf]
        %v2723 = vld [vmem:[#allocation2 + $0xc] sm:$0xf]
        %v2724 = vld [vmem:[#allocation2 + $0x10] sm:$0xf]
        %v2725 = vld [vmem:[#allocation2 + $0x18] sm:$0xf]
        %v2726 = vld [vmem:[#allocation2 + $0x1c] sm:$0xf]
        %v2727 = vld [vmem:[#allocation2 + $0x24] sm:$0xf]
        %v2728 = vld [vmem:[#allocation2 + $0x28] sm:$0xf]
        %v2729 = vld [vmem:[#allocation2 + $0x30] sm:$0xf]
        %v2730 = vld [vmem:[#allocation2 + $0x34] sm:$0xf]
        %v2731 = vld [vmem:[#allocation2 + $0x3c] sm:$0xf]
        %v2732 = vld [vmem:[#allocation2 + $0x40] sm:$0xf]
        %v2733 = vld [vmem:[#allocation2 + $0x48] sm:$0xf]
        %v2734 = vld [vmem:[#allocation2 + $0x4c] sm:$0xf]
        %v2735 = vld [vmem:[#allocation2 + $0x54] sm:$0xf]
        %v2736 = vld [vmem:[#allocation2 + $0x58] sm:$0xf]
        %v2737 = vld [vmem:[%s3] sm:$0xf]
        %v2738 = vld [vmem:[%s3 + $0x4] sm:$0xf]
        %v2739 = vld [vmem:[%s3 + $0x8] sm:$0xf]
        %v2740 = vld [vmem:[%s3 + $0xc] sm:$0xf]
        %v2741 = vld [vmem:[%s3 + $0x10] sm:$0xf]
        %v2742 = vld [vmem:[%s3 + $0x14] sm:$0xf]
        %v2743 = vld [vmem:[%s3 + $0x18] sm:$0xf]
        %v2744 = vld [vmem:[%s3 + $0x1c] sm:$0xf]
        %v2745 = vld [vmem:[%s3 + $0x20] sm:$0xf]
        %v2746 = vld [vmem:[%s3 + $0x24] sm:$0xf]
        %v2747 = vld [vmem:[%s3 + $0x28] sm:$0xf]
        %v2748 = vld [vmem:[%s3 + $0x2c] sm:$0xf]
        %v2749 = vld [vmem:[%s3 + $0x30] sm:$0xf]
        %v2750 = vld [vmem:[%s3 + $0x34] sm:$0xf]
        %v2751 = vld [vmem:[%s3 + $0x38] sm:$0xf]
        %v2752 = vld [vmem:[%s3 + $0x3c] sm:$0xf]
        %v2753 = vld [vmem:[#allocation2 + $0x8] sm:$0x1]
        %v2754 = vld [vmem:[#allocation2 + $0x14] sm:$0x1]
        %v2755 = vld [vmem:[#allocation2 + $0x20] sm:$0x1]
        %v2756 = vld [vmem:[#allocation2 + $0x2c] sm:$0x1]
        %v2757 = vld [vmem:[#allocation2 + $0x38] sm:$0x1]
        %v2758 = vld [vmem:[#allocation2 + $0x44] sm:$0x1]
        %v2759 = vld [vmem:[#allocation2 + $0x50] sm:$0x1]
        %v2760 = vld [vmem:[#allocation2 + $0x5c] sm:$0x1]
        %vm2761 = vsmask.f32 3328
        %vm2762 = vsmask.f32 7440
        %vm2763 = vmor %vm2761, %vm2762
        %v2765 = vshrl.u32 %v2721, 16
        %v2767 = vrot.slane %v2765, 4
        %v2768 = vshll.u32 %v2721, 16
        %v2770 = vrot.slane %v2768, 5
        %v2771 = vor.u32 %v2767, %v2770
        %v2772 = vrot.slane %v2771, 4
        %v2774 = vshll.u32 %v2722, 16
        %v2776 = vrot.slane %v2774, 5
        %v2777 = vsel %vm2763, %v2772, %v2776
        %v2778 = vshrl.u32 %v2722, 16
        %v2780 = vrot.slane %v2778, 4
        %v2781 = vor.u32 %v2780, %v2776
        %v2782 = vrot.slane %v2781, 4
        %v2784 = vshll.u32 %v2753, 16
        %v2786 = vrot.slane %v2784, 5
        %v2787 = vsel %vm2763, %v2782, %v2786
        %v2789 = vshrl.u32 %v2723, 16
        %v2791 = vrot.slane %v2789, 4
        %v2792 = vshll.u32 %v2723, 16
        %v2794 = vrot.slane %v2792, 5
        %v2795 = vor.u32 %v2791, %v2794
        %v2796 = vrot.slane %v2795, 4
        %v2798 = vshll.u32 %v2724, 16
        %v2800 = vrot.slane %v2798, 5
        %v2801 = vsel %vm2763, %v2796, %v2800
        %v2802 = vshrl.u32 %v2724, 16
        %v2804 = vrot.slane %v2802, 4
        %v2805 = vor.u32 %v2804, %v2800
        %v2806 = vrot.slane %v2805, 4
        %v2808 = vshll.u32 %v2754, 16
        %v2810 = vrot.slane %v2808, 5
        %v2811 = vsel %vm2763, %v2806, %v2810
        %v2813 = vshrl.u32 %v2725, 16
        %v2815 = vrot.slane %v2813, 4
        %v2816 = vshll.u32 %v2725, 16
        %v2818 = vrot.slane %v2816, 5
        %v2819 = vor.u32 %v2815, %v2818
        %v2820 = vrot.slane %v2819, 4
        %v2822 = vshll.u32 %v2726, 16
        %v2824 = vrot.slane %v2822, 5
        %v2825 = vsel %vm2763, %v2820, %v2824
        %v2826 = vshrl.u32 %v2726, 16
        %v2828 = vrot.slane %v2826, 4
        %v2829 = vor.u32 %v2828, %v2824
        %v2830 = vrot.slane %v2829, 4
        %v2832 = vshll.u32 %v2755, 16
        %v2834 = vrot.slane %v2832, 5
        %v2835 = vsel %vm2763, %v2830, %v2834
        %v2837 = vshrl.u32 %v2727, 16
        %v2839 = vrot.slane %v2837, 4
        %v2840 = vshll.u32 %v2727, 16
        %v2842 = vrot.slane %v2840, 5
        %v2843 = vor.u32 %v2839, %v2842
        %v2844 = vrot.slane %v2843, 4
        %v2846 = vshll.u32 %v2728, 16
        %v2848 = vrot.slane %v2846, 5
        %v2849 = vsel %vm2763, %v2844, %v2848
        %v2850 = vshrl.u32 %v2728, 16
        %v2852 = vrot.slane %v2850, 4
        %v2853 = vor.u32 %v2852, %v2848
        %v2854 = vrot.slane %v2853, 4
        %v2856 = vshll.u32 %v2756, 16
        %v2858 = vrot.slane %v2856, 5
        %v2859 = vsel %vm2763, %v2854, %v2858
        %v2861 = vshrl.u32 %v2729, 16
        %v2863 = vrot.slane %v2861, 4
        %v2864 = vshll.u32 %v2729, 16
        %v2866 = vrot.slane %v2864, 5
        %v2867 = vor.u32 %v2863, %v2866
        %v2868 = vrot.slane %v2867, 4
        %v2870 = vshll.u32 %v2730, 16
        %v2872 = vrot.slane %v2870, 5
        %v2873 = vsel %vm2763, %v2868, %v2872
        %v2874 = vshrl.u32 %v2730, 16
        %v2876 = vrot.slane %v2874, 4
        %v2877 = vor.u32 %v2876, %v2872
        %v2878 = vrot.slane %v2877, 4
        %v2880 = vshll.u32 %v2757, 16
        %v2882 = vrot.slane %v2880, 5
        %v2883 = vsel %vm2763, %v2878, %v2882
        %v2885 = vshrl.u32 %v2731, 16
        %v2887 = vrot.slane %v2885, 4
        %v2888 = vshll.u32 %v2731, 16
        %v2890 = vrot.slane %v2888, 5
        %v2891 = vor.u32 %v2887, %v2890
        %v2892 = vrot.slane %v2891, 4
        %v2894 = vshll.u32 %v2732, 16
        %v2896 = vrot.slane %v2894, 5
        %v2897 = vsel %vm2763, %v2892, %v2896
        %v2898 = vshrl.u32 %v2732, 16
        %v2900 = vrot.slane %v2898, 4
        %v2901 = vor.u32 %v2900, %v2896
        %v2902 = vrot.slane %v2901, 4
        %v2904 = vshll.u32 %v2758, 16
        %v2906 = vrot.slane %v2904, 5
        %v2907 = vsel %vm2763, %v2902, %v2906
        %v2909 = vshrl.u32 %v2733, 16
        %v2911 = vrot.slane %v2909, 4
        %v2912 = vshll.u32 %v2733, 16
        %v2914 = vrot.slane %v2912, 5
        %v2915 = vor.u32 %v2911, %v2914
        %v2916 = vrot.slane %v2915, 4
        %v2918 = vshll.u32 %v2734, 16
        %v2920 = vrot.slane %v2918, 5
        %v2921 = vsel %vm2763, %v2916, %v2920
        %v2922 = vshrl.u32 %v2734, 16
        %v2924 = vrot.slane %v2922, 4
        %v2925 = vor.u32 %v2924, %v2920
        %v2926 = vrot.slane %v2925, 4
        %v2928 = vshll.u32 %v2759, 16
        %v2930 = vrot.slane %v2928, 5
        %v2931 = vsel %vm2763, %v2926, %v2930
        %v2933 = vshrl.u32 %v2735, 16
        %v2935 = vrot.slane %v2933, 4
        %v2936 = vshll.u32 %v2735, 16
        %v2938 = vrot.slane %v2936, 5
        %v2939 = vor.u32 %v2935, %v2938
        %v2940 = vrot.slane %v2939, 4
        %v2942 = vshll.u32 %v2736, 16
        %v2944 = vrot.slane %v2942, 5
        %v2945 = vsel %vm2763, %v2940, %v2944
        %v2946 = vshrl.u32 %v2736, 16
        %v2948 = vrot.slane %v2946, 4
        %v2949 = vor.u32 %v2948, %v2944
        %v2950 = vrot.slane %v2949, 4
        %v2952 = vshll.u32 %v2760, 16
        %v2954 = vrot.slane %v2952, 5
        %v2955 = vsel %vm2763, %v2950, %v2954
        %v2956 = vld [vmem:[%s3 + $0x40] sm:$0xf]
        %v2957 = vld [vmem:[%s3 + $0x44] sm:$0xf]
        %v2958 = vld [vmem:[%s3 + $0x48] sm:$0xf]
        %v2959 = vld [vmem:[%s3 + $0x4c] sm:$0xf]
        %v2960 = vld [vmem:[%s3 + $0x50] sm:$0xf]
        %v2961 = vld [vmem:[%s3 + $0x54] sm:$0xf]
        %v2962 = vld [vmem:[%s3 + $0x58] sm:$0xf]
        %v2963 = vld [vmem:[%s3 + $0x5c] sm:$0xf]
        %v2964 = vld [vmem:[%s3 + $0x60] sm:$0xf]
        %v2965 = vld [vmem:[%s3 + $0x64] sm:$0xf]
        %v2966 = vld [vmem:[%s3 + $0x68] sm:$0xf]
        %v2967 = vld [vmem:[%s3 + $0x6c] sm:$0xf]
        %v2968 = vld [vmem:[%s3 + $0x70] sm:$0xf]
        %v2969 = vld [vmem:[%s3 + $0x74] sm:$0xf]
        %v2970 = vld [vmem:[%s3 + $0x78] sm:$0xf]
        %v2971 = vld [vmem:[%s3 + $0x7c] sm:$0xf]
        %v2972 = vunpack.c.l.b16 %v2777
        %v2973 = vunpack.c.l.b16 %v2787
        %v2974 = vunpack.c.l.b16 %v2801
        %v2975 = vunpack.c.l.b16 %v2811
        %v2976 = vunpack.c.l.b16 %v2825
        %v2977 = vunpack.c.l.b16 %v2835
        %v2978 = vunpack.c.l.b16 %v2849
        %v2979 = vunpack.c.l.b16 %v2859
        %v2980 = vunpack.c.l.b16 %v2873
        %v2981 = vunpack.c.l.b16 %v2883
        %v2982 = vunpack.c.l.b16 %v2897
        %v2983 = vunpack.c.l.b16 %v2907
        %v2984 = vunpack.c.l.b16 %v2921
        %v2985 = vunpack.c.l.b16 %v2931
        %v2986 = vunpack.c.l.b16 %v2945
        %v2987 = vunpack.c.l.b16 %v2955
        %v2988 = vpack.c.b16 %v2973, %v2972
        %v2989 = vpack.c.b16 %v2975, %v2974
        %v2990 = vpack.c.b16 %v2977, %v2976
        %v2991 = vpack.c.b16 %v2979, %v2978
        %v2992 = vpack.c.b16 %v2981, %v2980
        %v2993 = vpack.c.b16 %v2983, %v2982
        %v2994 = vpack.c.b16 %v2985, %v2984
        %v2995 = vpack.c.b16 %v2987, %v2986
        %v3020 = vunpack.c.l.b16 %v2956
        %v3021 = vunpack.c.l.b16 %v2957
        %v3022 = vunpack.c.l.b16 %v2958
        %v3023 = vunpack.c.l.b16 %v2959
        %v3024 = vunpack.c.l.b16 %v2960
        %v3025 = vunpack.c.l.b16 %v2961
        %v3026 = vunpack.c.l.b16 %v2962
        %v3027 = vunpack.c.l.b16 %v2963
        %v3028 = vunpack.c.l.b16 %v2964
        %v3029 = vunpack.c.l.b16 %v2965
        %v3030 = vunpack.c.l.b16 %v2966
        %v3031 = vunpack.c.l.b16 %v2967
        %v3032 = vunpack.c.l.b16 %v2968
        %v3033 = vunpack.c.l.b16 %v2969
        %v3034 = vunpack.c.l.b16 %v2970
        %v3035 = vunpack.c.l.b16 %v2971
        %v3036 = vpack.c.b16 %v3021, %v3020
        %v3037 = vpack.c.b16 %v3023, %v3022
        %v3038 = vpack.c.b16 %v3025, %v3024
        %v3039 = vpack.c.b16 %v3027, %v3026
        %v3040 = vpack.c.b16 %v3029, %v3028
        %v3041 = vpack.c.b16 %v3031, %v3030
        %v3042 = vpack.c.b16 %v3033, %v3032
        %v3043 = vpack.c.b16 %v3035, %v3034
        %3052 = vmatprep.subr.bf16.mxu0 0
        %3053 = vmatpush1.bf16.msra.mxu0 %v3043
        %3054 = vmatprep.subr.bf16.mxu0 0
        %3055 = vmatpush1.bf16.msra.mxu0 %v3042
        %3056 = vmatprep.subr.bf16.mxu0 0
        %3057 = vmatpush1.bf16.msra.mxu0 %v3041
        %3058 = vmatprep.subr.bf16.mxu0 0
        %3059 = vmatpush1.bf16.msra.mxu0 %v3040
        %3060 = vmatprep.subr.bf16.mxu0 0
        %3061 = vmatpush1.bf16.msra.mxu0 %v3039
        %3062 = vmatprep.subr.bf16.mxu0 0
        %3063 = vmatpush1.bf16.msra.mxu0 %v3038
        %3064 = vmatprep.subr.bf16.mxu0 0
        %3065 = vmatpush1.bf16.msra.mxu0 %v3037
        %3066 = vmatprep.subr.bf16.mxu0 0
        %3067 = vmatpush1.bf16.msra.mxu0 %v3036
        %3068 = vmatprep.subr.bf16.mxu0 0
        %3069 = vmatpush2.bf16.msra.mxu0 0
        %3070 = vmatprep.subr.bf16.mxu0 0
        %3071 = vmatpush2.bf16.msra.mxu0 0
        %3072 = vmatprep.subr.bf16.mxu0 0
        %3073 = vmatpush2.bf16.msra.mxu0 0
        %3074 = vmatprep.subr.bf16.mxu0 0
        %3075 = vmatpush2.bf16.msra.mxu0 0
        %3076 = vmatprep.subr.bf16.mxu0 0
        %3077 = vmatpush2.bf16.msra.mxu0 0
        %3078 = vmatprep.subr.bf16.mxu0 0
        %3079 = vmatpush2.bf16.msra.mxu0 0
        %3080 = vmatprep.subr.bf16.mxu0 0
        %3081 = vmatpush2.bf16.msra.mxu0 0
        %3082 = vmatprep.subr.bf16.mxu0 0
        %3083 = vmatpush2.bf16.msra.mxu0 0
        %3084 = vmatprep.mubr.bf16.mxu0 0
        %3085 = vmatmul.mubr.bf16.gmra.mxu0 %v2988
        %v3086 = vpop.f32.mrf.mxu0
        %v3087 = vadd.f32 0.0, %v3086
        %v3088 = vpop.f32.mrf.mxu0
        %v3089 = vpop.f32.mrf.mxu0
        %v3090 = vadd.f32 0.0, %v3089
        %v3091 = vpop.f32.mrf.mxu0
        %3092 = vmatprep.mubr.bf16.mxu0 0
        %3093 = vmatmul.mubr.bf16.gmra.mxu0 %v2989
        %v3094 = vpop.f32.mrf.mxu0
        %v3095 = vadd.f32 0.0, %v3094
        %v3096 = vpop.f32.mrf.mxu0
        %v3097 = vpop.f32.mrf.mxu0
        %v3098 = vadd.f32 0.0, %v3097
        %v3099 = vpop.f32.mrf.mxu0
        %3100 = vmatprep.mubr.bf16.mxu0 0
        %3101 = vmatmul.mubr.bf16.gmra.mxu0 %v2990
        %v3102 = vpop.f32.mrf.mxu0
        %v3103 = vadd.f32 0.0, %v3102
        %v3104 = vpop.f32.mrf.mxu0
        %v3105 = vpop.f32.mrf.mxu0
        %v3106 = vadd.f32 0.0, %v3105
        %v3107 = vpop.f32.mrf.mxu0
        %3108 = vmatprep.mubr.bf16.mxu0 0
        %3109 = vmatmul.mubr.bf16.gmra.mxu0 %v2991
        %v3110 = vpop.f32.mrf.mxu0
        %v3111 = vadd.f32 0.0, %v3110
        %v3112 = vpop.f32.mrf.mxu0
        %v3113 = vpop.f32.mrf.mxu0
        %v3114 = vadd.f32 0.0, %v3113
        %v3115 = vpop.f32.mrf.mxu0
        %3116 = vmatprep.mubr.bf16.mxu0 0
        %3117 = vmatmul.mubr.bf16.gmra.mxu0 %v2992
        %v3118 = vpop.f32.mrf.mxu0
        %v3119 = vadd.f32 0.0, %v3118
        %v3120 = vpop.f32.mrf.mxu0
        %v3121 = vpop.f32.mrf.mxu0
        %v3122 = vadd.f32 0.0, %v3121
        %v3123 = vpop.f32.mrf.mxu0
        %3124 = vmatprep.mubr.bf16.mxu0 0
        %3125 = vmatmul.mubr.bf16.gmra.mxu0 %v2993
        %v3126 = vpop.f32.mrf.mxu0
        %v3127 = vadd.f32 0.0, %v3126
        %v3128 = vpop.f32.mrf.mxu0
        %v3129 = vpop.f32.mrf.mxu0
        %v3130 = vadd.f32 0.0, %v3129
        %v3131 = vpop.f32.mrf.mxu0
        %3132 = vmatprep.mubr.bf16.mxu0 0
        %3133 = vmatmul.mubr.bf16.gmra.mxu0 %v2994
        %v3134 = vpop.f32.mrf.mxu0
        %v3135 = vadd.f32 0.0, %v3134
        %v3136 = vpop.f32.mrf.mxu0
        %v3137 = vpop.f32.mrf.mxu0
        %v3138 = vadd.f32 0.0, %v3137
        %v3139 = vpop.f32.mrf.mxu0
        %3140 = vmatprep.mubr.bf16.mxu0 0
        %3141 = vmatmul.mubr.bf16.gmra.mxu0 %v2995
        %v3142 = vpop.f32.mrf.mxu0
        %v3143 = vadd.f32 0.0, %v3142
        %v3144 = vpop.f32.mrf.mxu0
        %v3145 = vpop.f32.mrf.mxu0
        %v3146 = vadd.f32 0.0, %v3145
        %v3147 = vpop.f32.mrf.mxu0
        %3148 = vdwg.mxu0
        %v3165 = vunpack.c.l.b16 %v2721
        %v3166 = vunpack.c.l.b16 %v2722
        %v3167 = vunpack.c.l.b16 %v2723
        %v3168 = vunpack.c.l.b16 %v2724
        %v3169 = vunpack.c.l.b16 %v2725
        %v3170 = vunpack.c.l.b16 %v2726
        %v3171 = vunpack.c.l.b16 %v2727
        %v3172 = vunpack.c.l.b16 %v2728
        %v3173 = vunpack.c.l.b16 %v2729
        %v3174 = vunpack.c.l.b16 %v2730
        %v3175 = vunpack.c.l.b16 %v2731
        %v3176 = vunpack.c.l.b16 %v2732
        %v3177 = vunpack.c.l.b16 %v2733
        %v3178 = vunpack.c.l.b16 %v2734
        %v3179 = vunpack.c.l.b16 %v2735
        %v3180 = vunpack.c.l.b16 %v2736
        %v3181 = vpack.c.b16 %v3166, %v3165
        %v3182 = vpack.c.b16 %v3168, %v3167
        %v3183 = vpack.c.b16 %v3170, %v3169
        %v3184 = vpack.c.b16 %v3172, %v3171
        %v3185 = vpack.c.b16 %v3174, %v3173
        %v3186 = vpack.c.b16 %v3176, %v3175
        %v3187 = vpack.c.b16 %v3178, %v3177
        %v3188 = vpack.c.b16 %v3180, %v3179
        %v3213 = vunpack.c.l.b16 %v2737
        %v3214 = vunpack.c.l.b16 %v2738
        %v3215 = vunpack.c.l.b16 %v2739
        %v3216 = vunpack.c.l.b16 %v2740
        %v3217 = vunpack.c.l.b16 %v2741
        %v3218 = vunpack.c.l.b16 %v2742
        %v3219 = vunpack.c.l.b16 %v2743
        %v3220 = vunpack.c.l.b16 %v2744
        %v3221 = vunpack.c.l.b16 %v2745
        %v3222 = vunpack.c.l.b16 %v2746
        %v3223 = vunpack.c.l.b16 %v2747
        %v3224 = vunpack.c.l.b16 %v2748
        %v3225 = vunpack.c.l.b16 %v2749
        %v3226 = vunpack.c.l.b16 %v2750
        %v3227 = vunpack.c.l.b16 %v2751
        %v3228 = vunpack.c.l.b16 %v2752
        %v3229 = vpack.c.b16 %v3214, %v3213
        %v3230 = vpack.c.b16 %v3216, %v3215
        %v3231 = vpack.c.b16 %v3218, %v3217
        %v3232 = vpack.c.b16 %v3220, %v3219
        %v3233 = vpack.c.b16 %v3222, %v3221
        %v3234 = vpack.c.b16 %v3224, %v3223
        %v3235 = vpack.c.b16 %v3226, %v3225
        %v3236 = vpack.c.b16 %v3228, %v3227
        %3245 = vmatprep.subr.bf16.mxu0 0
        %3246 = vmatpush1.bf16.msra.mxu0 %v3236
        %3247 = vmatprep.subr.bf16.mxu0 0
        %3248 = vmatpush1.bf16.msra.mxu0 %v3235
        %3249 = vmatprep.subr.bf16.mxu0 0
        %3250 = vmatpush1.bf16.msra.mxu0 %v3234
        %3251 = vmatprep.subr.bf16.mxu0 0
        %3252 = vmatpush1.bf16.msra.mxu0 %v3233
        %3253 = vmatprep.subr.bf16.mxu0 0
        %3254 = vmatpush1.bf16.msra.mxu0 %v3232
        %3255 = vmatprep.subr.bf16.mxu0 0
        %3256 = vmatpush1.bf16.msra.mxu0 %v3231
        %3257 = vmatprep.subr.bf16.mxu0 0
        %3258 = vmatpush1.bf16.msra.mxu0 %v3230
        %3259 = vmatprep.subr.bf16.mxu0 0
        %3260 = vmatpush1.bf16.msra.mxu0 %v3229
        %3261 = vmatprep.subr.bf16.mxu0 0
        %3262 = vmatpush2.bf16.msra.mxu0 0
        %3263 = vmatprep.subr.bf16.mxu0 0
        %3264 = vmatpush2.bf16.msra.mxu0 0
        %3265 = vmatprep.subr.bf16.mxu0 0
        %3266 = vmatpush2.bf16.msra.mxu0 0
        %3267 = vmatprep.subr.bf16.mxu0 0
        %3268 = vmatpush2.bf16.msra.mxu0 0
        %3269 = vmatprep.subr.bf16.mxu0 0
        %3270 = vmatpush2.bf16.msra.mxu0 0
        %3271 = vmatprep.subr.bf16.mxu0 0
        %3272 = vmatpush2.bf16.msra.mxu0 0
        %3273 = vmatprep.subr.bf16.mxu0 0
        %3274 = vmatpush2.bf16.msra.mxu0 0
        %3275 = vmatprep.subr.bf16.mxu0 0
        %3276 = vmatpush2.bf16.msra.mxu0 0
        %3277 = vmatprep.mubr.bf16.mxu0 0
        %3278 = vmatmul.mubr.bf16.gmra.mxu0 %v3181
        %v3279 = vpop.f32.mrf.mxu0
        %v3280 = vadd.f32 %v3087, %v3279
        %v3281 = vpop.f32.mrf.mxu0
        %v3282 = vpop.f32.mrf.mxu0
        %v3283 = vadd.f32 %v3090, %v3282
        %v3284 = vpop.f32.mrf.mxu0
        %3285 = vmatprep.mubr.bf16.mxu0 0
        %3286 = vmatmul.mubr.bf16.gmra.mxu0 %v3182
        %v3287 = vpop.f32.mrf.mxu0
        %v3288 = vadd.f32 %v3095, %v3287
        %v3289 = vpop.f32.mrf.mxu0
        %v3290 = vpop.f32.mrf.mxu0
        %v3291 = vadd.f32 %v3098, %v3290
        %v3292 = vpop.f32.mrf.mxu0
        %3293 = vmatprep.mubr.bf16.mxu0 0
        %3294 = vmatmul.mubr.bf16.gmra.mxu0 %v3183
        %v3295 = vpop.f32.mrf.mxu0
        %v3296 = vadd.f32 %v3103, %v3295
        %v3297 = vpop.f32.mrf.mxu0
        %v3298 = vpop.f32.mrf.mxu0
        %v3299 = vadd.f32 %v3106, %v3298
        %v3300 = vpop.f32.mrf.mxu0
        %3301 = vmatprep.mubr.bf16.mxu0 0
        %3302 = vmatmul.mubr.bf16.gmra.mxu0 %v3184
        %v3303 = vpop.f32.mrf.mxu0
        %v3304 = vadd.f32 %v3111, %v3303
        %v3305 = vpop.f32.mrf.mxu0
        %v3306 = vpop.f32.mrf.mxu0
        %v3307 = vadd.f32 %v3114, %v3306
        %v3308 = vpop.f32.mrf.mxu0
        %3309 = vmatprep.mubr.bf16.mxu0 0
        %3310 = vmatmul.mubr.bf16.gmra.mxu0 %v3185
        %v3311 = vpop.f32.mrf.mxu0
        %v3312 = vadd.f32 %v3119, %v3311
        %v3313 = vpop.f32.mrf.mxu0
        %v3314 = vpop.f32.mrf.mxu0
        %v3315 = vadd.f32 %v3122, %v3314
        %v3316 = vpop.f32.mrf.mxu0
        %3317 = vmatprep.mubr.bf16.mxu0 0
        %3318 = vmatmul.mubr.bf16.gmra.mxu0 %v3186
        %v3319 = vpop.f32.mrf.mxu0
        %v3320 = vadd.f32 %v3127, %v3319
        %v3321 = vpop.f32.mrf.mxu0
        %v3322 = vpop.f32.mrf.mxu0
        %v3323 = vadd.f32 %v3130, %v3322
        %v3324 = vpop.f32.mrf.mxu0
        %3325 = vmatprep.mubr.bf16.mxu0 0
        %3326 = vmatmul.mubr.bf16.gmra.mxu0 %v3187
        %v3327 = vpop.f32.mrf.mxu0
        %v3328 = vadd.f32 %v3135, %v3327
        %v3329 = vpop.f32.mrf.mxu0
        %v3330 = vpop.f32.mrf.mxu0
        %v3331 = vadd.f32 %v3138, %v3330
        %v3332 = vpop.f32.mrf.mxu0
        %3333 = vmatprep.mubr.bf16.mxu0 0
        %3334 = vmatmul.mubr.bf16.gmra.mxu0 %v3188
        %v3335 = vpop.f32.mrf.mxu0
        %v3336 = vadd.f32 %v3143, %v3335
        %v3337 = vpop.f32.mrf.mxu0
        %v3338 = vpop.f32.mrf.mxu0
        %v3339 = vadd.f32 %v3146, %v3338
        %v3340 = vpop.f32.mrf.mxu0
        %3341 = vdwg.mxu0
        %v3342 = vld [vmem:[#allocation2] sm:$0xe]
        %v3343 = vld [vmem:[#allocation2 + $0xc] sm:$0xe]
        %v3344 = vld [vmem:[#allocation2 + $0x18] sm:$0xe]
        %v3345 = vld [vmem:[#allocation2 + $0x24] sm:$0xe]
        %v3346 = vld [vmem:[#allocation2 + $0x30] sm:$0xe]
        %v3347 = vld [vmem:[#allocation2 + $0x3c] sm:$0xe]
        %v3348 = vld [vmem:[#allocation2 + $0x48] sm:$0xe]
        %v3349 = vld [vmem:[#allocation2 + $0x54] sm:$0xe]
        %vm3366 = vcmask 1042432
        %vm3367 = vcmask 1046532
        %vm3368 = vmor %vm3366, %vm3367
        %v3369 = vrot.slane %v3342, 5
        %v3370 = vrot.slane %v3369, 4
        %v3371 = vrot.slane %v2722, 5
        %v3372 = vsel %vm3368, %v3370, %v3371
        %v3373 = vrot.slane %v3371, 4
        %v3374 = vrot.slane %v2753, 5
        %v3375 = vsel %vm3368, %v3373, %v3374
        %v3376 = vrot.slane %v3343, 5
        %v3377 = vrot.slane %v3376, 4
        %v3378 = vrot.slane %v2724, 5
        %v3379 = vsel %vm3368, %v3377, %v3378
        %v3380 = vrot.slane %v3378, 4
        %v3381 = vrot.slane %v2754, 5
        %v3382 = vsel %vm3368, %v3380, %v3381
        %v3383 = vrot.slane %v3344, 5
        %v3384 = vrot.slane %v3383, 4
        %v3385 = vrot.slane %v2726, 5
        %v3386 = vsel %vm3368, %v3384, %v3385
        %v3387 = vrot.slane %v3385, 4
        %v3388 = vrot.slane %v2755, 5
        %v3389 = vsel %vm3368, %v3387, %v3388
        %v3390 = vrot.slane %v3345, 5
        %v3391 = vrot.slane %v3390, 4
        %v3392 = vrot.slane %v2728, 5
        %v3393 = vsel %vm3368, %v3391, %v3392
        %v3394 = vrot.slane %v3392, 4
        %v3395 = vrot.slane %v2756, 5
        %v3396 = vsel %vm3368, %v3394, %v3395
        %v3397 = vrot.slane %v3346, 5
        %v3398 = vrot.slane %v3397, 4
        %v3399 = vrot.slane %v2730, 5
        %v3400 = vsel %vm3368, %v3398, %v3399
        %v3401 = vrot.slane %v3399, 4
        %v3402 = vrot.slane %v2757, 5
        %v3403 = vsel %vm3368, %v3401, %v3402
        %v3404 = vrot.slane %v3347, 5
        %v3405 = vrot.slane %v3404, 4
        %v3406 = vrot.slane %v2732, 5
        %v3407 = vsel %vm3368, %v3405, %v3406
        %v3408 = vrot.slane %v3406, 4
        %v3409 = vrot.slane %v2758, 5
        %v3410 = vsel %vm3368, %v3408, %v3409
        %v3411 = vrot.slane %v3348, 5
        %v3412 = vrot.slane %v3411, 4
        %v3413 = vrot.slane %v2734, 5
        %v3414 = vsel %vm3368, %v3412, %v3413
        %v3415 = vrot.slane %v3413, 4
        %v3416 = vrot.slane %v2759, 5
        %v3417 = vsel %vm3368, %v3415, %v3416
        %v3418 = vrot.slane %v3349, 5
        %v3419 = vrot.slane %v3418, 4
        %v3420 = vrot.slane %v2736, 5
        %v3421 = vsel %vm3368, %v3419, %v3420
        %v3422 = vrot.slane %v3420, 4
        %v3423 = vrot.slane %v2760, 5
        %v3424 = vsel %vm3368, %v3422, %v3423
        %v3425 = vld [vmem:[%s3 + $0x80] sm:$0xf]
        %v3426 = vld [vmem:[%s3 + $0x84] sm:$0xf]
        %v3427 = vld [vmem:[%s3 + $0x88] sm:$0xf]
        %v3428 = vld [vmem:[%s3 + $0x8c] sm:$0xf]
        %v3429 = vld [vmem:[%s3 + $0x90] sm:$0xf]
        %v3430 = vld [vmem:[%s3 + $0x94] sm:$0xf]
        %v3431 = vld [vmem:[%s3 + $0x98] sm:$0xf]
        %v3432 = vld [vmem:[%s3 + $0x9c] sm:$0xf]
        %v3433 = vld [vmem:[%s3 + $0xa0] sm:$0xf]
        %v3434 = vld [vmem:[%s3 + $0xa4] sm:$0xf]
        %v3435 = vld [vmem:[%s3 + $0xa8] sm:$0xf]
        %v3436 = vld [vmem:[%s3 + $0xac] sm:$0xf]
        %v3437 = vld [vmem:[%s3 + $0xb0] sm:$0xf]
        %v3438 = vld [vmem:[%s3 + $0xb4] sm:$0xf]
        %v3439 = vld [vmem:[%s3 + $0xb8] sm:$0xf]
        %v3440 = vld [vmem:[%s3 + $0xbc] sm:$0xf]
        %v3441 = vunpack.c.l.b16 %v3372
        %v3442 = vunpack.c.l.b16 %v3375
        %v3443 = vunpack.c.l.b16 %v3379
        %v3444 = vunpack.c.l.b16 %v3382
        %v3445 = vunpack.c.l.b16 %v3386
        %v3446 = vunpack.c.l.b16 %v3389
        %v3447 = vunpack.c.l.b16 %v3393
        %v3448 = vunpack.c.l.b16 %v3396
        %v3449 = vunpack.c.l.b16 %v3400
        %v3450 = vunpack.c.l.b16 %v3403
        %v3451 = vunpack.c.l.b16 %v3407
        %v3452 = vunpack.c.l.b16 %v3410
        %v3453 = vunpack.c.l.b16 %v3414
        %v3454 = vunpack.c.l.b16 %v3417
        %v3455 = vunpack.c.l.b16 %v3421
        %v3456 = vunpack.c.l.b16 %v3424
        %v3457 = vpack.c.b16 %v3442, %v3441
        %v3458 = vpack.c.b16 %v3444, %v3443
        %v3459 = vpack.c.b16 %v3446, %v3445
        %v3460 = vpack.c.b16 %v3448, %v3447
        %v3461 = vpack.c.b16 %v3450, %v3449
        %v3462 = vpack.c.b16 %v3452, %v3451
        %v3463 = vpack.c.b16 %v3454, %v3453
        %v3464 = vpack.c.b16 %v3456, %v3455
        %v3489 = vunpack.c.l.b16 %v3425
        %v3490 = vunpack.c.l.b16 %v3426
        %v3491 = vunpack.c.l.b16 %v3427
        %v3492 = vunpack.c.l.b16 %v3428
        %v3493 = vunpack.c.l.b16 %v3429
        %v3494 = vunpack.c.l.b16 %v3430
        %v3495 = vunpack.c.l.b16 %v3431
        %v3496 = vunpack.c.l.b16 %v3432
        %v3497 = vunpack.c.l.b16 %v3433
        %v3498 = vunpack.c.l.b16 %v3434
        %v3499 = vunpack.c.l.b16 %v3435
        %v3500 = vunpack.c.l.b16 %v3436
        %v3501 = vunpack.c.l.b16 %v3437
        %v3502 = vunpack.c.l.b16 %v3438
        %v3503 = vunpack.c.l.b16 %v3439
        %v3504 = vunpack.c.l.b16 %v3440
        %v3505 = vpack.c.b16 %v3490, %v3489
        %v3506 = vpack.c.b16 %v3492, %v3491
        %v3507 = vpack.c.b16 %v3494, %v3493
        %v3508 = vpack.c.b16 %v3496, %v3495
        %v3509 = vpack.c.b16 %v3498, %v3497
        %v3510 = vpack.c.b16 %v3500, %v3499
        %v3511 = vpack.c.b16 %v3502, %v3501
        %v3512 = vpack.c.b16 %v3504, %v3503
        %3521 = vmatprep.subr.bf16.mxu0 0
        %3522 = vmatpush1.bf16.msra.mxu0 %v3512
        %3523 = vmatprep.subr.bf16.mxu0 0
        %3524 = vmatpush1.bf16.msra.mxu0 %v3511
        %3525 = vmatprep.subr.bf16.mxu0 0
        %3526 = vmatpush1.bf16.msra.mxu0 %v3510
        %3527 = vmatprep.subr.bf16.mxu0 0
        %3528 = vmatpush1.bf16.msra.mxu0 %v3509
        %3529 = vmatprep.subr.bf16.mxu0 0
        %3530 = vmatpush1.bf16.msra.mxu0 %v3508
        %3531 = vmatprep.subr.bf16.mxu0 0
        %3532 = vmatpush1.bf16.msra.mxu0 %v3507
        %3533 = vmatprep.subr.bf16.mxu0 0
        %3534 = vmatpush1.bf16.msra.mxu0 %v3506
        %3535 = vmatprep.subr.bf16.mxu0 0
        %3536 = vmatpush1.bf16.msra.mxu0 %v3505
        %3537 = vmatprep.subr.bf16.mxu0 0
        %3538 = vmatpush2.bf16.msra.mxu0 0
        %3539 = vmatprep.subr.bf16.mxu0 0
        %3540 = vmatpush2.bf16.msra.mxu0 0
        %3541 = vmatprep.subr.bf16.mxu0 0
        %3542 = vmatpush2.bf16.msra.mxu0 0
        %3543 = vmatprep.subr.bf16.mxu0 0
        %3544 = vmatpush2.bf16.msra.mxu0 0
        %3545 = vmatprep.subr.bf16.mxu0 0
        %3546 = vmatpush2.bf16.msra.mxu0 0
        %3547 = vmatprep.subr.bf16.mxu0 0
        %3548 = vmatpush2.bf16.msra.mxu0 0
        %3549 = vmatprep.subr.bf16.mxu0 0
        %3550 = vmatpush2.bf16.msra.mxu0 0
        %3551 = vmatprep.subr.bf16.mxu0 0
        %3552 = vmatpush2.bf16.msra.mxu0 0
        %3553 = vmatprep.mubr.bf16.mxu0 0
        %3554 = vmatmul.mubr.bf16.gmra.mxu0 %v3457
        %v3555 = vpop.f32.mrf.mxu0
        %v3556 = vadd.f32 0.0, %v3555
        %v3557 = vpop.f32.mrf.mxu0
        %v3558 = vpop.f32.mrf.mxu0
        %v3559 = vadd.f32 0.0, %v3558
        %v3560 = vpop.f32.mrf.mxu0
        %3561 = vmatprep.mubr.bf16.mxu0 0
        %3562 = vmatmul.mubr.bf16.gmra.mxu0 %v3458
        %v3563 = vpop.f32.mrf.mxu0
        %v3564 = vadd.f32 0.0, %v3563
        %v3565 = vpop.f32.mrf.mxu0
        %v3566 = vpop.f32.mrf.mxu0
        %v3567 = vadd.f32 0.0, %v3566
        %v3568 = vpop.f32.mrf.mxu0
        %3569 = vmatprep.mubr.bf16.mxu0 0
        %3570 = vmatmul.mubr.bf16.gmra.mxu0 %v3459
        %v3571 = vpop.f32.mrf.mxu0
        %v3572 = vadd.f32 0.0, %v3571
        %v3573 = vpop.f32.mrf.mxu0
        %v3574 = vpop.f32.mrf.mxu0
        %v3575 = vadd.f32 0.0, %v3574
        %v3576 = vpop.f32.mrf.mxu0
        %3577 = vmatprep.mubr.bf16.mxu0 0
        %3578 = vmatmul.mubr.bf16.gmra.mxu0 %v3460
        %v3579 = vpop.f32.mrf.mxu0
        %v3580 = vadd.f32 0.0, %v3579
        %v3581 = vpop.f32.mrf.mxu0
        %v3582 = vpop.f32.mrf.mxu0
        %v3583 = vadd.f32 0.0, %v3582
        %v3584 = vpop.f32.mrf.mxu0
        %3585 = vmatprep.mubr.bf16.mxu0 0
        %3586 = vmatmul.mubr.bf16.gmra.mxu0 %v3461
        %v3587 = vpop.f32.mrf.mxu0
        %v3588 = vadd.f32 0.0, %v3587
        %v3589 = vpop.f32.mrf.mxu0
        %v3590 = vpop.f32.mrf.mxu0
        %v3591 = vadd.f32 0.0, %v3590
        %v3592 = vpop.f32.mrf.mxu0
        %3593 = vmatprep.mubr.bf16.mxu0 0
        %3594 = vmatmul.mubr.bf16.gmra.mxu0 %v3462
        %v3595 = vpop.f32.mrf.mxu0
        %v3596 = vadd.f32 0.0, %v3595
        %v3597 = vpop.f32.mrf.mxu0
        %v3598 = vpop.f32.mrf.mxu0
        %v3599 = vadd.f32 0.0, %v3598
        %v3600 = vpop.f32.mrf.mxu0
        %3601 = vmatprep.mubr.bf16.mxu0 0
        %3602 = vmatmul.mubr.bf16.gmra.mxu0 %v3463
        %v3603 = vpop.f32.mrf.mxu0
        %v3604 = vadd.f32 0.0, %v3603
        %v3605 = vpop.f32.mrf.mxu0
        %v3606 = vpop.f32.mrf.mxu0
        %v3607 = vadd.f32 0.0, %v3606
        %v3608 = vpop.f32.mrf.mxu0
        %3609 = vmatprep.mubr.bf16.mxu0 0
        %3610 = vmatmul.mubr.bf16.gmra.mxu0 %v3464
        %v3611 = vpop.f32.mrf.mxu0
        %v3612 = vadd.f32 0.0, %v3611
        %v3613 = vpop.f32.mrf.mxu0
        %v3614 = vpop.f32.mrf.mxu0
        %v3615 = vadd.f32 0.0, %v3614
        %v3616 = vpop.f32.mrf.mxu0
        %3617 = vdwg.mxu0
        %v3618 = vadd.f32 %v3280, %v3556
        %v3619 = vadd.f32 %v3283, %v3559
        %v3620 = vadd.f32 %v3288, %v3564
        %v3621 = vadd.f32 %v3291, %v3567
        %v3622 = vadd.f32 %v3296, %v3572
        %v3623 = vadd.f32 %v3299, %v3575
        %v3624 = vadd.f32 %v3304, %v3580
        %v3625 = vadd.f32 %v3307, %v3583
        %v3626 = vadd.f32 %v3312, %v3588
        %v3627 = vadd.f32 %v3315, %v3591
        %v3628 = vadd.f32 %v3320, %v3596
        %v3629 = vadd.f32 %v3323, %v3599
        %v3630 = vadd.f32 %v3328, %v3604
        %v3631 = vadd.f32 %v3331, %v3607
        %v3632 = vadd.f32 %v3336, %v3612
        %v3633 = vadd.f32 %v3339, %v3615
        %s3634 = scalar_lea.vmem [#allocation2], 12
        %v3635 = vld [vmem:[%s3634] sm:$0xf]
        %v3636 = vld [vmem:[%s3634 + $0x4] sm:$0xf]
        %v3637 = vld [vmem:[%s3634 + $0xc] sm:$0xf]
        %v3638 = vld [vmem:[%s3634 + $0x10] sm:$0xf]
        %v3639 = vld [vmem:[%s3634 + $0x18] sm:$0xf]
        %v3640 = vld [vmem:[%s3634 + $0x1c] sm:$0xf]
        %v3641 = vld [vmem:[%s3634 + $0x24] sm:$0xf]
        %v3642 = vld [vmem:[%s3634 + $0x28] sm:$0xf]
        %v3643 = vld [vmem:[%s3634 + $0x30] sm:$0xf]
        %v3644 = vld [vmem:[%s3634 + $0x34] sm:$0xf]
        %v3645 = vld [vmem:[%s3634 + $0x3c] sm:$0xf]
        %v3646 = vld [vmem:[%s3634 + $0x40] sm:$0xf]
        %v3647 = vld [vmem:[%s3634 + $0x48] sm:$0xf]
        %v3648 = vld [vmem:[%s3634 + $0x4c] sm:$0xf]
        %v3649 = vld [vmem:[%s3634 + $0x54] sm:$0xf]
        %v3650 = vld [vmem:[%s3634 + $0x58] sm:$0xf]
        %v3651 = vld [vmem:[%s3 + $0xc0] sm:$0xf]
        %v3652 = vld [vmem:[%s3 + $0xc4] sm:$0xf]
        %v3653 = vld [vmem:[%s3 + $0xc8] sm:$0xf]
        %v3654 = vld [vmem:[%s3 + $0xcc] sm:$0xf]
        %v3655 = vld [vmem:[%s3 + $0xd0] sm:$0xf]
        %v3656 = vld [vmem:[%s3 + $0xd4] sm:$0xf]
        %v3657 = vld [vmem:[%s3 + $0xd8] sm:$0xf]
        %v3658 = vld [vmem:[%s3 + $0xdc] sm:$0xf]
        %v3659 = vld [vmem:[%s3 + $0xe0] sm:$0xf]
        %v3660 = vld [vmem:[%s3 + $0xe4] sm:$0xf]
        %v3661 = vld [vmem:[%s3 + $0xe8] sm:$0xf]
        %v3662 = vld [vmem:[%s3 + $0xec] sm:$0xf]
        %v3663 = vld [vmem:[%s3 + $0xf0] sm:$0xf]
        %v3664 = vld [vmem:[%s3 + $0xf4] sm:$0xf]
        %v3665 = vld [vmem:[%s3 + $0xf8] sm:$0xf]
        %v3666 = vld [vmem:[%s3 + $0xfc] sm:$0xf]
        %v3683 = vunpack.c.l.b16 %v3635
        %v3684 = vunpack.c.l.b16 %v3636
        %v3685 = vunpack.c.l.b16 %v3637
        %v3686 = vunpack.c.l.b16 %v3638
        %v3687 = vunpack.c.l.b16 %v3639
        %v3688 = vunpack.c.l.b16 %v3640
        %v3689 = vunpack.c.l.b16 %v3641
        %v3690 = vunpack.c.l.b16 %v3642
        %v3691 = vunpack.c.l.b16 %v3643
        %v3692 = vunpack.c.l.b16 %v3644
        %v3693 = vunpack.c.l.b16 %v3645
        %v3694 = vunpack.c.l.b16 %v3646
        %v3695 = vunpack.c.l.b16 %v3647
        %v3696 = vunpack.c.l.b16 %v3648
        %v3697 = vunpack.c.l.b16 %v3649
        %v3698 = vunpack.c.l.b16 %v3650
        %v3699 = vpack.c.b16 %v3684, %v3683
        %v3700 = vpack.c.b16 %v3686, %v3685
        %v3701 = vpack.c.b16 %v3688, %v3687
        %v3702 = vpack.c.b16 %v3690, %v3689
        %v3703 = vpack.c.b16 %v3692, %v3691
        %v3704 = vpack.c.b16 %v3694, %v3693
        %v3705 = vpack.c.b16 %v3696, %v3695
        %v3706 = vpack.c.b16 %v3698, %v3697
        %v3731 = vunpack.c.l.b16 %v3651
        %v3732 = vunpack.c.l.b16 %v3652
        %v3733 = vunpack.c.l.b16 %v3653
        %v3734 = vunpack.c.l.b16 %v3654
        %v3735 = vunpack.c.l.b16 %v3655
        %v3736 = vunpack.c.l.b16 %v3656
        %v3737 = vunpack.c.l.b16 %v3657
        %v3738 = vunpack.c.l.b16 %v3658
        %v3739 = vunpack.c.l.b16 %v3659
        %v3740 = vunpack.c.l.b16 %v3660
        %v3741 = vunpack.c.l.b16 %v3661
        %v3742 = vunpack.c.l.b16 %v3662
        %v3743 = vunpack.c.l.b16 %v3663
        %v3744 = vunpack.c.l.b16 %v3664
        %v3745 = vunpack.c.l.b16 %v3665
        %v3746 = vunpack.c.l.b16 %v3666
        %v3747 = vpack.c.b16 %v3732, %v3731
        %v3748 = vpack.c.b16 %v3734, %v3733
        %v3749 = vpack.c.b16 %v3736, %v3735
        %v3750 = vpack.c.b16 %v3738, %v3737
        %v3751 = vpack.c.b16 %v3740, %v3739
        %v3752 = vpack.c.b16 %v3742, %v3741
        %v3753 = vpack.c.b16 %v3744, %v3743
        %v3754 = vpack.c.b16 %v3746, %v3745
        %3763 = vmatprep.subr.bf16.mxu0 0
        %3764 = vmatpush1.bf16.msra.mxu0 %v3754
        %3765 = vmatprep.subr.bf16.mxu0 0
        %3766 = vmatpush1.bf16.msra.mxu0 %v3753
        %3767 = vmatprep.subr.bf16.mxu0 0
        %3768 = vmatpush1.bf16.msra.mxu0 %v3752
        %3769 = vmatprep.subr.bf16.mxu0 0
        %3770 = vmatpush1.bf16.msra.mxu0 %v3751
        %3771 = vmatprep.subr.bf16.mxu0 0
        %3772 = vmatpush1.bf16.msra.mxu0 %v3750
        %3773 = vmatprep.subr.bf16.mxu0 0
        %3774 = vmatpush1.bf16.msra.mxu0 %v3749
        %3775 = vmatprep.subr.bf16.mxu0 0
        %3776 = vmatpush1.bf16.msra.mxu0 %v3748
        %3777 = vmatprep.subr.bf16.mxu0 0
        %3778 = vmatpush1.bf16.msra.mxu0 %v3747
        %3779 = vmatprep.subr.bf16.mxu0 0
        %3780 = vmatpush2.bf16.msra.mxu0 0
        %3781 = vmatprep.subr.bf16.mxu0 0
        %3782 = vmatpush2.bf16.msra.mxu0 0
        %3783 = vmatprep.subr.bf16.mxu0 0
        %3784 = vmatpush2.bf16.msra.mxu0 0
        %3785 = vmatprep.subr.bf16.mxu0 0
        %3786 = vmatpush2.bf16.msra.mxu0 0
        %3787 = vmatprep.subr.bf16.mxu0 0
        %3788 = vmatpush2.bf16.msra.mxu0 0
        %3789 = vmatprep.subr.bf16.mxu0 0
        %3790 = vmatpush2.bf16.msra.mxu0 0
        %3791 = vmatprep.subr.bf16.mxu0 0
        %3792 = vmatpush2.bf16.msra.mxu0 0
        %3793 = vmatprep.subr.bf16.mxu0 0
        %3794 = vmatpush2.bf16.msra.mxu0 0
        %3795 = vmatprep.mubr.bf16.mxu0 0
        %3796 = vmatmul.mubr.bf16.gmra.mxu0 %v3699
        %v3797 = vpop.f32.mrf.mxu0
        %v3798 = vadd.f32 0.0, %v3797
        %v3799 = vpop.f32.mrf.mxu0
        %v3800 = vpop.f32.mrf.mxu0
        %v3801 = vadd.f32 0.0, %v3800
        %v3802 = vpop.f32.mrf.mxu0
        %3803 = vmatprep.mubr.bf16.mxu0 0
        %3804 = vmatmul.mubr.bf16.gmra.mxu0 %v3700
        %v3805 = vpop.f32.mrf.mxu0
        %v3806 = vadd.f32 0.0, %v3805
        %v3807 = vpop.f32.mrf.mxu0
        %v3808 = vpop.f32.mrf.mxu0
        %v3809 = vadd.f32 0.0, %v3808
        %v3810 = vpop.f32.mrf.mxu0
        %3811 = vmatprep.mubr.bf16.mxu0 0
        %3812 = vmatmul.mubr.bf16.gmra.mxu0 %v3701
        %v3813 = vpop.f32.mrf.mxu0
        %v3814 = vadd.f32 0.0, %v3813
        %v3815 = vpop.f32.mrf.mxu0
        %v3816 = vpop.f32.mrf.mxu0
        %v3817 = vadd.f32 0.0, %v3816
        %v3818 = vpop.f32.mrf.mxu0
        %3819 = vmatprep.mubr.bf16.mxu0 0
        %3820 = vmatmul.mubr.bf16.gmra.mxu0 %v3702
        %v3821 = vpop.f32.mrf.mxu0
        %v3822 = vadd.f32 0.0, %v3821
        %v3823 = vpop.f32.mrf.mxu0
        %v3824 = vpop.f32.mrf.mxu0
        %v3825 = vadd.f32 0.0, %v3824
        %v3826 = vpop.f32.mrf.mxu0
        %3827 = vmatprep.mubr.bf16.mxu0 0
        %3828 = vmatmul.mubr.bf16.gmra.mxu0 %v3703
        %v3829 = vpop.f32.mrf.mxu0
        %v3830 = vadd.f32 0.0, %v3829
        %v3831 = vpop.f32.mrf.mxu0
        %v3832 = vpop.f32.mrf.mxu0
        %v3833 = vadd.f32 0.0, %v3832
        %v3834 = vpop.f32.mrf.mxu0
        %3835 = vmatprep.mubr.bf16.mxu0 0
        %3836 = vmatmul.mubr.bf16.gmra.mxu0 %v3704
        %v3837 = vpop.f32.mrf.mxu0
        %v3838 = vadd.f32 0.0, %v3837
        %v3839 = vpop.f32.mrf.mxu0
        %v3840 = vpop.f32.mrf.mxu0
        %v3841 = vadd.f32 0.0, %v3840
        %v3842 = vpop.f32.mrf.mxu0
        %3843 = vmatprep.mubr.bf16.mxu0 0
        %3844 = vmatmul.mubr.bf16.gmra.mxu0 %v3705
        %v3845 = vpop.f32.mrf.mxu0
        %v3846 = vadd.f32 0.0, %v3845
        %v3847 = vpop.f32.mrf.mxu0
        %v3848 = vpop.f32.mrf.mxu0
        %v3849 = vadd.f32 0.0, %v3848
        %v3850 = vpop.f32.mrf.mxu0
        %3851 = vmatprep.mubr.bf16.mxu0 0
        %3852 = vmatmul.mubr.bf16.gmra.mxu0 %v3706
        %v3853 = vpop.f32.mrf.mxu0
        %v3854 = vadd.f32 0.0, %v3853
        %v3855 = vpop.f32.mrf.mxu0
        %v3856 = vpop.f32.mrf.mxu0
        %v3857 = vadd.f32 0.0, %v3856
        %v3858 = vpop.f32.mrf.mxu0
        %3859 = vdwg.mxu0
        %v3860 = vadd.f32 %v3618, %v3798
        %v3861 = vadd.f32 %v3619, %v3801
        %v3862 = vadd.f32 %v3620, %v3806
        %v3863 = vadd.f32 %v3621, %v3809
        %v3864 = vadd.f32 %v3622, %v3814
        %v3865 = vadd.f32 %v3623, %v3817
        %v3866 = vadd.f32 %v3624, %v3822
        %v3867 = vadd.f32 %v3625, %v3825
        %v3868 = vadd.f32 %v3626, %v3830
        %v3869 = vadd.f32 %v3627, %v3833
        %v3870 = vadd.f32 %v3628, %v3838
        %v3871 = vadd.f32 %v3629, %v3841
        %v3872 = vadd.f32 %v3630, %v3846
        %v3873 = vadd.f32 %v3631, %v3849
        %v3874 = vadd.f32 %v3632, %v3854
        %v3875 = vadd.f32 %v3633, %v3857
        %v3876 = vld [vmem:[%s3634] sm:$0xf]
        %v3877 = vld [vmem:[%s3634 + $0x4] sm:$0xf]
        %v3878 = vld [vmem:[%s3634 + $0x8] sm:$0x1]
        %v3879 = vld [vmem:[%s3634 + $0xc] sm:$0xf]
        %v3880 = vld [vmem:[%s3634 + $0x10] sm:$0xf]
        %v3881 = vld [vmem:[%s3634 + $0x14] sm:$0x1]
        %v3882 = vld [vmem:[%s3634 + $0x18] sm:$0xf]
        %v3883 = vld [vmem:[%s3634 + $0x1c] sm:$0xf]
        %v3884 = vld [vmem:[%s3634 + $0x20] sm:$0x1]
        %v3885 = vld [vmem:[%s3634 + $0x24] sm:$0xf]
        %v3886 = vld [vmem:[%s3634 + $0x28] sm:$0xf]
        %v3887 = vld [vmem:[%s3634 + $0x2c] sm:$0x1]
        %v3888 = vld [vmem:[%s3634 + $0x30] sm:$0xf]
        %v3889 = vld [vmem:[%s3634 + $0x34] sm:$0xf]
        %v3890 = vld [vmem:[%s3634 + $0x38] sm:$0x1]
        %v3891 = vld [vmem:[%s3634 + $0x3c] sm:$0xf]
        %v3892 = vld [vmem:[%s3634 + $0x40] sm:$0xf]
        %v3893 = vld [vmem:[%s3634 + $0x44] sm:$0x1]
        %v3894 = vld [vmem:[%s3634 + $0x48] sm:$0xf]
        %v3895 = vld [vmem:[%s3634 + $0x4c] sm:$0xf]
        %v3896 = vld [vmem:[%s3634 + $0x50] sm:$0x1]
        %v3897 = vld [vmem:[%s3634 + $0x54] sm:$0xf]
        %v3898 = vld [vmem:[%s3634 + $0x58] sm:$0xf]
        %v3899 = vld [vmem:[%s3634 + $0x5c] sm:$0x1]
        %v3901 = vshrl.u32 %v3876, 16
        %v3903 = vrot.slane %v3901, 4
        %v3904 = vshll.u32 %v3876, 16
        %v3906 = vrot.slane %v3904, 5
        %v3907 = vor.u32 %v3903, %v3906
        %v3908 = vrot.slane %v3907, 4
        %v3910 = vshll.u32 %v3877, 16
        %v3912 = vrot.slane %v3910, 5
        %v3913 = vsel %vm2763, %v3908, %v3912
        %v3914 = vshrl.u32 %v3877, 16
        %v3916 = vrot.slane %v3914, 4
        %v3917 = vor.u32 %v3916, %v3912
        %v3918 = vrot.slane %v3917, 4
        %v3920 = vshll.u32 %v3878, 16
        %v3922 = vrot.slane %v3920, 5
        %v3923 = vsel %vm2763, %v3918, %v3922
        %v3925 = vshrl.u32 %v3879, 16
        %v3927 = vrot.slane %v3925, 4
        %v3928 = vshll.u32 %v3879, 16
        %v3930 = vrot.slane %v3928, 5
        %v3931 = vor.u32 %v3927, %v3930
        %v3932 = vrot.slane %v3931, 4
        %v3934 = vshll.u32 %v3880, 16
        %v3936 = vrot.slane %v3934, 5
        %v3937 = vsel %vm2763, %v3932, %v3936
        %v3938 = vshrl.u32 %v3880, 16
        %v3940 = vrot.slane %v3938, 4
        %v3941 = vor.u32 %v3940, %v3936
        %v3942 = vrot.slane %v3941, 4
        %v3944 = vshll.u32 %v3881, 16
        %v3946 = vrot.slane %v3944, 5
        %v3947 = vsel %vm2763, %v3942, %v3946
        %v3949 = vshrl.u32 %v3882, 16
        %v3951 = vrot.slane %v3949, 4
        %v3952 = vshll.u32 %v3882, 16
        %v3954 = vrot.slane %v3952, 5
        %v3955 = vor.u32 %v3951, %v3954
        %v3956 = vrot.slane %v3955, 4
        %v3958 = vshll.u32 %v3883, 16
        %v3960 = vrot.slane %v3958, 5
        %v3961 = vsel %vm2763, %v3956, %v3960
        %v3962 = vshrl.u32 %v3883, 16
        %v3964 = vrot.slane %v3962, 4
        %v3965 = vor.u32 %v3964, %v3960
        %v3966 = vrot.slane %v3965, 4
        %v3968 = vshll.u32 %v3884, 16
        %v3970 = vrot.slane %v3968, 5
        %v3971 = vsel %vm2763, %v3966, %v3970
        %v3973 = vshrl.u32 %v3885, 16
        %v3975 = vrot.slane %v3973, 4
        %v3976 = vshll.u32 %v3885, 16
        %v3978 = vrot.slane %v3976, 5
        %v3979 = vor.u32 %v3975, %v3978
        %v3980 = vrot.slane %v3979, 4
        %v3982 = vshll.u32 %v3886, 16
        %v3984 = vrot.slane %v3982, 5
        %v3985 = vsel %vm2763, %v3980, %v3984
        %v3986 = vshrl.u32 %v3886, 16
        %v3988 = vrot.slane %v3986, 4
        %v3989 = vor.u32 %v3988, %v3984
        %v3990 = vrot.slane %v3989, 4
        %v3992 = vshll.u32 %v3887, 16
        %v3994 = vrot.slane %v3992, 5
        %v3995 = vsel %vm2763, %v3990, %v3994
        %v3997 = vshrl.u32 %v3888, 16
        %v3999 = vrot.slane %v3997, 4
        %v4000 = vshll.u32 %v3888, 16
        %v4002 = vrot.slane %v4000, 5
        %v4003 = vor.u32 %v3999, %v4002
        %v4004 = vrot.slane %v4003, 4
        %v4006 = vshll.u32 %v3889, 16
        %v4008 = vrot.slane %v4006, 5
        %v4009 = vsel %vm2763, %v4004, %v4008
        %v4010 = vshrl.u32 %v3889, 16
        %v4012 = vrot.slane %v4010, 4
        %v4013 = vor.u32 %v4012, %v4008
        %v4014 = vrot.slane %v4013, 4
        %v4016 = vshll.u32 %v3890, 16
        %v4018 = vrot.slane %v4016, 5
        %v4019 = vsel %vm2763, %v4014, %v4018
        %v4021 = vshrl.u32 %v3891, 16
        %v4023 = vrot.slane %v4021, 4
        %v4024 = vshll.u32 %v3891, 16
        %v4026 = vrot.slane %v4024, 5
        %v4027 = vor.u32 %v4023, %v4026
        %v4028 = vrot.slane %v4027, 4
        %v4030 = vshll.u32 %v3892, 16
        %v4032 = vrot.slane %v4030, 5
        %v4033 = vsel %vm2763, %v4028, %v4032
        %v4034 = vshrl.u32 %v3892, 16
        %v4036 = vrot.slane %v4034, 4
        %v4037 = vor.u32 %v4036, %v4032
        %v4038 = vrot.slane %v4037, 4
        %v4040 = vshll.u32 %v3893, 16
        %v4042 = vrot.slane %v4040, 5
        %v4043 = vsel %vm2763, %v4038, %v4042
        %v4045 = vshrl.u32 %v3894, 16
        %v4047 = vrot.slane %v4045, 4
        %v4048 = vshll.u32 %v3894, 16
        %v4050 = vrot.slane %v4048, 5
        %v4051 = vor.u32 %v4047, %v4050
        %v4052 = vrot.slane %v4051, 4
        %v4054 = vshll.u32 %v3895, 16
        %v4056 = vrot.slane %v4054, 5
        %v4057 = vsel %vm2763, %v4052, %v4056
        %v4058 = vshrl.u32 %v3895, 16
        %v4060 = vrot.slane %v4058, 4
        %v4061 = vor.u32 %v4060, %v4056
        %v4062 = vrot.slane %v4061, 4
        %v4064 = vshll.u32 %v3896, 16
        %v4066 = vrot.slane %v4064, 5
        %v4067 = vsel %vm2763, %v4062, %v4066
        %v4069 = vshrl.u32 %v3897, 16
        %v4071 = vrot.slane %v4069, 4
        %v4072 = vshll.u32 %v3897, 16
        %v4074 = vrot.slane %v4072, 5
        %v4075 = vor.u32 %v4071, %v4074
        %v4076 = vrot.slane %v4075, 4
        %v4078 = vshll.u32 %v3898, 16
        %v4080 = vrot.slane %v4078, 5
        %v4081 = vsel %vm2763, %v4076, %v4080
        %v4082 = vshrl.u32 %v3898, 16
        %v4084 = vrot.slane %v4082, 4
        %v4085 = vor.u32 %v4084, %v4080
        %v4086 = vrot.slane %v4085, 4
        %v4088 = vshll.u32 %v3899, 16
        %v4090 = vrot.slane %v4088, 5
        %v4091 = vsel %vm2763, %v4086, %v4090
        %v4092 = vld [vmem:[%s3 + $0x100] sm:$0xf]
        %v4093 = vld [vmem:[%s3 + $0x104] sm:$0xf]
        %v4094 = vld [vmem:[%s3 + $0x108] sm:$0xf]
        %v4095 = vld [vmem:[%s3 + $0x10c] sm:$0xf]
        %v4096 = vld [vmem:[%s3 + $0x110] sm:$0xf]
        %v4097 = vld [vmem:[%s3 + $0x114] sm:$0xf]
        %v4098 = vld [vmem:[%s3 + $0x118] sm:$0xf]
        %v4099 = vld [vmem:[%s3 + $0x11c] sm:$0xf]
        %v4100 = vld [vmem:[%s3 + $0x120] sm:$0xf]
        %v4101 = vld [vmem:[%s3 + $0x124] sm:$0xf]
        %v4102 = vld [vmem:[%s3 + $0x128] sm:$0xf]
        %v4103 = vld [vmem:[%s3 + $0x12c] sm:$0xf]
        %v4104 = vld [vmem:[%s3 + $0x130] sm:$0xf]
        %v4105 = vld [vmem:[%s3 + $0x134] sm:$0xf]
        %v4106 = vld [vmem:[%s3 + $0x138] sm:$0xf]
        %v4107 = vld [vmem:[%s3 + $0x13c] sm:$0xf]
        %v4108 = vunpack.c.l.b16 %v3913
        %v4109 = vunpack.c.l.b16 %v3923
        %v4110 = vunpack.c.l.b16 %v3937
        %v4111 = vunpack.c.l.b16 %v3947
        %v4112 = vunpack.c.l.b16 %v3961
        %v4113 = vunpack.c.l.b16 %v3971
        %v4114 = vunpack.c.l.b16 %v3985
        %v4115 = vunpack.c.l.b16 %v3995
        %v4116 = vunpack.c.l.b16 %v4009
        %v4117 = vunpack.c.l.b16 %v4019
        %v4118 = vunpack.c.l.b16 %v4033
        %v4119 = vunpack.c.l.b16 %v4043
        %v4120 = vunpack.c.l.b16 %v4057
        %v4121 = vunpack.c.l.b16 %v4067
        %v4122 = vunpack.c.l.b16 %v4081
        %v4123 = vunpack.c.l.b16 %v4091
        %v4124 = vpack.c.b16 %v4109, %v4108
        %v4125 = vpack.c.b16 %v4111, %v4110
        %v4126 = vpack.c.b16 %v4113, %v4112
        %v4127 = vpack.c.b16 %v4115, %v4114
        %v4128 = vpack.c.b16 %v4117, %v4116
        %v4129 = vpack.c.b16 %v4119, %v4118
        %v4130 = vpack.c.b16 %v4121, %v4120
        %v4131 = vpack.c.b16 %v4123, %v4122
        %v4156 = vunpack.c.l.b16 %v4092
        %v4157 = vunpack.c.l.b16 %v4093
        %v4158 = vunpack.c.l.b16 %v4094
        %v4159 = vunpack.c.l.b16 %v4095
        %v4160 = vunpack.c.l.b16 %v4096
        %v4161 = vunpack.c.l.b16 %v4097
        %v4162 = vunpack.c.l.b16 %v4098
        %v4163 = vunpack.c.l.b16 %v4099
        %v4164 = vunpack.c.l.b16 %v4100
        %v4165 = vunpack.c.l.b16 %v4101
        %v4166 = vunpack.c.l.b16 %v4102
        %v4167 = vunpack.c.l.b16 %v4103
        %v4168 = vunpack.c.l.b16 %v4104
        %v4169 = vunpack.c.l.b16 %v4105
        %v4170 = vunpack.c.l.b16 %v4106
        %v4171 = vunpack.c.l.b16 %v4107
        %v4172 = vpack.c.b16 %v4157, %v4156
        %v4173 = vpack.c.b16 %v4159, %v4158
        %v4174 = vpack.c.b16 %v4161, %v4160
        %v4175 = vpack.c.b16 %v4163, %v4162
        %v4176 = vpack.c.b16 %v4165, %v4164
        %v4177 = vpack.c.b16 %v4167, %v4166
        %v4178 = vpack.c.b16 %v4169, %v4168
        %v4179 = vpack.c.b16 %v4171, %v4170
        %4188 = vmatprep.subr.bf16.mxu0 0
        %4189 = vmatpush1.bf16.msra.mxu0 %v4179
        %4190 = vmatprep.subr.bf16.mxu0 0
        %4191 = vmatpush1.bf16.msra.mxu0 %v4178
        %4192 = vmatprep.subr.bf16.mxu0 0
        %4193 = vmatpush1.bf16.msra.mxu0 %v4177
        %4194 = vmatprep.subr.bf16.mxu0 0
        %4195 = vmatpush1.bf16.msra.mxu0 %v4176
        %4196 = vmatprep.subr.bf16.mxu0 0
        %4197 = vmatpush1.bf16.msra.mxu0 %v4175
        %4198 = vmatprep.subr.bf16.mxu0 0
        %4199 = vmatpush1.bf16.msra.mxu0 %v4174
        %4200 = vmatprep.subr.bf16.mxu0 0
        %4201 = vmatpush1.bf16.msra.mxu0 %v4173
        %4202 = vmatprep.subr.bf16.mxu0 0
        %4203 = vmatpush1.bf16.msra.mxu0 %v4172
        %4204 = vmatprep.subr.bf16.mxu0 0
        %4205 = vmatpush2.bf16.msra.mxu0 0
        %4206 = vmatprep.subr.bf16.mxu0 0
        %4207 = vmatpush2.bf16.msra.mxu0 0
        %4208 = vmatprep.subr.bf16.mxu0 0
        %4209 = vmatpush2.bf16.msra.mxu0 0
        %4210 = vmatprep.subr.bf16.mxu0 0
        %4211 = vmatpush2.bf16.msra.mxu0 0
        %4212 = vmatprep.subr.bf16.mxu0 0
        %4213 = vmatpush2.bf16.msra.mxu0 0
        %4214 = vmatprep.subr.bf16.mxu0 0
        %4215 = vmatpush2.bf16.msra.mxu0 0
        %4216 = vmatprep.subr.bf16.mxu0 0
        %4217 = vmatpush2.bf16.msra.mxu0 0
        %4218 = vmatprep.subr.bf16.mxu0 0
        %4219 = vmatpush2.bf16.msra.mxu0 0
        %4220 = vmatprep.mubr.bf16.mxu0 0
        %4221 = vmatmul.mubr.bf16.gmra.mxu0 %v4124
        %v4222 = vpop.f32.mrf.mxu0
        %v4223 = vadd.f32 0.0, %v4222
        %v4224 = vpop.f32.mrf.mxu0
        %v4225 = vpop.f32.mrf.mxu0
        %v4226 = vadd.f32 0.0, %v4225
        %v4227 = vpop.f32.mrf.mxu0
        %4228 = vmatprep.mubr.bf16.mxu0 0
        %4229 = vmatmul.mubr.bf16.gmra.mxu0 %v4125
        %v4230 = vpop.f32.mrf.mxu0
        %v4231 = vadd.f32 0.0, %v4230
        %v4232 = vpop.f32.mrf.mxu0
        %v4233 = vpop.f32.mrf.mxu0
        %v4234 = vadd.f32 0.0, %v4233
        %v4235 = vpop.f32.mrf.mxu0
        %4236 = vmatprep.mubr.bf16.mxu0 0
        %4237 = vmatmul.mubr.bf16.gmra.mxu0 %v4126
        %v4238 = vpop.f32.mrf.mxu0
        %v4239 = vadd.f32 0.0, %v4238
        %v4240 = vpop.f32.mrf.mxu0
        %v4241 = vpop.f32.mrf.mxu0
        %v4242 = vadd.f32 0.0, %v4241
        %v4243 = vpop.f32.mrf.mxu0
        %4244 = vmatprep.mubr.bf16.mxu0 0
        %4245 = vmatmul.mubr.bf16.gmra.mxu0 %v4127
        %v4246 = vpop.f32.mrf.mxu0
        %v4247 = vadd.f32 0.0, %v4246
        %v4248 = vpop.f32.mrf.mxu0
        %v4249 = vpop.f32.mrf.mxu0
        %v4250 = vadd.f32 0.0, %v4249
        %v4251 = vpop.f32.mrf.mxu0
        %4252 = vmatprep.mubr.bf16.mxu0 0
        %4253 = vmatmul.mubr.bf16.gmra.mxu0 %v4128
        %v4254 = vpop.f32.mrf.mxu0
        %v4255 = vadd.f32 0.0, %v4254
        %v4256 = vpop.f32.mrf.mxu0
        %v4257 = vpop.f32.mrf.mxu0
        %v4258 = vadd.f32 0.0, %v4257
        %v4259 = vpop.f32.mrf.mxu0
        %4260 = vmatprep.mubr.bf16.mxu0 0
        %4261 = vmatmul.mubr.bf16.gmra.mxu0 %v4129
        %v4262 = vpop.f32.mrf.mxu0
        %v4263 = vadd.f32 0.0, %v4262
        %v4264 = vpop.f32.mrf.mxu0
        %v4265 = vpop.f32.mrf.mxu0
        %v4266 = vadd.f32 0.0, %v4265
        %v4267 = vpop.f32.mrf.mxu0
        %4268 = vmatprep.mubr.bf16.mxu0 0
        %4269 = vmatmul.mubr.bf16.gmra.mxu0 %v4130
        %v4270 = vpop.f32.mrf.mxu0
        %v4271 = vadd.f32 0.0, %v4270
        %v4272 = vpop.f32.mrf.mxu0
        %v4273 = vpop.f32.mrf.mxu0
        %v4274 = vadd.f32 0.0, %v4273
        %v4275 = vpop.f32.mrf.mxu0
        %4276 = vmatprep.mubr.bf16.mxu0 0
        %4277 = vmatmul.mubr.bf16.gmra.mxu0 %v4131
        %v4278 = vpop.f32.mrf.mxu0
        %v4279 = vadd.f32 0.0, %v4278
        %v4280 = vpop.f32.mrf.mxu0
        %v4281 = vpop.f32.mrf.mxu0
        %v4282 = vadd.f32 0.0, %v4281
        %v4283 = vpop.f32.mrf.mxu0
        %4284 = vdwg.mxu0
        %v4285 = vadd.f32 %v3860, %v4223
        %v4286 = vadd.f32 %v3861, %v4226
        %v4287 = vadd.f32 %v3862, %v4231
        %v4288 = vadd.f32 %v3863, %v4234
        %v4289 = vadd.f32 %v3864, %v4239
        %v4290 = vadd.f32 %v3865, %v4242
        %v4291 = vadd.f32 %v3866, %v4247
        %v4292 = vadd.f32 %v3867, %v4250
        %v4293 = vadd.f32 %v3868, %v4255
        %v4294 = vadd.f32 %v3869, %v4258
        %v4295 = vadd.f32 %v3870, %v4263
        %v4296 = vadd.f32 %v3871, %v4266
        %v4297 = vadd.f32 %v3872, %v4271
        %v4298 = vadd.f32 %v3873, %v4274
        %v4299 = vadd.f32 %v3874, %v4279
        %v4300 = vadd.f32 %v3875, %v4282
        %v4301 = vld [vmem:[%s3634] sm:$0xe]
        %v4302 = vld [vmem:[%s3634 + $0xc] sm:$0xe]
        %v4303 = vld [vmem:[%s3634 + $0x18] sm:$0xe]
        %v4304 = vld [vmem:[%s3634 + $0x24] sm:$0xe]
        %v4305 = vld [vmem:[%s3634 + $0x30] sm:$0xe]
        %v4306 = vld [vmem:[%s3634 + $0x3c] sm:$0xe]
        %v4307 = vld [vmem:[%s3634 + $0x48] sm:$0xe]
        %v4308 = vld [vmem:[%s3634 + $0x54] sm:$0xe]
        %v4333 = vrot.slane %v4301, 5
        %v4334 = vrot.slane %v4333, 4
        %v4335 = vrot.slane %v3877, 5
        %v4336 = vsel %vm3368, %v4334, %v4335
        %v4337 = vrot.slane %v4335, 4
        %v4338 = vrot.slane %v3878, 5
        %v4339 = vsel %vm3368, %v4337, %v4338
        %v4340 = vrot.slane %v4302, 5
        %v4341 = vrot.slane %v4340, 4
        %v4342 = vrot.slane %v3880, 5
        %v4343 = vsel %vm3368, %v4341, %v4342
        %v4344 = vrot.slane %v4342, 4
        %v4345 = vrot.slane %v3881, 5
        %v4346 = vsel %vm3368, %v4344, %v4345
        %v4347 = vrot.slane %v4303, 5
        %v4348 = vrot.slane %v4347, 4
        %v4349 = vrot.slane %v3883, 5
        %v4350 = vsel %vm3368, %v4348, %v4349
        %v4351 = vrot.slane %v4349, 4
        %v4352 = vrot.slane %v3884, 5
        %v4353 = vsel %vm3368, %v4351, %v4352
        %v4354 = vrot.slane %v4304, 5
        %v4355 = vrot.slane %v4354, 4
        %v4356 = vrot.slane %v3886, 5
        %v4357 = vsel %vm3368, %v4355, %v4356
        %v4358 = vrot.slane %v4356, 4
        %v4359 = vrot.slane %v3887, 5
        %v4360 = vsel %vm3368, %v4358, %v4359
        %v4361 = vrot.slane %v4305, 5
        %v4362 = vrot.slane %v4361, 4
        %v4363 = vrot.slane %v3889, 5
        %v4364 = vsel %vm3368, %v4362, %v4363
        %v4365 = vrot.slane %v4363, 4
        %v4366 = vrot.slane %v3890, 5
        %v4367 = vsel %vm3368, %v4365, %v4366
        %v4368 = vrot.slane %v4306, 5
        %v4369 = vrot.slane %v4368, 4
        %v4370 = vrot.slane %v3892, 5
        %v4371 = vsel %vm3368, %v4369, %v4370
        %v4372 = vrot.slane %v4370, 4
        %v4373 = vrot.slane %v3893, 5
        %v4374 = vsel %vm3368, %v4372, %v4373
        %v4375 = vrot.slane %v4307, 5
        %v4376 = vrot.slane %v4375, 4
        %v4377 = vrot.slane %v3895, 5
        %v4378 = vsel %vm3368, %v4376, %v4377
        %v4379 = vrot.slane %v4377, 4
        %v4380 = vrot.slane %v3896, 5
        %v4381 = vsel %vm3368, %v4379, %v4380
        %v4382 = vrot.slane %v4308, 5
        %v4383 = vrot.slane %v4382, 4
        %v4384 = vrot.slane %v3898, 5
        %v4385 = vsel %vm3368, %v4383, %v4384
        %v4386 = vrot.slane %v4384, 4
        %v4387 = vrot.slane %v3899, 5
        %v4388 = vsel %vm3368, %v4386, %v4387
        %v4389 = vld [vmem:[%s3 + $0x140] sm:$0xf]
        %v4390 = vld [vmem:[%s3 + $0x144] sm:$0xf]
        %v4391 = vld [vmem:[%s3 + $0x148] sm:$0xf]
        %v4392 = vld [vmem:[%s3 + $0x14c] sm:$0xf]
        %v4393 = vld [vmem:[%s3 + $0x150] sm:$0xf]
        %v4394 = vld [vmem:[%s3 + $0x154] sm:$0xf]
        %v4395 = vld [vmem:[%s3 + $0x158] sm:$0xf]
        %v4396 = vld [vmem:[%s3 + $0x15c] sm:$0xf]
        %v4397 = vld [vmem:[%s3 + $0x160] sm:$0xf]
        %v4398 = vld [vmem:[%s3 + $0x164] sm:$0xf]
        %v4399 = vld [vmem:[%s3 + $0x168] sm:$0xf]
        %v4400 = vld [vmem:[%s3 + $0x16c] sm:$0xf]
        %v4401 = vld [vmem:[%s3 + $0x170] sm:$0xf]
        %v4402 = vld [vmem:[%s3 + $0x174] sm:$0xf]
        %v4403 = vld [vmem:[%s3 + $0x178] sm:$0xf]
        %v4404 = vld [vmem:[%s3 + $0x17c] sm:$0xf]
        %v4405 = vunpack.c.l.b16 %v4336
        %v4406 = vunpack.c.l.b16 %v4339
        %v4407 = vunpack.c.l.b16 %v4343
        %v4408 = vunpack.c.l.b16 %v4346
        %v4409 = vunpack.c.l.b16 %v4350
        %v4410 = vunpack.c.l.b16 %v4353
        %v4411 = vunpack.c.l.b16 %v4357
        %v4412 = vunpack.c.l.b16 %v4360
        %v4413 = vunpack.c.l.b16 %v4364
        %v4414 = vunpack.c.l.b16 %v4367
        %v4415 = vunpack.c.l.b16 %v4371
        %v4416 = vunpack.c.l.b16 %v4374
        %v4417 = vunpack.c.l.b16 %v4378
        %v4418 = vunpack.c.l.b16 %v4381
        %v4419 = vunpack.c.l.b16 %v4385
        %v4420 = vunpack.c.l.b16 %v4388
        %v4421 = vpack.c.b16 %v4406, %v4405
        %v4422 = vpack.c.b16 %v4408, %v4407
        %v4423 = vpack.c.b16 %v4410, %v4409
        %v4424 = vpack.c.b16 %v4412, %v4411
        %v4425 = vpack.c.b16 %v4414, %v4413
        %v4426 = vpack.c.b16 %v4416, %v4415
        %v4427 = vpack.c.b16 %v4418, %v4417
        %v4428 = vpack.c.b16 %v4420, %v4419
        %v4453 = vunpack.c.l.b16 %v4389
        %v4454 = vunpack.c.l.b16 %v4390
        %v4455 = vunpack.c.l.b16 %v4391
        %v4456 = vunpack.c.l.b16 %v4392
        %v4457 = vunpack.c.l.b16 %v4393
        %v4458 = vunpack.c.l.b16 %v4394
        %v4459 = vunpack.c.l.b16 %v4395
        %v4460 = vunpack.c.l.b16 %v4396
        %v4461 = vunpack.c.l.b16 %v4397
        %v4462 = vunpack.c.l.b16 %v4398
        %v4463 = vunpack.c.l.b16 %v4399
        %v4464 = vunpack.c.l.b16 %v4400
        %v4465 = vunpack.c.l.b16 %v4401
        %v4466 = vunpack.c.l.b16 %v4402
        %v4467 = vunpack.c.l.b16 %v4403
        %v4468 = vunpack.c.l.b16 %v4404
        %v4469 = vpack.c.b16 %v4454, %v4453
        %v4470 = vpack.c.b16 %v4456, %v4455
        %v4471 = vpack.c.b16 %v4458, %v4457
        %v4472 = vpack.c.b16 %v4460, %v4459
        %v4473 = vpack.c.b16 %v4462, %v4461
        %v4474 = vpack.c.b16 %v4464, %v4463
        %v4475 = vpack.c.b16 %v4466, %v4465
        %v4476 = vpack.c.b16 %v4468, %v4467
        %4485 = vmatprep.subr.bf16.mxu0 0
        %4486 = vmatpush1.bf16.msra.mxu0 %v4476
        %4487 = vmatprep.subr.bf16.mxu0 0
        %4488 = vmatpush1.bf16.msra.mxu0 %v4475
        %4489 = vmatprep.subr.bf16.mxu0 0
        %4490 = vmatpush1.bf16.msra.mxu0 %v4474
        %4491 = vmatprep.subr.bf16.mxu0 0
        %4492 = vmatpush1.bf16.msra.mxu0 %v4473
        %4493 = vmatprep.subr.bf16.mxu0 0
        %4494 = vmatpush1.bf16.msra.mxu0 %v4472
        %4495 = vmatprep.subr.bf16.mxu0 0
        %4496 = vmatpush1.bf16.msra.mxu0 %v4471
        %4497 = vmatprep.subr.bf16.mxu0 0
        %4498 = vmatpush1.bf16.msra.mxu0 %v4470
        %4499 = vmatprep.subr.bf16.mxu0 0
        %4500 = vmatpush1.bf16.msra.mxu0 %v4469
        %4501 = vmatprep.subr.bf16.mxu0 0
        %4502 = vmatpush2.bf16.msra.mxu0 0
        %4503 = vmatprep.subr.bf16.mxu0 0
        %4504 = vmatpush2.bf16.msra.mxu0 0
        %4505 = vmatprep.subr.bf16.mxu0 0
        %4506 = vmatpush2.bf16.msra.mxu0 0
        %4507 = vmatprep.subr.bf16.mxu0 0
        %4508 = vmatpush2.bf16.msra.mxu0 0
        %4509 = vmatprep.subr.bf16.mxu0 0
        %4510 = vmatpush2.bf16.msra.mxu0 0
        %4511 = vmatprep.subr.bf16.mxu0 0
        %4512 = vmatpush2.bf16.msra.mxu0 0
        %4513 = vmatprep.subr.bf16.mxu0 0
        %4514 = vmatpush2.bf16.msra.mxu0 0
        %4515 = vmatprep.subr.bf16.mxu0 0
        %4516 = vmatpush2.bf16.msra.mxu0 0
        %4517 = vmatprep.mubr.bf16.mxu0 0
        %4518 = vmatmul.mubr.bf16.gmra.mxu0 %v4421
        %v4519 = vpop.f32.mrf.mxu0
        %v4520 = vadd.f32 0.0, %v4519
        %v4521 = vpop.f32.mrf.mxu0
        %v4522 = vpop.f32.mrf.mxu0
        %v4523 = vadd.f32 0.0, %v4522
        %v4524 = vpop.f32.mrf.mxu0
        %4525 = vmatprep.mubr.bf16.mxu0 0
        %4526 = vmatmul.mubr.bf16.gmra.mxu0 %v4422
        %v4527 = vpop.f32.mrf.mxu0
        %v4528 = vadd.f32 0.0, %v4527
        %v4529 = vpop.f32.mrf.mxu0
        %v4530 = vpop.f32.mrf.mxu0
        %v4531 = vadd.f32 0.0, %v4530
        %v4532 = vpop.f32.mrf.mxu0
        %4533 = vmatprep.mubr.bf16.mxu0 0
        %4534 = vmatmul.mubr.bf16.gmra.mxu0 %v4423
        %v4535 = vpop.f32.mrf.mxu0
        %v4536 = vadd.f32 0.0, %v4535
        %v4537 = vpop.f32.mrf.mxu0
        %v4538 = vpop.f32.mrf.mxu0
        %v4539 = vadd.f32 0.0, %v4538
        %v4540 = vpop.f32.mrf.mxu0
        %4541 = vmatprep.mubr.bf16.mxu0 0
        %4542 = vmatmul.mubr.bf16.gmra.mxu0 %v4424
        %v4543 = vpop.f32.mrf.mxu0
        %v4544 = vadd.f32 0.0, %v4543
        %v4545 = vpop.f32.mrf.mxu0
        %v4546 = vpop.f32.mrf.mxu0
        %v4547 = vadd.f32 0.0, %v4546
        %v4548 = vpop.f32.mrf.mxu0
        %4549 = vmatprep.mubr.bf16.mxu0 0
        %4550 = vmatmul.mubr.bf16.gmra.mxu0 %v4425
        %v4551 = vpop.f32.mrf.mxu0
        %v4552 = vadd.f32 0.0, %v4551
        %v4553 = vpop.f32.mrf.mxu0
        %v4554 = vpop.f32.mrf.mxu0
        %v4555 = vadd.f32 0.0, %v4554
        %v4556 = vpop.f32.mrf.mxu0
        %4557 = vmatprep.mubr.bf16.mxu0 0
        %4558 = vmatmul.mubr.bf16.gmra.mxu0 %v4426
        %v4559 = vpop.f32.mrf.mxu0
        %v4560 = vadd.f32 0.0, %v4559
        %v4561 = vpop.f32.mrf.mxu0
        %v4562 = vpop.f32.mrf.mxu0
        %v4563 = vadd.f32 0.0, %v4562
        %v4564 = vpop.f32.mrf.mxu0
        %4565 = vmatprep.mubr.bf16.mxu0 0
        %4566 = vmatmul.mubr.bf16.gmra.mxu0 %v4427
        %v4567 = vpop.f32.mrf.mxu0
        %v4568 = vadd.f32 0.0, %v4567
        %v4569 = vpop.f32.mrf.mxu0
        %v4570 = vpop.f32.mrf.mxu0
        %v4571 = vadd.f32 0.0, %v4570
        %v4572 = vpop.f32.mrf.mxu0
        %4573 = vmatprep.mubr.bf16.mxu0 0
        %4574 = vmatmul.mubr.bf16.gmra.mxu0 %v4428
        %v4575 = vpop.f32.mrf.mxu0
        %v4576 = vadd.f32 0.0, %v4575
        %v4577 = vpop.f32.mrf.mxu0
        %v4578 = vpop.f32.mrf.mxu0
        %v4579 = vadd.f32 0.0, %v4578
        %v4580 = vpop.f32.mrf.mxu0
        %4581 = vdwg.mxu0
        %v4582 = vadd.f32 %v4285, %v4520
        %v4583 = vadd.f32 %v4286, %v4523
        %v4584 = vadd.f32 %v4287, %v4528
        %v4585 = vadd.f32 %v4288, %v4531
        %v4586 = vadd.f32 %v4289, %v4536
        %v4587 = vadd.f32 %v4290, %v4539
        %v4588 = vadd.f32 %v4291, %v4544
        %v4589 = vadd.f32 %v4292, %v4547
        %v4590 = vadd.f32 %v4293, %v4552
        %v4591 = vadd.f32 %v4294, %v4555
        %v4592 = vadd.f32 %v4295, %v4560
        %v4593 = vadd.f32 %v4296, %v4563
        %v4594 = vadd.f32 %v4297, %v4568
        %v4595 = vadd.f32 %v4298, %v4571
        %v4596 = vadd.f32 %v4299, %v4576
        %v4597 = vadd.f32 %v4300, %v4579
        %s4598 = scalar_lea.vmem [#allocation2], 24
        %v4599 = vld [vmem:[%s4598] sm:$0xf]
        %v4600 = vld [vmem:[%s4598 + $0x4] sm:$0xf]
        %v4601 = vld [vmem:[%s4598 + $0xc] sm:$0xf]
        %v4602 = vld [vmem:[%s4598 + $0x10] sm:$0xf]
        %v4603 = vld [vmem:[%s4598 + $0x18] sm:$0xf]
        %v4604 = vld [vmem:[%s4598 + $0x1c] sm:$0xf]
        %v4605 = vld [vmem:[%s4598 + $0x24] sm:$0xf]
        %v4606 = vld [vmem:[%s4598 + $0x28] sm:$0xf]
        %v4607 = vld [vmem:[%s4598 + $0x30] sm:$0xf]
        %v4608 = vld [vmem:[%s4598 + $0x34] sm:$0xf]
        %v4609 = vld [vmem:[%s4598 + $0x3c] sm:$0xf]
        %v4610 = vld [vmem:[%s4598 + $0x40] sm:$0xf]
        %v4611 = vld [vmem:[%s4598 + $0x48] sm:$0xf]
        %v4612 = vld [vmem:[%s4598 + $0x4c] sm:$0xf]
        %v4613 = vld [vmem:[%s4598 + $0x54] sm:$0xf]
        %v4614 = vld [vmem:[%s4598 + $0x58] sm:$0xf]
        %v4615 = vld [vmem:[%s3 + $0x180] sm:$0xf]
        %v4616 = vld [vmem:[%s3 + $0x184] sm:$0xf]
        %v4617 = vld [vmem:[%s3 + $0x188] sm:$0xf]
        %v4618 = vld [vmem:[%s3 + $0x18c] sm:$0xf]
        %v4619 = vld [vmem:[%s3 + $0x190] sm:$0xf]
        %v4620 = vld [vmem:[%s3 + $0x194] sm:$0xf]
        %v4621 = vld [vmem:[%s3 + $0x198] sm:$0xf]
        %v4622 = vld [vmem:[%s3 + $0x19c] sm:$0xf]
        %v4623 = vld [vmem:[%s3 + $0x1a0] sm:$0xf]
        %v4624 = vld [vmem:[%s3 + $0x1a4] sm:$0xf]
        %v4625 = vld [vmem:[%s3 + $0x1a8] sm:$0xf]
        %v4626 = vld [vmem:[%s3 + $0x1ac] sm:$0xf]
        %v4627 = vld [vmem:[%s3 + $0x1b0] sm:$0xf]
        %v4628 = vld [vmem:[%s3 + $0x1b4] sm:$0xf]
        %v4629 = vld [vmem:[%s3 + $0x1b8] sm:$0xf]
        %v4630 = vld [vmem:[%s3 + $0x1bc] sm:$0xf]
        %v4647 = vunpack.c.l.b16 %v4599
        %v4648 = vunpack.c.l.b16 %v4600
        %v4649 = vunpack.c.l.b16 %v4601
        %v4650 = vunpack.c.l.b16 %v4602
        %v4651 = vunpack.c.l.b16 %v4603
        %v4652 = vunpack.c.l.b16 %v4604
        %v4653 = vunpack.c.l.b16 %v4605
        %v4654 = vunpack.c.l.b16 %v4606
        %v4655 = vunpack.c.l.b16 %v4607
        %v4656 = vunpack.c.l.b16 %v4608
        %v4657 = vunpack.c.l.b16 %v4609
        %v4658 = vunpack.c.l.b16 %v4610
        %v4659 = vunpack.c.l.b16 %v4611
        %v4660 = vunpack.c.l.b16 %v4612
        %v4661 = vunpack.c.l.b16 %v4613
        %v4662 = vunpack.c.l.b16 %v4614
        %v4663 = vpack.c.b16 %v4648, %v4647
        %v4664 = vpack.c.b16 %v4650, %v4649
        %v4665 = vpack.c.b16 %v4652, %v4651
        %v4666 = vpack.c.b16 %v4654, %v4653
        %v4667 = vpack.c.b16 %v4656, %v4655
        %v4668 = vpack.c.b16 %v4658, %v4657
        %v4669 = vpack.c.b16 %v4660, %v4659
        %v4670 = vpack.c.b16 %v4662, %v4661
        %v4695 = vunpack.c.l.b16 %v4615
        %v4696 = vunpack.c.l.b16 %v4616
        %v4697 = vunpack.c.l.b16 %v4617
        %v4698 = vunpack.c.l.b16 %v4618
        %v4699 = vunpack.c.l.b16 %v4619
        %v4700 = vunpack.c.l.b16 %v4620
        %v4701 = vunpack.c.l.b16 %v4621
        %v4702 = vunpack.c.l.b16 %v4622
        %v4703 = vunpack.c.l.b16 %v4623
        %v4704 = vunpack.c.l.b16 %v4624
        %v4705 = vunpack.c.l.b16 %v4625
        %v4706 = vunpack.c.l.b16 %v4626
        %v4707 = vunpack.c.l.b16 %v4627
        %v4708 = vunpack.c.l.b16 %v4628
        %v4709 = vunpack.c.l.b16 %v4629
        %v4710 = vunpack.c.l.b16 %v4630
        %v4711 = vpack.c.b16 %v4696, %v4695
        %v4712 = vpack.c.b16 %v4698, %v4697
        %v4713 = vpack.c.b16 %v4700, %v4699
        %v4714 = vpack.c.b16 %v4702, %v4701
        %v4715 = vpack.c.b16 %v4704, %v4703
        %v4716 = vpack.c.b16 %v4706, %v4705
        %v4717 = vpack.c.b16 %v4708, %v4707
        %v4718 = vpack.c.b16 %v4710, %v4709
        %4727 = vmatprep.subr.bf16.mxu0 0
        %4728 = vmatpush1.bf16.msra.mxu0 %v4718
        %4729 = vmatprep.subr.bf16.mxu0 0
        %4730 = vmatpush1.bf16.msra.mxu0 %v4717
        %4731 = vmatprep.subr.bf16.mxu0 0
        %4732 = vmatpush1.bf16.msra.mxu0 %v4716
        %4733 = vmatprep.subr.bf16.mxu0 0
        %4734 = vmatpush1.bf16.msra.mxu0 %v4715
        %4735 = vmatprep.subr.bf16.mxu0 0
        %4736 = vmatpush1.bf16.msra.mxu0 %v4714
        %4737 = vmatprep.subr.bf16.mxu0 0
        %4738 = vmatpush1.bf16.msra.mxu0 %v4713
        %4739 = vmatprep.subr.bf16.mxu0 0
        %4740 = vmatpush1.bf16.msra.mxu0 %v4712
        %4741 = vmatprep.subr.bf16.mxu0 0
        %4742 = vmatpush1.bf16.msra.mxu0 %v4711
        %4743 = vmatprep.subr.bf16.mxu0 0
        %4744 = vmatpush2.bf16.msra.mxu0 0
        %4745 = vmatprep.subr.bf16.mxu0 0
        %4746 = vmatpush2.bf16.msra.mxu0 0
        %4747 = vmatprep.subr.bf16.mxu0 0
        %4748 = vmatpush2.bf16.msra.mxu0 0
        %4749 = vmatprep.subr.bf16.mxu0 0
        %4750 = vmatpush2.bf16.msra.mxu0 0
        %4751 = vmatprep.subr.bf16.mxu0 0
        %4752 = vmatpush2.bf16.msra.mxu0 0
        %4753 = vmatprep.subr.bf16.mxu0 0
        %4754 = vmatpush2.bf16.msra.mxu0 0
        %4755 = vmatprep.subr.bf16.mxu0 0
        %4756 = vmatpush2.bf16.msra.mxu0 0
        %4757 = vmatprep.subr.bf16.mxu0 0
        %4758 = vmatpush2.bf16.msra.mxu0 0
        %4759 = vmatprep.mubr.bf16.mxu0 0
        %4760 = vmatmul.mubr.bf16.gmra.mxu0 %v4663
        %v4761 = vpop.f32.mrf.mxu0
        %v4762 = vadd.f32 0.0, %v4761
        %v4763 = vpop.f32.mrf.mxu0
        %v4764 = vpop.f32.mrf.mxu0
        %v4765 = vadd.f32 0.0, %v4764
        %v4766 = vpop.f32.mrf.mxu0
        %4767 = vmatprep.mubr.bf16.mxu0 0
        %4768 = vmatmul.mubr.bf16.gmra.mxu0 %v4664
        %v4769 = vpop.f32.mrf.mxu0
        %v4770 = vadd.f32 0.0, %v4769
        %v4771 = vpop.f32.mrf.mxu0
        %v4772 = vpop.f32.mrf.mxu0
        %v4773 = vadd.f32 0.0, %v4772
        %v4774 = vpop.f32.mrf.mxu0
        %4775 = vmatprep.mubr.bf16.mxu0 0
        %4776 = vmatmul.mubr.bf16.gmra.mxu0 %v4665
        %v4777 = vpop.f32.mrf.mxu0
        %v4778 = vadd.f32 0.0, %v4777
        %v4779 = vpop.f32.mrf.mxu0
        %v4780 = vpop.f32.mrf.mxu0
        %v4781 = vadd.f32 0.0, %v4780
        %v4782 = vpop.f32.mrf.mxu0
        %4783 = vmatprep.mubr.bf16.mxu0 0
        %4784 = vmatmul.mubr.bf16.gmra.mxu0 %v4666
        %v4785 = vpop.f32.mrf.mxu0
        %v4786 = vadd.f32 0.0, %v4785
        %v4787 = vpop.f32.mrf.mxu0
        %v4788 = vpop.f32.mrf.mxu0
        %v4789 = vadd.f32 0.0, %v4788
        %v4790 = vpop.f32.mrf.mxu0
        %4791 = vmatprep.mubr.bf16.mxu0 0
        %4792 = vmatmul.mubr.bf16.gmra.mxu0 %v4667
        %v4793 = vpop.f32.mrf.mxu0
        %v4794 = vadd.f32 0.0, %v4793
        %v4795 = vpop.f32.mrf.mxu0
        %v4796 = vpop.f32.mrf.mxu0
        %v4797 = vadd.f32 0.0, %v4796
        %v4798 = vpop.f32.mrf.mxu0
        %4799 = vmatprep.mubr.bf16.mxu0 0
        %4800 = vmatmul.mubr.bf16.gmra.mxu0 %v4668
        %v4801 = vpop.f32.mrf.mxu0
        %v4802 = vadd.f32 0.0, %v4801
        %v4803 = vpop.f32.mrf.mxu0
        %v4804 = vpop.f32.mrf.mxu0
        %v4805 = vadd.f32 0.0, %v4804
        %v4806 = vpop.f32.mrf.mxu0
        %4807 = vmatprep.mubr.bf16.mxu0 0
        %4808 = vmatmul.mubr.bf16.gmra.mxu0 %v4669
        %v4809 = vpop.f32.mrf.mxu0
        %v4810 = vadd.f32 0.0, %v4809
        %v4811 = vpop.f32.mrf.mxu0
        %v4812 = vpop.f32.mrf.mxu0
        %v4813 = vadd.f32 0.0, %v4812
        %v4814 = vpop.f32.mrf.mxu0
        %4815 = vmatprep.mubr.bf16.mxu0 0
        %4816 = vmatmul.mubr.bf16.gmra.mxu0 %v4670
        %v4817 = vpop.f32.mrf.mxu0
        %v4818 = vadd.f32 0.0, %v4817
        %v4819 = vpop.f32.mrf.mxu0
        %v4820 = vpop.f32.mrf.mxu0
        %v4821 = vadd.f32 0.0, %v4820
        %v4822 = vpop.f32.mrf.mxu0
        %4823 = vdwg.mxu0
        %v4824 = vadd.f32 %v4582, %v4762
        %v4825 = vadd.f32 %v4583, %v4765
        %v4826 = vadd.f32 %v4584, %v4770
        %v4827 = vadd.f32 %v4585, %v4773
        %v4828 = vadd.f32 %v4586, %v4778
        %v4829 = vadd.f32 %v4587, %v4781
        %v4830 = vadd.f32 %v4588, %v4786
        %v4831 = vadd.f32 %v4589, %v4789
        %v4832 = vadd.f32 %v4590, %v4794
        %v4833 = vadd.f32 %v4591, %v4797
        %v4834 = vadd.f32 %v4592, %v4802
        %v4835 = vadd.f32 %v4593, %v4805
        %v4836 = vadd.f32 %v4594, %v4810
        %v4837 = vadd.f32 %v4595, %v4813
        %v4838 = vadd.f32 %v4596, %v4818
        %v4839 = vadd.f32 %v4597, %v4821
        %v4840 = vld [vmem:[%s4598] sm:$0xf]
        %v4841 = vld [vmem:[%s4598 + $0x4] sm:$0xf]
        %v4842 = vld [vmem:[%s4598 + $0x8] sm:$0x1]
        %v4843 = vld [vmem:[%s4598 + $0xc] sm:$0xf]
        %v4844 = vld [vmem:[%s4598 + $0x10] sm:$0xf]
        %v4845 = vld [vmem:[%s4598 + $0x14] sm:$0x1]
        %v4846 = vld [vmem:[%s4598 + $0x18] sm:$0xf]
        %v4847 = vld [vmem:[%s4598 + $0x1c] sm:$0xf]
        %v4848 = vld [vmem:[%s4598 + $0x20] sm:$0x1]
        %v4849 = vld [vmem:[%s4598 + $0x24] sm:$0xf]
        %v4850 = vld [vmem:[%s4598 + $0x28] sm:$0xf]
        %v4851 = vld [vmem:[%s4598 + $0x2c] sm:$0x1]
        %v4852 = vld [vmem:[%s4598 + $0x30] sm:$0xf]
        %v4853 = vld [vmem:[%s4598 + $0x34] sm:$0xf]
        %v4854 = vld [vmem:[%s4598 + $0x38] sm:$0x1]
        %v4855 = vld [vmem:[%s4598 + $0x3c] sm:$0xf]
        %v4856 = vld [vmem:[%s4598 + $0x40] sm:$0xf]
        %v4857 = vld [vmem:[%s4598 + $0x44] sm:$0x1]
        %v4858 = vld [vmem:[%s4598 + $0x48] sm:$0xf]
        %v4859 = vld [vmem:[%s4598 + $0x4c] sm:$0xf]
        %v4860 = vld [vmem:[%s4598 + $0x50] sm:$0x1]
        %v4861 = vld [vmem:[%s4598 + $0x54] sm:$0xf]
        %v4862 = vld [vmem:[%s4598 + $0x58] sm:$0xf]
        %v4863 = vld [vmem:[%s4598 + $0x5c] sm:$0x1]
        %v4865 = vshrl.u32 %v4840, 16
        %v4867 = vrot.slane %v4865, 4
        %v4868 = vshll.u32 %v4840, 16
        %v4870 = vrot.slane %v4868, 5
        %v4871 = vor.u32 %v4867, %v4870
        %v4872 = vrot.slane %v4871, 4
        %v4874 = vshll.u32 %v4841, 16
        %v4876 = vrot.slane %v4874, 5
        %v4877 = vsel %vm2763, %v4872, %v4876
        %v4878 = vshrl.u32 %v4841, 16
        %v4880 = vrot.slane %v4878, 4
        %v4881 = vor.u32 %v4880, %v4876
        %v4882 = vrot.slane %v4881, 4
        %v4884 = vshll.u32 %v4842, 16
        %v4886 = vrot.slane %v4884, 5
        %v4887 = vsel %vm2763, %v4882, %v4886
        %v4889 = vshrl.u32 %v4843, 16
        %v4891 = vrot.slane %v4889, 4
        %v4892 = vshll.u32 %v4843, 16
        %v4894 = vrot.slane %v4892, 5
        %v4895 = vor.u32 %v4891, %v4894
        %v4896 = vrot.slane %v4895, 4
        %v4898 = vshll.u32 %v4844, 16
        %v4900 = vrot.slane %v4898, 5
        %v4901 = vsel %vm2763, %v4896, %v4900
        %v4902 = vshrl.u32 %v4844, 16
        %v4904 = vrot.slane %v4902, 4
        %v4905 = vor.u32 %v4904, %v4900
        %v4906 = vrot.slane %v4905, 4
        %v4908 = vshll.u32 %v4845, 16
        %v4910 = vrot.slane %v4908, 5
        %v4911 = vsel %vm2763, %v4906, %v4910
        %v4913 = vshrl.u32 %v4846, 16
        %v4915 = vrot.slane %v4913, 4
        %v4916 = vshll.u32 %v4846, 16
        %v4918 = vrot.slane %v4916, 5
        %v4919 = vor.u32 %v4915, %v4918
        %v4920 = vrot.slane %v4919, 4
        %v4922 = vshll.u32 %v4847, 16
        %v4924 = vrot.slane %v4922, 5
        %v4925 = vsel %vm2763, %v4920, %v4924
        %v4926 = vshrl.u32 %v4847, 16
        %v4928 = vrot.slane %v4926, 4
        %v4929 = vor.u32 %v4928, %v4924
        %v4930 = vrot.slane %v4929, 4
        %v4932 = vshll.u32 %v4848, 16
        %v4934 = vrot.slane %v4932, 5
        %v4935 = vsel %vm2763, %v4930, %v4934
        %v4937 = vshrl.u32 %v4849, 16
        %v4939 = vrot.slane %v4937, 4
        %v4940 = vshll.u32 %v4849, 16
        %v4942 = vrot.slane %v4940, 5
        %v4943 = vor.u32 %v4939, %v4942
        %v4944 = vrot.slane %v4943, 4
        %v4946 = vshll.u32 %v4850, 16
        %v4948 = vrot.slane %v4946, 5
        %v4949 = vsel %vm2763, %v4944, %v4948
        %v4950 = vshrl.u32 %v4850, 16
        %v4952 = vrot.slane %v4950, 4
        %v4953 = vor.u32 %v4952, %v4948
        %v4954 = vrot.slane %v4953, 4
        %v4956 = vshll.u32 %v4851, 16
        %v4958 = vrot.slane %v4956, 5
        %v4959 = vsel %vm2763, %v4954, %v4958
        %v4961 = vshrl.u32 %v4852, 16
        %v4963 = vrot.slane %v4961, 4
        %v4964 = vshll.u32 %v4852, 16
        %v4966 = vrot.slane %v4964, 5
        %v4967 = vor.u32 %v4963, %v4966
        %v4968 = vrot.slane %v4967, 4
        %v4970 = vshll.u32 %v4853, 16
        %v4972 = vrot.slane %v4970, 5
        %v4973 = vsel %vm2763, %v4968, %v4972
        %v4974 = vshrl.u32 %v4853, 16
        %v4976 = vrot.slane %v4974, 4
        %v4977 = vor.u32 %v4976, %v4972
        %v4978 = vrot.slane %v4977, 4
        %v4980 = vshll.u32 %v4854, 16
        %v4982 = vrot.slane %v4980, 5
        %v4983 = vsel %vm2763, %v4978, %v4982
        %v4985 = vshrl.u32 %v4855, 16
        %v4987 = vrot.slane %v4985, 4
        %v4988 = vshll.u32 %v4855, 16
        %v4990 = vrot.slane %v4988, 5
        %v4991 = vor.u32 %v4987, %v4990
        %v4992 = vrot.slane %v4991, 4
        %v4994 = vshll.u32 %v4856, 16
        %v4996 = vrot.slane %v4994, 5
        %v4997 = vsel %vm2763, %v4992, %v4996
        %v4998 = vshrl.u32 %v4856, 16
        %v5000 = vrot.slane %v4998, 4
        %v5001 = vor.u32 %v5000, %v4996
        %v5002 = vrot.slane %v5001, 4
        %v5004 = vshll.u32 %v4857, 16
        %v5006 = vrot.slane %v5004, 5
        %v5007 = vsel %vm2763, %v5002, %v5006
        %v5009 = vshrl.u32 %v4858, 16
        %v5011 = vrot.slane %v5009, 4
        %v5012 = vshll.u32 %v4858, 16
        %v5014 = vrot.slane %v5012, 5
        %v5015 = vor.u32 %v5011, %v5014
        %v5016 = vrot.slane %v5015, 4
        %v5018 = vshll.u32 %v4859, 16
        %v5020 = vrot.slane %v5018, 5
        %v5021 = vsel %vm2763, %v5016, %v5020
        %v5022 = vshrl.u32 %v4859, 16
        %v5024 = vrot.slane %v5022, 4
        %v5025 = vor.u32 %v5024, %v5020
        %v5026 = vrot.slane %v5025, 4
        %v5028 = vshll.u32 %v4860, 16
        %v5030 = vrot.slane %v5028, 5
        %v5031 = vsel %vm2763, %v5026, %v5030
        %v5033 = vshrl.u32 %v4861, 16
        %v5035 = vrot.slane %v5033, 4
        %v5036 = vshll.u32 %v4861, 16
        %v5038 = vrot.slane %v5036, 5
        %v5039 = vor.u32 %v5035, %v5038
        %v5040 = vrot.slane %v5039, 4
        %v5042 = vshll.u32 %v4862, 16
        %v5044 = vrot.slane %v5042, 5
        %v5045 = vsel %vm2763, %v5040, %v5044
        %v5046 = vshrl.u32 %v4862, 16
        %v5048 = vrot.slane %v5046, 4
        %v5049 = vor.u32 %v5048, %v5044
        %v5050 = vrot.slane %v5049, 4
        %v5052 = vshll.u32 %v4863, 16
        %v5054 = vrot.slane %v5052, 5
        %v5055 = vsel %vm2763, %v5050, %v5054
        %v5056 = vld [vmem:[%s3 + $0x1c0] sm:$0xf]
        %v5057 = vld [vmem:[%s3 + $0x1c4] sm:$0xf]
        %v5058 = vld [vmem:[%s3 + $0x1c8] sm:$0xf]
        %v5059 = vld [vmem:[%s3 + $0x1cc] sm:$0xf]
        %v5060 = vld [vmem:[%s3 + $0x1d0] sm:$0xf]
        %v5061 = vld [vmem:[%s3 + $0x1d4] sm:$0xf]
        %v5062 = vld [vmem:[%s3 + $0x1d8] sm:$0xf]
        %v5063 = vld [vmem:[%s3 + $0x1dc] sm:$0xf]
        %v5064 = vld [vmem:[%s3 + $0x1e0] sm:$0xf]
        %v5065 = vld [vmem:[%s3 + $0x1e4] sm:$0xf]
        %v5066 = vld [vmem:[%s3 + $0x1e8] sm:$0xf]
        %v5067 = vld [vmem:[%s3 + $0x1ec] sm:$0xf]
        %v5068 = vld [vmem:[%s3 + $0x1f0] sm:$0xf]
        %v5069 = vld [vmem:[%s3 + $0x1f4] sm:$0xf]
        %v5070 = vld [vmem:[%s3 + $0x1f8] sm:$0xf]
        %v5071 = vld [vmem:[%s3 + $0x1fc] sm:$0xf]
        %v5072 = vunpack.c.l.b16 %v4877
        %v5073 = vunpack.c.l.b16 %v4887
        %v5074 = vunpack.c.l.b16 %v4901
        %v5075 = vunpack.c.l.b16 %v4911
        %v5076 = vunpack.c.l.b16 %v4925
        %v5077 = vunpack.c.l.b16 %v4935
        %v5078 = vunpack.c.l.b16 %v4949
        %v5079 = vunpack.c.l.b16 %v4959
        %v5080 = vunpack.c.l.b16 %v4973
        %v5081 = vunpack.c.l.b16 %v4983
        %v5082 = vunpack.c.l.b16 %v4997
        %v5083 = vunpack.c.l.b16 %v5007
        %v5084 = vunpack.c.l.b16 %v5021
        %v5085 = vunpack.c.l.b16 %v5031
        %v5086 = vunpack.c.l.b16 %v5045
        %v5087 = vunpack.c.l.b16 %v5055
        %v5088 = vpack.c.b16 %v5073, %v5072
        %v5089 = vpack.c.b16 %v5075, %v5074
        %v5090 = vpack.c.b16 %v5077, %v5076
        %v5091 = vpack.c.b16 %v5079, %v5078
        %v5092 = vpack.c.b16 %v5081, %v5080
        %v5093 = vpack.c.b16 %v5083, %v5082
        %v5094 = vpack.c.b16 %v5085, %v5084
        %v5095 = vpack.c.b16 %v5087, %v5086
        %v5120 = vunpack.c.l.b16 %v5056
        %v5121 = vunpack.c.l.b16 %v5057
        %v5122 = vunpack.c.l.b16 %v5058
        %v5123 = vunpack.c.l.b16 %v5059
        %v5124 = vunpack.c.l.b16 %v5060
        %v5125 = vunpack.c.l.b16 %v5061
        %v5126 = vunpack.c.l.b16 %v5062
        %v5127 = vunpack.c.l.b16 %v5063
        %v5128 = vunpack.c.l.b16 %v5064
        %v5129 = vunpack.c.l.b16 %v5065
        %v5130 = vunpack.c.l.b16 %v5066
        %v5131 = vunpack.c.l.b16 %v5067
        %v5132 = vunpack.c.l.b16 %v5068
        %v5133 = vunpack.c.l.b16 %v5069
        %v5134 = vunpack.c.l.b16 %v5070
        %v5135 = vunpack.c.l.b16 %v5071
        %v5136 = vpack.c.b16 %v5121, %v5120
        %v5137 = vpack.c.b16 %v5123, %v5122
        %v5138 = vpack.c.b16 %v5125, %v5124
        %v5139 = vpack.c.b16 %v5127, %v5126
        %v5140 = vpack.c.b16 %v5129, %v5128
        %v5141 = vpack.c.b16 %v5131, %v5130
        %v5142 = vpack.c.b16 %v5133, %v5132
        %v5143 = vpack.c.b16 %v5135, %v5134
        %5152 = vmatprep.subr.bf16.mxu0 0
        %5153 = vmatpush1.bf16.msra.mxu0 %v5143
        %5154 = vmatprep.subr.bf16.mxu0 0
        %5155 = vmatpush1.bf16.msra.mxu0 %v5142
        %5156 = vmatprep.subr.bf16.mxu0 0
        %5157 = vmatpush1.bf16.msra.mxu0 %v5141
        %5158 = vmatprep.subr.bf16.mxu0 0
        %5159 = vmatpush1.bf16.msra.mxu0 %v5140
        %5160 = vmatprep.subr.bf16.mxu0 0
        %5161 = vmatpush1.bf16.msra.mxu0 %v5139
        %5162 = vmatprep.subr.bf16.mxu0 0
        %5163 = vmatpush1.bf16.msra.mxu0 %v5138
        %5164 = vmatprep.subr.bf16.mxu0 0
        %5165 = vmatpush1.bf16.msra.mxu0 %v5137
        %5166 = vmatprep.subr.bf16.mxu0 0
        %5167 = vmatpush1.bf16.msra.mxu0 %v5136
        %5168 = vmatprep.subr.bf16.mxu0 0
        %5169 = vmatpush2.bf16.msra.mxu0 0
        %5170 = vmatprep.subr.bf16.mxu0 0
        %5171 = vmatpush2.bf16.msra.mxu0 0
        %5172 = vmatprep.subr.bf16.mxu0 0
        %5173 = vmatpush2.bf16.msra.mxu0 0
        %5174 = vmatprep.subr.bf16.mxu0 0
        %5175 = vmatpush2.bf16.msra.mxu0 0
        %5176 = vmatprep.subr.bf16.mxu0 0
        %5177 = vmatpush2.bf16.msra.mxu0 0
        %5178 = vmatprep.subr.bf16.mxu0 0
        %5179 = vmatpush2.bf16.msra.mxu0 0
        %5180 = vmatprep.subr.bf16.mxu0 0
        %5181 = vmatpush2.bf16.msra.mxu0 0
        %5182 = vmatprep.subr.bf16.mxu0 0
        %5183 = vmatpush2.bf16.msra.mxu0 0
        %5184 = vmatprep.mubr.bf16.mxu0 0
        %5185 = vmatmul.mubr.bf16.gmra.mxu0 %v5088
        %v5186 = vpop.f32.mrf.mxu0
        %v5187 = vadd.f32 0.0, %v5186
        %v5188 = vpop.f32.mrf.mxu0
        %v5189 = vpop.f32.mrf.mxu0
        %v5190 = vadd.f32 0.0, %v5189
        %v5191 = vpop.f32.mrf.mxu0
        %5192 = vmatprep.mubr.bf16.mxu0 0
        %5193 = vmatmul.mubr.bf16.gmra.mxu0 %v5089
        %v5194 = vpop.f32.mrf.mxu0
        %v5195 = vadd.f32 0.0, %v5194
        %v5196 = vpop.f32.mrf.mxu0
        %v5197 = vpop.f32.mrf.mxu0
        %v5198 = vadd.f32 0.0, %v5197
        %v5199 = vpop.f32.mrf.mxu0
        %5200 = vmatprep.mubr.bf16.mxu0 0
        %5201 = vmatmul.mubr.bf16.gmra.mxu0 %v5090
        %v5202 = vpop.f32.mrf.mxu0
        %v5203 = vadd.f32 0.0, %v5202
        %v5204 = vpop.f32.mrf.mxu0
        %v5205 = vpop.f32.mrf.mxu0
        %v5206 = vadd.f32 0.0, %v5205
        %v5207 = vpop.f32.mrf.mxu0
        %5208 = vmatprep.mubr.bf16.mxu0 0
        %5209 = vmatmul.mubr.bf16.gmra.mxu0 %v5091
        %v5210 = vpop.f32.mrf.mxu0
        %v5211 = vadd.f32 0.0, %v5210
        %v5212 = vpop.f32.mrf.mxu0
        %v5213 = vpop.f32.mrf.mxu0
        %v5214 = vadd.f32 0.0, %v5213
        %v5215 = vpop.f32.mrf.mxu0
        %5216 = vmatprep.mubr.bf16.mxu0 0
        %5217 = vmatmul.mubr.bf16.gmra.mxu0 %v5092
        %v5218 = vpop.f32.mrf.mxu0
        %v5219 = vadd.f32 0.0, %v5218
        %v5220 = vpop.f32.mrf.mxu0
        %v5221 = vpop.f32.mrf.mxu0
        %v5222 = vadd.f32 0.0, %v5221
        %v5223 = vpop.f32.mrf.mxu0
        %5224 = vmatprep.mubr.bf16.mxu0 0
        %5225 = vmatmul.mubr.bf16.gmra.mxu0 %v5093
        %v5226 = vpop.f32.mrf.mxu0
        %v5227 = vadd.f32 0.0, %v5226
        %v5228 = vpop.f32.mrf.mxu0
        %v5229 = vpop.f32.mrf.mxu0
        %v5230 = vadd.f32 0.0, %v5229
        %v5231 = vpop.f32.mrf.mxu0
        %5232 = vmatprep.mubr.bf16.mxu0 0
        %5233 = vmatmul.mubr.bf16.gmra.mxu0 %v5094
        %v5234 = vpop.f32.mrf.mxu0
        %v5235 = vadd.f32 0.0, %v5234
        %v5236 = vpop.f32.mrf.mxu0
        %v5237 = vpop.f32.mrf.mxu0
        %v5238 = vadd.f32 0.0, %v5237
        %v5239 = vpop.f32.mrf.mxu0
        %5240 = vmatprep.mubr.bf16.mxu0 0
        %5241 = vmatmul.mubr.bf16.gmra.mxu0 %v5095
        %v5242 = vpop.f32.mrf.mxu0
        %v5243 = vadd.f32 0.0, %v5242
        %v5244 = vpop.f32.mrf.mxu0
        %v5245 = vpop.f32.mrf.mxu0
        %v5246 = vadd.f32 0.0, %v5245
        %v5247 = vpop.f32.mrf.mxu0
        %5248 = vdwg.mxu0
        %v5249 = vadd.f32 %v4824, %v5187
        %v5250 = vadd.f32 %v4825, %v5190
        %v5251 = vadd.f32 %v4826, %v5195
        %v5252 = vadd.f32 %v4827, %v5198
        %v5253 = vadd.f32 %v4828, %v5203
        %v5254 = vadd.f32 %v4829, %v5206
        %v5255 = vadd.f32 %v4830, %v5211
        %v5256 = vadd.f32 %v4831, %v5214
        %v5257 = vadd.f32 %v4832, %v5219
        %v5258 = vadd.f32 %v4833, %v5222
        %v5259 = vadd.f32 %v4834, %v5227
        %v5260 = vadd.f32 %v4835, %v5230
        %v5261 = vadd.f32 %v4836, %v5235
        %v5262 = vadd.f32 %v4837, %v5238
        %v5263 = vadd.f32 %v4838, %v5243
        %v5264 = vadd.f32 %v4839, %v5246
        %v5265 = vld [vmem:[%s4598] sm:$0xe]
        %v5266 = vld [vmem:[%s4598 + $0xc] sm:$0xe]
        %v5267 = vld [vmem:[%s4598 + $0x18] sm:$0xe]
        %v5268 = vld [vmem:[%s4598 + $0x24] sm:$0xe]
        %v5269 = vld [vmem:[%s4598 + $0x30] sm:$0xe]
        %v5270 = vld [vmem:[%s4598 + $0x3c] sm:$0xe]
        %v5271 = vld [vmem:[%s4598 + $0x48] sm:$0xe]
        %v5272 = vld [vmem:[%s4598 + $0x54] sm:$0xe]
        %v5297 = vrot.slane %v5265, 5
        %v5298 = vrot.slane %v5297, 4
        %v5299 = vrot.slane %v4841, 5
        %v5300 = vsel %vm3368, %v5298, %v5299
        %v5301 = vrot.slane %v5299, 4
        %v5302 = vrot.slane %v4842, 5
        %v5303 = vsel %vm3368, %v5301, %v5302
        %v5304 = vrot.slane %v5266, 5
        %v5305 = vrot.slane %v5304, 4
        %v5306 = vrot.slane %v4844, 5
        %v5307 = vsel %vm3368, %v5305, %v5306
        %v5308 = vrot.slane %v5306, 4
        %v5309 = vrot.slane %v4845, 5
        %v5310 = vsel %vm3368, %v5308, %v5309
        %v5311 = vrot.slane %v5267, 5
        %v5312 = vrot.slane %v5311, 4
        %v5313 = vrot.slane %v4847, 5
        %v5314 = vsel %vm3368, %v5312, %v5313
        %v5315 = vrot.slane %v5313, 4
        %v5316 = vrot.slane %v4848, 5
        %v5317 = vsel %vm3368, %v5315, %v5316
        %v5318 = vrot.slane %v5268, 5
        %v5319 = vrot.slane %v5318, 4
        %v5320 = vrot.slane %v4850, 5
        %v5321 = vsel %vm3368, %v5319, %v5320
        %v5322 = vrot.slane %v5320, 4
        %v5323 = vrot.slane %v4851, 5
        %v5324 = vsel %vm3368, %v5322, %v5323
        %v5325 = vrot.slane %v5269, 5
        %v5326 = vrot.slane %v5325, 4
        %v5327 = vrot.slane %v4853, 5
        %v5328 = vsel %vm3368, %v5326, %v5327
        %v5329 = vrot.slane %v5327, 4
        %v5330 = vrot.slane %v4854, 5
        %v5331 = vsel %vm3368, %v5329, %v5330
        %v5332 = vrot.slane %v5270, 5
        %v5333 = vrot.slane %v5332, 4
        %v5334 = vrot.slane %v4856, 5
        %v5335 = vsel %vm3368, %v5333, %v5334
        %v5336 = vrot.slane %v5334, 4
        %v5337 = vrot.slane %v4857, 5
        %v5338 = vsel %vm3368, %v5336, %v5337
        %v5339 = vrot.slane %v5271, 5
        %v5340 = vrot.slane %v5339, 4
        %v5341 = vrot.slane %v4859, 5
        %v5342 = vsel %vm3368, %v5340, %v5341
        %v5343 = vrot.slane %v5341, 4
        %v5344 = vrot.slane %v4860, 5
        %v5345 = vsel %vm3368, %v5343, %v5344
        %v5346 = vrot.slane %v5272, 5
        %v5347 = vrot.slane %v5346, 4
        %v5348 = vrot.slane %v4862, 5
        %v5349 = vsel %vm3368, %v5347, %v5348
        %v5350 = vrot.slane %v5348, 4
        %v5351 = vrot.slane %v4863, 5
        %v5352 = vsel %vm3368, %v5350, %v5351
        %v5353 = vld [vmem:[%s3 + $0x200] sm:$0xf]
        %v5354 = vld [vmem:[%s3 + $0x204] sm:$0xf]
        %v5355 = vld [vmem:[%s3 + $0x208] sm:$0xf]
        %v5356 = vld [vmem:[%s3 + $0x20c] sm:$0xf]
        %v5357 = vld [vmem:[%s3 + $0x210] sm:$0xf]
        %v5358 = vld [vmem:[%s3 + $0x214] sm:$0xf]
        %v5359 = vld [vmem:[%s3 + $0x218] sm:$0xf]
        %v5360 = vld [vmem:[%s3 + $0x21c] sm:$0xf]
        %v5361 = vld [vmem:[%s3 + $0x220] sm:$0xf]
        %v5362 = vld [vmem:[%s3 + $0x224] sm:$0xf]
        %v5363 = vld [vmem:[%s3 + $0x228] sm:$0xf]
        %v5364 = vld [vmem:[%s3 + $0x22c] sm:$0xf]
        %v5365 = vld [vmem:[%s3 + $0x230] sm:$0xf]
        %v5366 = vld [vmem:[%s3 + $0x234] sm:$0xf]
        %v5367 = vld [vmem:[%s3 + $0x238] sm:$0xf]
        %v5368 = vld [vmem:[%s3 + $0x23c] sm:$0xf]
        %v5369 = vunpack.c.l.b16 %v5300
        %v5370 = vunpack.c.l.b16 %v5303
        %v5371 = vunpack.c.l.b16 %v5307
        %v5372 = vunpack.c.l.b16 %v5310
        %v5373 = vunpack.c.l.b16 %v5314
        %v5374 = vunpack.c.l.b16 %v5317
        %v5375 = vunpack.c.l.b16 %v5321
        %v5376 = vunpack.c.l.b16 %v5324
        %v5377 = vunpack.c.l.b16 %v5328
        %v5378 = vunpack.c.l.b16 %v5331
        %v5379 = vunpack.c.l.b16 %v5335
        %v5380 = vunpack.c.l.b16 %v5338
        %v5381 = vunpack.c.l.b16 %v5342
        %v5382 = vunpack.c.l.b16 %v5345
        %v5383 = vunpack.c.l.b16 %v5349
        %v5384 = vunpack.c.l.b16 %v5352
        %v5385 = vpack.c.b16 %v5370, %v5369
        %v5386 = vpack.c.b16 %v5372, %v5371
        %v5387 = vpack.c.b16 %v5374, %v5373
        %v5388 = vpack.c.b16 %v5376, %v5375
        %v5389 = vpack.c.b16 %v5378, %v5377
        %v5390 = vpack.c.b16 %v5380, %v5379
        %v5391 = vpack.c.b16 %v5382, %v5381
        %v5392 = vpack.c.b16 %v5384, %v5383
        %v5417 = vunpack.c.l.b16 %v5353
        %v5418 = vunpack.c.l.b16 %v5354
        %v5419 = vunpack.c.l.b16 %v5355
        %v5420 = vunpack.c.l.b16 %v5356
        %v5421 = vunpack.c.l.b16 %v5357
        %v5422 = vunpack.c.l.b16 %v5358
        %v5423 = vunpack.c.l.b16 %v5359
        %v5424 = vunpack.c.l.b16 %v5360
        %v5425 = vunpack.c.l.b16 %v5361
        %v5426 = vunpack.c.l.b16 %v5362
        %v5427 = vunpack.c.l.b16 %v5363
        %v5428 = vunpack.c.l.b16 %v5364
        %v5429 = vunpack.c.l.b16 %v5365
        %v5430 = vunpack.c.l.b16 %v5366
        %v5431 = vunpack.c.l.b16 %v5367
        %v5432 = vunpack.c.l.b16 %v5368
        %v5433 = vpack.c.b16 %v5418, %v5417
        %v5434 = vpack.c.b16 %v5420, %v5419
        %v5435 = vpack.c.b16 %v5422, %v5421
        %v5436 = vpack.c.b16 %v5424, %v5423
        %v5437 = vpack.c.b16 %v5426, %v5425
        %v5438 = vpack.c.b16 %v5428, %v5427
        %v5439 = vpack.c.b16 %v5430, %v5429
        %v5440 = vpack.c.b16 %v5432, %v5431
        %5449 = vmatprep.subr.bf16.mxu0 0
        %5450 = vmatpush1.bf16.msra.mxu0 %v5440
        %5451 = vmatprep.subr.bf16.mxu0 0
        %5452 = vmatpush1.bf16.msra.mxu0 %v5439
        %5453 = vmatprep.subr.bf16.mxu0 0
        %5454 = vmatpush1.bf16.msra.mxu0 %v5438
        %5455 = vmatprep.subr.bf16.mxu0 0
        %5456 = vmatpush1.bf16.msra.mxu0 %v5437
        %5457 = vmatprep.subr.bf16.mxu0 0
        %5458 = vmatpush1.bf16.msra.mxu0 %v5436
        %5459 = vmatprep.subr.bf16.mxu0 0
        %5460 = vmatpush1.bf16.msra.mxu0 %v5435
        %5461 = vmatprep.subr.bf16.mxu0 0
        %5462 = vmatpush1.bf16.msra.mxu0 %v5434
        %5463 = vmatprep.subr.bf16.mxu0 0
        %5464 = vmatpush1.bf16.msra.mxu0 %v5433
        %5465 = vmatprep.subr.bf16.mxu0 0
        %5466 = vmatpush2.bf16.msra.mxu0 0
        %5467 = vmatprep.subr.bf16.mxu0 0
        %5468 = vmatpush2.bf16.msra.mxu0 0
        %5469 = vmatprep.subr.bf16.mxu0 0
        %5470 = vmatpush2.bf16.msra.mxu0 0
        %5471 = vmatprep.subr.bf16.mxu0 0
        %5472 = vmatpush2.bf16.msra.mxu0 0
        %5473 = vmatprep.subr.bf16.mxu0 0
        %5474 = vmatpush2.bf16.msra.mxu0 0
        %5475 = vmatprep.subr.bf16.mxu0 0
        %5476 = vmatpush2.bf16.msra.mxu0 0
        %5477 = vmatprep.subr.bf16.mxu0 0
        %5478 = vmatpush2.bf16.msra.mxu0 0
        %5479 = vmatprep.subr.bf16.mxu0 0
        %5480 = vmatpush2.bf16.msra.mxu0 0
        %5481 = vmatprep.mubr.bf16.mxu0 0
        %5482 = vmatmul.mubr.bf16.gmra.mxu0 %v5385
        %v5483 = vpop.f32.mrf.mxu0
        %v5484 = vadd.f32 0.0, %v5483
        %v5485 = vpop.f32.mrf.mxu0
        %v5486 = vpop.f32.mrf.mxu0
        %v5487 = vadd.f32 0.0, %v5486
        %v5488 = vpop.f32.mrf.mxu0
        %5489 = vmatprep.mubr.bf16.mxu0 0
        %5490 = vmatmul.mubr.bf16.gmra.mxu0 %v5386
        %v5491 = vpop.f32.mrf.mxu0
        %v5492 = vadd.f32 0.0, %v5491
        %v5493 = vpop.f32.mrf.mxu0
        %v5494 = vpop.f32.mrf.mxu0
        %v5495 = vadd.f32 0.0, %v5494
        %v5496 = vpop.f32.mrf.mxu0
        %5497 = vmatprep.mubr.bf16.mxu0 0
        %5498 = vmatmul.mubr.bf16.gmra.mxu0 %v5387
        %v5499 = vpop.f32.mrf.mxu0
        %v5500 = vadd.f32 0.0, %v5499
        %v5501 = vpop.f32.mrf.mxu0
        %v5502 = vpop.f32.mrf.mxu0
        %v5503 = vadd.f32 0.0, %v5502
        %v5504 = vpop.f32.mrf.mxu0
        %5505 = vmatprep.mubr.bf16.mxu0 0
        %5506 = vmatmul.mubr.bf16.gmra.mxu0 %v5388
        %v5507 = vpop.f32.mrf.mxu0
        %v5508 = vadd.f32 0.0, %v5507
        %v5509 = vpop.f32.mrf.mxu0
        %v5510 = vpop.f32.mrf.mxu0
        %v5511 = vadd.f32 0.0, %v5510
        %v5512 = vpop.f32.mrf.mxu0
        %5513 = vmatprep.mubr.bf16.mxu0 0
        %5514 = vmatmul.mubr.bf16.gmra.mxu0 %v5389
        %v5515 = vpop.f32.mrf.mxu0
        %v5516 = vadd.f32 0.0, %v5515
        %v5517 = vpop.f32.mrf.mxu0
        %v5518 = vpop.f32.mrf.mxu0
        %v5519 = vadd.f32 0.0, %v5518
        %v5520 = vpop.f32.mrf.mxu0
        %5521 = vmatprep.mubr.bf16.mxu0 0
        %5522 = vmatmul.mubr.bf16.gmra.mxu0 %v5390
        %v5523 = vpop.f32.mrf.mxu0
        %v5524 = vadd.f32 0.0, %v5523
        %v5525 = vpop.f32.mrf.mxu0
        %v5526 = vpop.f32.mrf.mxu0
        %v5527 = vadd.f32 0.0, %v5526
        %v5528 = vpop.f32.mrf.mxu0
        %5529 = vmatprep.mubr.bf16.mxu0 0
        %5530 = vmatmul.mubr.bf16.gmra.mxu0 %v5391
        %v5531 = vpop.f32.mrf.mxu0
        %v5532 = vadd.f32 0.0, %v5531
        %v5533 = vpop.f32.mrf.mxu0
        %v5534 = vpop.f32.mrf.mxu0
        %v5535 = vadd.f32 0.0, %v5534
        %v5536 = vpop.f32.mrf.mxu0
        %5537 = vmatprep.mubr.bf16.mxu0 0
        %5538 = vmatmul.mubr.bf16.gmra.mxu0 %v5392
        %v5539 = vpop.f32.mrf.mxu0
        %v5540 = vadd.f32 0.0, %v5539
        %v5541 = vpop.f32.mrf.mxu0
        %v5542 = vpop.f32.mrf.mxu0
        %v5543 = vadd.f32 0.0, %v5542
        %v5544 = vpop.f32.mrf.mxu0
        %5545 = vdwg.mxu0
        %v5546 = vadd.f32 %v5249, %v5484
        %v5547 = vadd.f32 %v5250, %v5487
        %v5548 = vadd.f32 %v5251, %v5492
        %v5549 = vadd.f32 %v5252, %v5495
        %v5550 = vadd.f32 %v5253, %v5500
        %v5551 = vadd.f32 %v5254, %v5503
        %v5552 = vadd.f32 %v5255, %v5508
        %v5553 = vadd.f32 %v5256, %v5511
        %v5554 = vadd.f32 %v5257, %v5516
        %v5555 = vadd.f32 %v5258, %v5519
        %v5556 = vadd.f32 %v5259, %v5524
        %v5557 = vadd.f32 %v5260, %v5527
        %v5558 = vadd.f32 %v5261, %v5532
        %v5559 = vadd.f32 %v5262, %v5535
        %v5560 = vadd.f32 %v5263, %v5540
        %v5561 = vadd.f32 %v5264, %v5543
        %v5562 = vld [vmem:[%s1636 + $0x1] sm:$0xff]
        %v5563 = vld [vmem:[%s1636 + $0x9] sm:$0xff]
        %v5564 = vld [vmem:[%s1636 + $0x19] sm:$0xff]
        %v5565 = vld [vmem:[%s1636 + $0x21] sm:$0xff]
        %v5566 = vld [vmem:[%s1636 + $0x31] sm:$0xff]
        %v5567 = vld [vmem:[%s1636 + $0x39] sm:$0xff]
        %v5568 = vld [vmem:[%s1636 + $0x49] sm:$0xff]
        %v5569 = vld [vmem:[%s1636 + $0x51] sm:$0xff]
        %v5570 = vld [vmem:[%s1636 + $0x61] sm:$0xff]
        %v5571 = vld [vmem:[%s1636 + $0x69] sm:$0xff]
        %v5572 = vld [vmem:[%s1636 + $0x79] sm:$0xff]
        %v5573 = vld [vmem:[%s1636 + $0x81] sm:$0xff]
        %v5574 = vld [vmem:[%s1636 + $0x91] sm:$0xff]
        %v5575 = vld [vmem:[%s1636 + $0x99] sm:$0xff]
        %v5576 = vld [vmem:[%s1636 + $0xa9] sm:$0xff]
        %v5577 = vld [vmem:[%s1636 + $0xb1] sm:$0xff]
        %v5579 = vlaneseq
        %v5580 = vshrl.u32 %v5579, 7
        %v5581 = vsub.s32 0, %v5580
        %v5582 = vrot.slane %v241, %v5581
        %v5584 = vadd.f32 %v5546, %v5582
        %v5585 = vadd.f32 %v5547, %v5582
        %v5586 = vadd.f32 %v5548, %v5582
        %v5587 = vadd.f32 %v5549, %v5582
        %v5588 = vadd.f32 %v5550, %v5582
        %v5589 = vadd.f32 %v5551, %v5582
        %v5590 = vadd.f32 %v5552, %v5582
        %v5591 = vadd.f32 %v5553, %v5582
        %v5592 = vadd.f32 %v5554, %v5582
        %v5593 = vadd.f32 %v5555, %v5582
        %v5594 = vadd.f32 %v5556, %v5582
        %v5595 = vadd.f32 %v5557, %v5582
        %v5596 = vadd.f32 %v5558, %v5582
        %v5597 = vadd.f32 %v5559, %v5582
        %v5598 = vadd.f32 %v5560, %v5582
        %v5599 = vadd.f32 %v5561, %v5582
        %v5600 = vadd.f32 %v5584, %v5562
        %v5601 = vadd.f32 %v5585, %v5563
        %v5602 = vadd.f32 %v5586, %v5564
        %v5603 = vadd.f32 %v5587, %v5565
        %v5604 = vadd.f32 %v5588, %v5566
        %v5605 = vadd.f32 %v5589, %v5567
        %v5606 = vadd.f32 %v5590, %v5568
        %v5607 = vadd.f32 %v5591, %v5569
        %v5608 = vadd.f32 %v5592, %v5570
        %v5609 = vadd.f32 %v5593, %v5571
        %v5610 = vadd.f32 %v5594, %v5572
        %v5611 = vadd.f32 %v5595, %v5573
        %v5612 = vadd.f32 %v5596, %v5574
        %v5613 = vadd.f32 %v5597, %v5575
        %v5614 = vadd.f32 %v5598, %v5576
        %v5615 = vadd.f32 %v5599, %v5577
        %v5616 = vmax.f32 %v5600, 0.0
        %v5617 = vmax.f32 %v5601, 0.0
        %v5618 = vmax.f32 %v5602, 0.0
        %v5619 = vmax.f32 %v5603, 0.0
        %v5620 = vmax.f32 %v5604, 0.0
        %v5621 = vmax.f32 %v5605, 0.0
        %v5622 = vmax.f32 %v5606, 0.0
        %v5623 = vmax.f32 %v5607, 0.0
        %v5624 = vmax.f32 %v5608, 0.0
        %v5625 = vmax.f32 %v5609, 0.0
        %v5626 = vmax.f32 %v5610, 0.0
        %v5627 = vmax.f32 %v5611, 0.0
        %v5628 = vmax.f32 %v5612, 0.0
        %v5629 = vmax.f32 %v5613, 0.0
        %v5630 = vmax.f32 %v5614, 0.0
        %v5631 = vmax.f32 %v5615, 0.0
        %5632 = vst [vmem:[%s231] sm:$0xff] %v5616
        %5633 = vst [vmem:[%s231 + $0x8] sm:$0xff] %v5617
        %5634 = vst [vmem:[%s231 + $0x10] sm:$0xff] %v5618
        %5635 = vst [vmem:[%s231 + $0x18] sm:$0xff] %v5619
        %5636 = vst [vmem:[%s231 + $0x20] sm:$0xff] %v5620
        %5637 = vst [vmem:[%s231 + $0x28] sm:$0xff] %v5621
        %5638 = vst [vmem:[%s231 + $0x30] sm:$0xff] %v5622
        %5639 = vst [vmem:[%s231 + $0x38] sm:$0xff] %v5623
        %5640 = vst [vmem:[%s231 + $0x40] sm:$0xff] %v5624
        %5641 = vst [vmem:[%s231 + $0x48] sm:$0xff] %v5625
        %5642 = vst [vmem:[%s231 + $0x50] sm:$0xff] %v5626
        %5643 = vst [vmem:[%s231 + $0x58] sm:$0xff] %v5627
        %5644 = vst [vmem:[%s231 + $0x60] sm:$0xff] %v5628
        %5645 = vst [vmem:[%s231 + $0x68] sm:$0xff] %v5629
        %5646 = vst [vmem:[%s231 + $0x70] sm:$0xff] %v5630
        %5647 = vst [vmem:[%s231 + $0x78] sm:$0xff] %v5631
        %s5648 = sand.u32 %s151, 1
        %s5649 = scalar_lea.sflag [#allocation4], %s5648
        %s5650 = sand.u32 %s151, 1
        %s5651 = smul.addr %s5650, 128
        %s5652 = scalar_lea.vmem [#allocation3], %s5651
        // Predicated region
        $region49: #{tpu_custom_call.1} parent=39 // pred_check
          %p5653 = pneg %p161
        $region50: #{tpu_custom_call.1} parent=39 // pred_check_branch
          %5655 = sbr.rel (%p5653) target = $region52
        $region51: #{tpu_custom_call.1} parent=39 // pred_region
          %s5656 = smul.u32 16, %s24
          %s5658 = ssub.s32 2048, 2048
          %5659 = vsyncadd %s5649, %s5658
          %s5660 = smul.addr %s23, 32
          %s5661 = sadd.s32 %s5656, %s5660
          %s5662 = smul.addr %s5661, 128
          %s5663 = scalar_lea.hbm %s5, %s5662
          %s5664 = sshll.u32 %s5652, 4
          %s5665 = int_to_ptr.vmem [resolvable:$true] %s5664
          %5670 = dma.vmem_to_hbm [thread:$0]  %s5665, 2048, %s5663, %s5649, 128, 128, 8
        $region52: #{tpu_custom_call.1} parent=39 // pred_fallthru
          _
      $region40: #{tpu_custom_call.1} parent=5 // pred_fallthru
        _
      %p5671 = scmp.le.s32.totalorder 2, %s14
      // Predicated region
      $region53: #{tpu_custom_call.1} parent=5 // pred_check
        %p5672 = pneg %p5671
      $region54: #{tpu_custom_call.1} parent=5 // pred_check_branch
        %5674 = sbr.rel (%p5672) target = $region56
      $region55: #{tpu_custom_call.1} parent=5 // pred_region
        %s5675 = ssub.s32 %s14, 2
        // Predicated region
        $region57: #{tpu_custom_call.1} parent=55 // pred_check
          %p5676 = pneg %p167
        $region58: #{tpu_custom_call.1} parent=55 // pred_check_branch
          %5678 = sbr.rel (%p5676) target = $region60
        $region59: #{tpu_custom_call.1} parent=55 // pred_region
          %s5679 = sand.u32 %s152, 1
          %s5680 = scalar_lea.sflag [#allocation4], %s5679
          %s5681 = sand.u32 %s152, 1
          %s5682 = smul.addr %s5681, 128
          %s5683 = scalar_lea.vmem [#allocation3], %s5682
          %5684 = dma.done %s5680, 2048
        $region60: #{tpu_custom_call.1} parent=55 // pred_fallthru
          _
      $region56: #{tpu_custom_call.1} parent=5 // pred_fallthru
        _
    $region6: #{tpu_custom_call.1} parent=1 // loop_footer
      %s18 = sadd.s32 1, %s14
    $region7: #{tpu_custom_call.1} parent=1 // loop_footer_branch
      %13 = sbr.rel target = $region3
    $region8: #{tpu_custom_call.1} parent=1 // loop_exit
      _
    %5685 = vsyncpa [#allocation4], 1
    %s5686 = scalar_lea.sflag [#allocation4], 1
    %5687 = vsyncpa %s5686, 1

</llo_original>
